<compile_context>
chip_gen: v6e
topology: v6e:2x2x1
jax: 0.10.0
libtpu: 0.0.40
codegen_flags: <defaults>
</compile_context>

<pallas_src>
import functools

import jax
import jax.numpy as jnp
from jax.experimental import pallas as pl
from jax.experimental.pallas import tpu as pltpu

F32 = jnp.float32
BF16 = jnp.bfloat16


def _round_up(x, m):
    return ((x + m - 1) // m) * m


def _pick_tile(total, candidates):
    for c in candidates:
        if total % c == 0:
            return c
    return candidates[-1]


# ----------------------------------------------------------------------------
# Pallas GEMM kernel:  O = relu(A @ B + bias) (+ sum of residual inputs)
# A, B are bf16; accumulation, epilogue and output are f32.
# ----------------------------------------------------------------------------
def _gemm_kernel(a_ref, b_ref, bias_ref, *rest, n_res, activation):
    res_refs = rest[:n_res]
    o_ref = rest[n_res]
    acc_ref = rest[n_res + 1]

    k = pl.program_id(2)

    @pl.when(k == 0)
    def _():
        acc_ref[...] = jnp.zeros_like(acc_ref)

    acc_ref[...] += jnp.dot(a_ref[...], b_ref[...],
                            preferred_element_type=jnp.float32)

    @pl.when(k == pl.num_programs(2) - 1)
    def _():
        y = acc_ref[...] + bias_ref[...]
        if activation == "relu":
            y = jnp.maximum(y, 0.0)
        for r in res_refs:
            y = y + r[...]
        o_ref[...] = y.astype(o_ref.dtype)


@functools.lru_cache(maxsize=None)
def _make_gemm(Mp, Kp, Np, tm, tk, tn, n_res, activation):
    grid = (Mp // tm, Np // tn, Kp // tk)
    in_specs = [
        pl.BlockSpec((tm, tk), lambda i, j, k: (i, k)),   # A (bf16)
        pl.BlockSpec((tk, tn), lambda i, j, k: (k, j)),   # B (bf16)
        pl.BlockSpec((1, tn), lambda i, j, k: (0, j)),    # bias (f32)
    ] + [
        pl.BlockSpec((tm, tn), lambda i, j, k: (i, j))    # residuals (f32)
        for _ in range(n_res)
    ]
    return pl.pallas_call(
        functools.partial(_gemm_kernel, n_res=n_res, activation=activation),
        out_shape=jax.ShapeDtypeStruct((Mp, Np), F32),
        grid_spec=pltpu.PrefetchScalarGridSpec(
            num_scalar_prefetch=0,
            grid=grid,
            in_specs=in_specs,
            out_specs=pl.BlockSpec((tm, tn), lambda i, j, k: (i, j)),
            scratch_shapes=[pltpu.VMEM((tm, tn), jnp.float32)],
        ),
        compiler_params=pltpu.CompilerParams(
            dimension_semantics=("parallel", "parallel", "arbitrary")
        ),
    )


def pallas_gemm_bias_act(a, b, bias, residuals=(), activation="relu"):
    """a: (M, K) f32, b: (K, N) f32, bias: (N,) f32, residuals: tuple of (M, N) f32."""
    M, K = a.shape
    K2, N = b.shape
    assert K == K2

    # Shape-aware padding / tile selection (per perf review: no blind 128-padding of M).
    Mp = _round_up(M, 8)
    tm = _pick_tile(Mp, (256, 128, 64, 32, 16, 8))
    Kp = _round_up(K, 128)
    tk = _pick_tile(Kp, (512, 384, 256, 128))
    Np = _round_up(N, 128)
    tn = _pick_tile(Np, (512, 256, 128))

    a_p = jnp.pad(a.astype(BF16), ((0, Mp - M), (0, Kp - K)))
    b_p = jnp.pad(b.astype(BF16), ((0, Kp - K), (0, Np - N)))
    bias_p = jnp.pad(bias.astype(F32).reshape(1, N), ((0, 0), (0, Np - N)))
    res_p = tuple(
        jnp.pad(r.astype(F32), ((0, Mp - M), (0, Np - N))) for r in residuals
    )

    out = _make_gemm(Mp, Kp, Np, tm, tk, tn, len(residuals), activation)(
        a_p, b_p, bias_p, *res_p
    )
    return out[:M, :N]


# ----------------------------------------------------------------------------
# im2col for a dilated 3x3 "same" conv (stride 1), plain JAX glue.
# ----------------------------------------------------------------------------
def _im2col_3x3(x, dilation):
    N, H, W, C = x.shape
    p = dilation
    xp = jnp.pad(x, ((0, 0), (p, p), (p, p), (0, 0)))
    cols = []
    for i in range(3):
        for j in range(3):
            hi, wj = i * dilation, j * dilation
            cols.append(xp[:, hi:hi + H, wj:wj + W, :])
    patches = jnp.concatenate(cols, axis=-1)          # (N, H, W, 9*C)
    return patches.reshape(N * H * W, 9 * C)


# ----------------------------------------------------------------------------
# Dblock_more_dilate forward (NCHW in, NCHW out) — matches the PyTorch module.
# ----------------------------------------------------------------------------
DILATIONS = (1, 2, 4, 8, 16)


@jax.jit
def dblock_more_dilate_forward(params, x_nchw):
    x = jnp.transpose(x_nchw.astype(F32), (0, 2, 3, 1))   # NCHW -> NHWC
    N, H, W, C = x.shape
    M = N * H * W

    residuals_2d = [x.reshape(M, C)]   # x + d1 + d2 + d3 + d4 (accumulated list)
    cur = x
    out2d = None
    for idx, d in enumerate(DILATIONS, start=1):
        w = params[f"w{idx}"]                                # (Cout, Cin, 3, 3)
        b = params[f"b{idx}"]                                # (Cout,)
        patches = _im2col_3x3(cur, d)                        # (M, 9*C)
        wmat = jnp.transpose(w, (2, 3, 1, 0)).reshape(9 * C, C)
        is_last = idx == len(DILATIONS)
        res = tuple(residuals_2d) if is_last else ()
        y2d = pallas_gemm_bias_act(patches, wmat, b, residuals=res,
                                   activation="relu")
        if is_last:
            out2d = y2d                                      # x + d1..d5 (fused epilogue)
        else:
            residuals_2d.append(y2d)
            cur = y2d.reshape(N, H, W, C)

    out = out2d.reshape(N, H, W, C)
    return jnp.transpose(out, (0, 3, 1, 2))                  # NHWC -> NCHW


# ----------------------------------------------------------------------------
# Pure-JAX reference (same bf16 operand / f32 accumulation convention).
# ----------------------------------------------------------------------------
@jax.jit
def reference_forward(params, x_nchw):
    x = jnp.transpose(x_nchw.astype(F32), (0, 2, 3, 1))
    total = x
    cur = x
    for idx, d in enumerate(DILATIONS, start=1):
        w_hwio = jnp.transpose(params[f"w{idx}"], (2, 3, 1, 0)).astype(BF16)
        y = jax.lax.conv_general_dilated(
            cur.astype(BF16), w_hwio,
            window_strides=(1, 1),
            padding=[(d, d), (d, d)],
            rhs_dilation=(d, d),
            dimension_numbers=("NHWC", "HWIO", "NHWC"),
            preferred_element_type=jnp.float32,
        )
        y = jnp.maximum(y + params[f"b{idx}"].astype(F32), 0.0)
        total = total + y
        cur = y
    return jnp.transpose(total, (0, 3, 1, 2))


# ----------------------------------------------------------------------------
# Deterministic synthetic parameters (Conv2d weights; biases zeroed as in __init__).
# ----------------------------------------------------------------------------
def make_dblock_params(key, channel):
    p = {}
    std = (2.0 / (channel * 9)) ** 0.5
    for i in range(1, 6):
        k = jax.random.fold_in(key, i)
        p[f"w{i}"] = std * jax.random.normal(k, (channel, channel, 3, 3), F32)
        p[f"b{i}"] = jnp.zeros((channel,), F32)   # bias.data.zero_() in the reference
    return p


# ----------------------------------------------------------------------------
if __name__ == "__main__":
    key = jax.random.PRNGKey(0)
    channel, batch, spatial = 32, 2, 32

    params = make_dblock_params(jax.random.fold_in(key, 1), channel)
    x = jax.random.normal(jax.random.fold_in(key, 2),
                          (batch, channel, spatial, spatial), F32)

    out = dblock_more_dilate_forward(params, x)
    out = jax.block_until_ready(out)

    assert out.shape == (batch, channel, spatial, spatial)
    assert bool(jnp.all(jnp.isfinite(out)))

    ref = jax.block_until_ready(reference_forward(params, x))
    max_err = float(jnp.max(jnp.abs(out - ref)))
    ref_scale = float(jnp.max(jnp.abs(ref)))
    assert max_err <= 2e-2 * ref_scale + 2e-2, (max_err, ref_scale)

    print("KERNEL_OK")
</pallas_src>

<mosaic_0001>
module attributes {stable_mosaic.version = 11 : i64} {
  func.func @_gemm_kernel(%arg0: i32, %arg1: i32, %arg2: i32, %arg3: memref<256x384xbf16, #tpu.memory_space<vmem>>, %arg4: memref<384x128xbf16, #tpu.memory_space<vmem>>, %arg5: memref<1x128xf32, #tpu.memory_space<vmem>>, %arg6: memref<256x128xf32, #tpu.memory_space<vmem>>, %arg7: memref<256x128xf32, #tpu.memory_space<vmem>>) attributes {dimension_semantics = [#tpu.dimension_semantics<parallel>, #tpu.dimension_semantics<parallel>, #tpu.dimension_semantics<arbitrary>], iteration_bounds = array<i64: 8, 1, 1>, scalar_prefetch = 0 : i64, scratch_operands = 1 : i64, tpu.core_type = #tpu.core_type<tc>, window_params = [{transform_indices = @transform_0, window_bounds = array<i64: 256, 384>}, {transform_indices = @transform_1, window_bounds = array<i64: 384, 128>}, {transform_indices = @transform_2, window_bounds = array<i64: 1, 128>}, {transform_indices = @transform_3, window_bounds = array<i64: 256, 128>}]} {
    %c0_i32 = arith.constant 0 : i32
    %0 = arith.cmpi eq, %arg2, %c0_i32 : i32
    %1 = arith.extui %0 : i1 to i32
    %c0_i32_0 = arith.constant 0 : i32
    %2 = arith.cmpi ne, %1, %c0_i32_0 : i32
    scf.if %2 {
      %cst_10 = arith.constant 0.000000e+00 : f32
      %12 = vector.broadcast %cst_10 : f32 to vector<256x128xf32>
      %c0_11 = arith.constant 0 : index
      %c0_12 = arith.constant 0 : index
      %13 = vector.load %arg7[%c0_11, %c0_12] : memref<256x128xf32, #tpu.memory_space<vmem>>, vector<256x128xf32>
      tpu.vector_store %arg7[%c0_11, %c0_12], %12 {strides = array<i32>} : memref<256x128xf32, #tpu.memory_space<vmem>>, vector<256x128xf32>,
    } else {
    }
    %c0 = arith.constant 0 : index
    %c0_1 = arith.constant 0 : index
    %3 = vector.load %arg7[%c0, %c0_1] : memref<256x128xf32, #tpu.memory_space<vmem>>, vector<256x128xf32>
    %c0_2 = arith.constant 0 : index
    %c0_3 = arith.constant 0 : index
    %4 = vector.load %arg3[%c0_2, %c0_3] : memref<256x384xbf16, #tpu.memory_space<vmem>>, vector<256x384xbf16>
    %c0_4 = arith.constant 0 : index
    %c0_5 = arith.constant 0 : index
    %5 = vector.load %arg4[%c0_4, %c0_5] : memref<384x128xbf16, #tpu.memory_space<vmem>>, vector<384x128xbf16>
    %cst = arith.constant dense<0.000000e+00> : vector<256x128xf32>
    %6 = tpu.matmul %4, %5, %cst {dimension_numbers = #tpu.dot_dimension_numbers<[1], [0], [0], [1], [0, 0, 1, 1], [], []>} : vector<256x384xbf16>, vector<384x128xbf16>, vector<256x128xf32> -> vector<256x128xf32>
    %7 = arith.addf %3, %6 : vector<256x128xf32>
    %c0_6 = arith.constant 0 : index
    %c0_7 = arith.constant 0 : index
    %8 = vector.load %arg7[%c0_6, %c0_7] : memref<256x128xf32, #tpu.memory_space<vmem>>, vector<256x128xf32>
    tpu.vector_store %arg7[%c0_6, %c0_7], %7 {strides = array<i32>} : memref<256x128xf32, #tpu.memory_space<vmem>>, vector<256x128xf32>,
    %c0_i32_8 = arith.constant 0 : i32
    %9 = arith.cmpi eq, %arg2, %c0_i32_8 : i32
    %10 = arith.extui %9 : i1 to i32
    %c0_i32_9 = arith.constant 0 : i32
    %11 = arith.cmpi ne, %10, %c0_i32_9 : i32
    scf.if %11 {
      %c0_10 = arith.constant 0 : index
      %c0_11 = arith.constant 0 : index
      %12 = vector.load %arg7[%c0_10, %c0_11] : memref<256x128xf32, #tpu.memory_space<vmem>>, vector<256x128xf32>
      %c0_12 = arith.constant 0 : index
      %c0_13 = arith.constant 0 : index
      %13 = vector.load %arg5[%c0_12, %c0_13] : memref<1x128xf32, #tpu.memory_space<vmem>>, vector<1x128xf32>
      %14 = vector.broadcast %13 : vector<1x128xf32> to vector<256x128xf32>
      %15 = arith.addf %12, %14 : vector<256x128xf32>
      %cst_14 = arith.constant 0.000000e+00 : f32
      %16 = vector.broadcast %cst_14 : f32 to vector<256x128xf32>
      %17 = arith.maximumf %15, %16 : vector<256x128xf32>
      %c0_15 = arith.constant 0 : index
      %c0_16 = arith.constant 0 : index
      %18 = vector.load %arg6[%c0_15, %c0_16] : memref<256x128xf32, #tpu.memory_space<vmem>>, vector<256x128xf32>
      tpu.vector_store %arg6[%c0_15, %c0_16], %17 {strides = array<i32>} : memref<256x128xf32, #tpu.memory_space<vmem>>, vector<256x128xf32>,
    } else {
    }
    return
  }
  func.func @transform_0(%arg0: i32, %arg1: i32, %arg2: i32) -> (i32, i32) {
    %c0_i32 = arith.constant 0 : i32
    return %arg0, %arg2 : i32, i32
  }
  func.func @transform_1(%arg0: i32, %arg1: i32, %arg2: i32) -> (i32, i32) {
    %c0_i32 = arith.constant 0 : i32
    return %arg2, %arg1 : i32, i32
  }
  func.func @transform_2(%arg0: i32, %arg1: i32, %arg2: i32) -> (i32, i32) {
    %c0_i32 = arith.constant 0 : i32
    %c0_i32_0 = arith.constant 0 : i32
    return %c0_i32, %arg1 : i32, i32
  }
  func.func @transform_3(%arg0: i32, %arg1: i32, %arg2: i32) -> (i32, i32) {
    %c0_i32 = arith.constant 0 : i32
    return %arg0, %arg1 : i32, i32
  }
}

module attributes {stable_mosaic.version = 11 : i64} {
  func.func @_gemm_kernel(%arg0: i32, %arg1: i32, %arg2: i32, %arg3: memref<256x384xbf16, #tpu.memory_space<vmem>>, %arg4: memref<384x128xbf16, #tpu.memory_space<vmem>>, %arg5: memref<1x128xf32, #tpu.memory_space<vmem>>, %arg6: memref<256x128xf32, #tpu.memory_space<vmem>>, %arg7: memref<256x128xf32, #tpu.memory_space<vmem>>, %arg8: memref<256x128xf32, #tpu.memory_space<vmem>>, %arg9: memref<256x128xf32, #tpu.memory_space<vmem>>, %arg10: memref<256x128xf32, #tpu.memory_space<vmem>>, %arg11: memref<256x128xf32, #tpu.memory_space<vmem>>, %arg12: memref<256x128xf32, #tpu.memory_space<vmem>>) attributes {dimension_semantics = [#tpu.dimension_semantics<parallel>, #tpu.dimension_semantics<parallel>, #tpu.dimension_semantics<arbitrary>], iteration_bounds = array<i64: 8, 1, 1>, scalar_prefetch = 0 : i64, scratch_operands = 1 : i64, tpu.core_type = #tpu.core_type<tc>, window_params = [{transform_indices = @transform_0, window_bounds = array<i64: 256, 384>}, {transform_indices = @transform_1, window_bounds = array<i64: 384, 128>}, {transform_indices = @transform_2, window_bounds = array<i64: 1, 128>}, {transform_indices = @transform_3, window_bounds = array<i64: 256, 128>}, {transform_indices = @transform_4, window_bounds = array<i64: 256, 128>}, {transform_indices = @transform_5, window_bounds = array<i64: 256, 128>}, {transform_indices = @transform_6, window_bounds = array<i64: 256, 128>}, {transform_indices = @transform_7, window_bounds = array<i64: 256, 128>}, {transform_indices = @transform_8, window_bounds = array<i64: 256, 128>}]} {
    %c0_i32 = arith.constant 0 : i32
    %0 = arith.cmpi eq, %arg2, %c0_i32 : i32
    %1 = arith.extui %0 : i1 to i32
    %c0_i32_0 = arith.constant 0 : i32
    %2 = arith.cmpi ne, %1, %c0_i32_0 : i32
    scf.if %2 {
      %cst_10 = arith.constant 0.000000e+00 : f32
      %12 = vector.broadcast %cst_10 : f32 to vector<256x128xf32>
      %c0_11 = arith.constant 0 : index
      %c0_12 = arith.constant 0 : index
      %13 = vector.load %arg12[%c0_11, %c0_12] : memref<256x128xf32, #tpu.memory_space<vmem>>, vector<256x128xf32>
      tpu.vector_store %arg12[%c0_11, %c0_12], %12 {strides = array<i32>} : memref<256x128xf32, #tpu.memory_space<vmem>>, vector<256x128xf32>,
    } else {
    }
    %c0 = arith.constant 0 : index
    %c0_1 = arith.constant 0 : index
    %3 = vector.load %arg12[%c0, %c0_1] : memref<256x128xf32, #tpu.memory_space<vmem>>, vector<256x128xf32>
    %c0_2 = arith.constant 0 : index
    %c0_3 = arith.constant 0 : index
    %4 = vector.load %arg3[%c0_2, %c0_3] : memref<256x384xbf16, #tpu.memory_space<vmem>>, vector<256x384xbf16>
    %c0_4 = arith.constant 0 : index
    %c0_5 = arith.constant 0 : index
    %5 = vector.load %arg4[%c0_4, %c0_5] : memref<384x128xbf16, #tpu.memory_space<vmem>>, vector<384x128xbf16>
    %cst = arith.constant dense<0.000000e+00> : vector<256x128xf32>
    %6 = tpu.matmul %4, %5, %cst {dimension_numbers = #tpu.dot_dimension_numbers<[1], [0], [0], [1], [0, 0, 1, 1], [], []>} : vector<256x384xbf16>, vector<384x128xbf16>, vector<256x128xf32> -> vector<256x128xf32>
    %7 = arith.addf %3, %6 : vector<256x128xf32>
    %c0_6 = arith.constant 0 : index
    %c0_7 = arith.constant 0 : index
    %8 = vector.load %arg12[%c0_6, %c0_7] : memref<256x128xf32, #tpu.memory_space<vmem>>, vector<256x128xf32>
    tpu.vector_store %arg12[%c0_6, %c0_7], %7 {strides = array<i32>} : memref<256x128xf32, #tpu.memory_space<vmem>>, vector<256x128xf32>,
    %c0_i32_8 = arith.constant 0 : i32
    %9 = arith.cmpi eq, %arg2, %c0_i32_8 : i32
    %10 = arith.extui %9 : i1 to i32
    %c0_i32_9 = arith.constant 0 : i32
    %11 = arith.cmpi ne, %10, %c0_i32_9 : i32
    scf.if %11 {
      %c0_10 = arith.constant 0 : index
      %c0_11 = arith.constant 0 : index
      %12 = vector.load %arg12[%c0_10, %c0_11] : memref<256x128xf32, #tpu.memory_space<vmem>>, vector<256x128xf32>
      %c0_12 = arith.constant 0 : index
      %c0_13 = arith.constant 0 : index
      %13 = vector.load %arg5[%c0_12, %c0_13] : memref<1x128xf32, #tpu.memory_space<vmem>>, vector<1x128xf32>
      %14 = vector.broadcast %13 : vector<1x128xf32> to vector<256x128xf32>
      %15 = arith.addf %12, %14 : vector<256x128xf32>
      %cst_14 = arith.constant 0.000000e+00 : f32
      %16 = vector.broadcast %cst_14 : f32 to vector<256x128xf32>
      %17 = arith.maximumf %15, %16 : vector<256x128xf32>
      %c0_15 = arith.constant 0 : index
      %c0_16 = arith.constant 0 : index
      %18 = vector.load %arg6[%c0_15, %c0_16] : memref<256x128xf32, #tpu.memory_space<vmem>>, vector<256x128xf32>
      %19 = arith.addf %17, %18 : vector<256x128xf32>
      %c0_17 = arith.constant 0 : index
      %c0_18 = arith.constant 0 : index
      %20 = vector.load %arg7[%c0_17, %c0_18] : memref<256x128xf32, #tpu.memory_space<vmem>>, vector<256x128xf32>
      %21 = arith.addf %19, %20 : vector<256x128xf32>
      %c0_19 = arith.constant 0 : index
      %c0_20 = arith.constant 0 : index
      %22 = vector.load %arg8[%c0_19, %c0_20] : memref<256x128xf32, #tpu.memory_space<vmem>>, vector<256x128xf32>
      %23 = arith.addf %21, %22 : vector<256x128xf32>
      %c0_21 = arith.constant 0 : index
      %c0_22 = arith.constant 0 : index
      %24 = vector.load %arg9[%c0_21, %c0_22] : memref<256x128xf32, #tpu.memory_space<vmem>>, vector<256x128xf32>
      %25 = arith.addf %23, %24 : vector<256x128xf32>
      %c0_23 = arith.constant 0 : index
      %c0_24 = arith.constant 0 : index
      %26 = vector.load %arg10[%c0_23, %c0_24] : memref<256x128xf32, #tpu.memory_space<vmem>>, vector<256x128xf32>
      %27 = arith.addf %25, %26 : vector<256x128xf32>
      %c0_25 = arith.constant 0 : index
      %c0_26 = arith.constant 0 : index
      %28 = vector.load %arg11[%c0_25, %c0_26] : memref<256x128xf32, #tpu.memory_space<vmem>>, vector<256x128xf32>
      tpu.vector_store %arg11[%c0_25, %c0_26], %27 {strides = array<i32>} : memref<256x128xf32, #tpu.memory_space<vmem>>, vector<256x128xf32>,
    } else {
    }
    return
  }
  func.func @transform_0(%arg0: i32, %arg1: i32, %arg2: i32) -> (i32, i32) {
    %c0_i32 = arith.constant 0 : i32
    return %arg0, %arg2 : i32, i32
  }
  func.func @transform_1(%arg0: i32, %arg1: i32, %arg2: i32) -> (i32, i32) {
    %c0_i32 = arith.constant 0 : i32
    return %arg2, %arg1 : i32, i32
  }
  func.func @transform_2(%arg0: i32, %arg1: i32, %arg2: i32) -> (i32, i32) {
    %c0_i32 = arith.constant 0 : i32
    %c0_i32_0 = arith.constant 0 : i32
    return %c0_i32, %arg1 : i32, i32
  }
  func.func @transform_3(%arg0: i32, %arg1: i32, %arg2: i32) -> (i32, i32) {
    %c0_i32 = arith.constant 0 : i32
    return %arg0, %arg1 : i32, i32
  }
  func.func @transform_4(%arg0: i32, %arg1: i32, %arg2: i32) -> (i32, i32) {
    %c0_i32 = arith.constant 0 : i32
    return %arg0, %arg1 : i32, i32
  }
  func.func @transform_5(%arg0: i32, %arg1: i32, %arg2: i32) -> (i32, i32) {
    %c0_i32 = arith.constant 0 : i32
    return %arg0, %arg1 : i32, i32
  }
  func.func @transform_6(%arg0: i32, %arg1: i32, %arg2: i32) -> (i32, i32) {
    %c0_i32 = arith.constant 0 : i32
    return %arg0, %arg1 : i32, i32
  }
  func.func @transform_7(%arg0: i32, %arg1: i32, %arg2: i32) -> (i32, i32) {
    %c0_i32 = arith.constant 0 : i32
    return %arg0, %arg1 : i32, i32
  }
  func.func @transform_8(%arg0: i32, %arg1: i32, %arg2: i32) -> (i32, i32) {
    %c0_i32 = arith.constant 0 : i32
    return %arg0, %arg1 : i32, i32
  }
}

</mosaic_0001>

<llo_original>
// kernel: dblock_more_dilate_forward.5
$region0: #{dblock_more_dilate_forward.5}
  #allocation0 [shape = 'u32[]', space=smem, size = 0x4, offset = 0x4, fixed_abs, tag = 'smem constant byte address 0x4 - core index']
  #allocation1 [shape = 'u32[144,128]{1,0:T(1,128)}', space=vmem, size = 0x12000, scoped, tag = 'internal scratch']
  #allocation2 [shape = 'f32[256,128]{1,0:T(8,128)}', space=vmem, size = 0x20000, scoped, tag = 'scratch operand']
  %s0 = inlined_call_operand.vmem [shape: bf16[2048,384], index: 0, kind: input, shape index: {}]
  %s1 = inlined_call_operand.vmem [shape: bf16[384,128], index: 1, kind: input, shape index: {}]
  %s2 = inlined_call_operand.vmem [shape: f32[1,128], index: 2, kind: input, shape index: {}]
  %s3 = inlined_call_operand.vmem [shape: f32[2048,128], index: 3, kind: output, shape index: {}]
  %s4 = sld [smem:[#allocation0]]
  $region53: #{dblock_more_dilate_forward.5} parent=0
    _
  %s6 = ssub.s32 1, %s4
  %s7 = scalar_select 0, %s6, %s4
  loop: start=0, step=1, limit=10
  $region2: #{dblock_more_dilate_forward.5} parent=0 // loop_pre_header
    _
  $region3: #{dblock_more_dilate_forward.5} parent=0 // loop_header
    %s9 = sphi 0, %s13
    %p10 = scmp.ge.s32.totalorder %s9, 10
    %s16 = sphi 0, %s35
    %s17 = sphi 0, %s31
    %s18 = sphi 0, %s27
    %s19 = sphi 0, %s16
    %s20 = sphi 0, %s17
    %s21 = sphi 0, %s18
    %s22 = sphi 0, %s19
    %s23 = sphi 0, %s20
    %s24 = sphi 0, %s21
    %s40 = sphi 0, %s42
    %s43 = sphi 0, %s40
    %s44 = sphi 0, %s43
    %s60 = sphi 0, %s44
    %s68 = sphi 0, %s70
    %s71 = sphi 0, %s68
    %s72 = sphi 0, %s71
    %s88 = sphi 0, %s72
    %s94 = sphi 0, %s96
    %s97 = sphi 0, %s94
    %s98 = sphi 0, %s97
    %s114 = sphi 0, %s98
    %s122 = sphi 0, %s124
    %s125 = sphi 0, %s122
    %s126 = sphi 0, %s125
    %s142 = sphi 0, %s126
  $region4: #{dblock_more_dilate_forward.5} parent=0 // loop_header_branch
    %12 = sbr.rel (%p10) target = $region8
  $region5: #{dblock_more_dilate_forward.5} parent=0 // loop_body
    %s14 = ssub.s32 %s9, 1
    %s15 = ssub.s32 %s9, 2
    %s25 = sadd.s32 1, %s18
    %p26 = scmp.ge.s32.totalorder %s25, 1
    %s27 = scalar_select %p26, 0, %s25
    %s28 = sadd.s32 1, %s17
    %s29 = scalar_select %p26, %s28, %s17
    %p30 = scmp.ge.s32.totalorder %s29, 1
    %s31 = scalar_select %p30, 0, %s29
    %s32 = sadd.s32 1, %s16
    %s33 = scalar_select %p30, %s32, %s16
    %p34 = scmp.ge.s32.totalorder %s33, 8
    %s35 = scalar_select %p34, 0, %s33
    %s36 = ssub.s32 %s16, %s35
    %s37 = ssub.s32 %s18, %s27
    %s38 = sor.u32 %s36, %s37
    %p39 = scmp.eq.s32.totalorder %s38, 0
    %s41 = sadd.s32 %s40, 1
    %s42 = scalar_select %p39, %s40, %s41
    %p45 = pneg %p39
    %p46 = scmp.eq.s32.totalorder %s9, 7
    %p47 = por %p45, %p46
    %p48 = scmp.ne.s32.totalorder %s40, %s43
    %p49 = scmp.eq.s32.totalorder %s9, 0
    %p50 = por %p48, %p49
    %p51 = scmp.ne.s32.totalorder %s40, %s43
    %p52 = scmp.eq.s32.totalorder %s14, 7
    %p53 = por %p51, %p52
    %p54 = scmp.ne.s32.totalorder %s43, %s44
    %p55 = scmp.eq.s32.totalorder %s14, 0
    %p56 = por %p54, %p55
    %p57 = scmp.ne.s32.totalorder %s43, %s44
    %p58 = scmp.eq.s32.totalorder %s15, 7
    %p59 = por %p57, %p58
    %p61 = scmp.ne.s32.totalorder %s44, %s60
    %p62 = scmp.eq.s32.totalorder %s15, 0
    %p63 = por %p61, %p62
    %s64 = ssub.s32 %s18, %s27
    %s65 = ssub.s32 %s17, %s31
    %s66 = sor.u32 %s64, %s65
    %p67 = scmp.eq.s32.totalorder %s66, 0
    %s69 = sadd.s32 %s68, 1
    %s70 = scalar_select %p67, %s68, %s69
    %p73 = pneg %p67
    %p74 = scmp.eq.s32.totalorder %s9, 7
    %p75 = por %p73, %p74
    %p76 = scmp.ne.s32.totalorder %s68, %s71
    %p77 = scmp.eq.s32.totalorder %s9, 0
    %p78 = por %p76, %p77
    %p79 = scmp.ne.s32.totalorder %s68, %s71
    %p80 = scmp.eq.s32.totalorder %s14, 7
    %p81 = por %p79, %p80
    %p82 = scmp.ne.s32.totalorder %s71, %s72
    %p83 = scmp.eq.s32.totalorder %s14, 0
    %p84 = por %p82, %p83
    %p85 = scmp.ne.s32.totalorder %s71, %s72
    %p86 = scmp.eq.s32.totalorder %s15, 7
    %p87 = por %p85, %p86
    %p89 = scmp.ne.s32.totalorder %s72, %s88
    %p90 = scmp.eq.s32.totalorder %s15, 0
    %p91 = por %p89, %p90
    %s92 = ssub.s32 %s17, %s31
    %p93 = scmp.eq.s32.totalorder %s92, 0
    %s95 = sadd.s32 %s94, 1
    %s96 = scalar_select %p93, %s94, %s95
    %p99 = pneg %p93
    %p100 = scmp.eq.s32.totalorder %s9, 7
    %p101 = por %p99, %p100
    %p102 = scmp.ne.s32.totalorder %s94, %s97
    %p103 = scmp.eq.s32.totalorder %s9, 0
    %p104 = por %p102, %p103
    %p105 = scmp.ne.s32.totalorder %s94, %s97
    %p106 = scmp.eq.s32.totalorder %s14, 7
    %p107 = por %p105, %p106
    %p108 = scmp.ne.s32.totalorder %s97, %s98
    %p109 = scmp.eq.s32.totalorder %s14, 0
    %p110 = por %p108, %p109
    %p111 = scmp.ne.s32.totalorder %s97, %s98
    %p112 = scmp.eq.s32.totalorder %s15, 7
    %p113 = por %p111, %p112
    %p115 = scmp.ne.s32.totalorder %s98, %s114
    %p116 = scmp.eq.s32.totalorder %s15, 0
    %p117 = por %p115, %p116
    %s118 = ssub.s32 %s16, %s35
    %s119 = ssub.s32 %s17, %s31
    %s120 = sor.u32 %s118, %s119
    %p121 = scmp.eq.s32.totalorder %s120, 0
    %s123 = sadd.s32 %s122, 1
    %s124 = scalar_select %p121, %s122, %s123
    %p127 = pneg %p121
    %p128 = scmp.eq.s32.totalorder %s9, 7
    %p129 = por %p127, %p128
    %p130 = scmp.ne.s32.totalorder %s122, %s125
    %p131 = scmp.eq.s32.totalorder %s9, 0
    %p132 = por %p130, %p131
    %p133 = scmp.ne.s32.totalorder %s122, %s125
    %p134 = scmp.eq.s32.totalorder %s14, 7
    %p135 = por %p133, %p134
    %p136 = scmp.ne.s32.totalorder %s125, %s126
    %p137 = scmp.eq.s32.totalorder %s14, 0
    %p138 = por %p136, %p137
    %p139 = scmp.ne.s32.totalorder %s125, %s126
    %p140 = scmp.eq.s32.totalorder %s15, 7
    %p141 = por %p139, %p140
    %p143 = scmp.ne.s32.totalorder %s126, %s142
    %p144 = scmp.eq.s32.totalorder %s15, 0
    %p145 = por %p143, %p144
    %p146 = scmp.le.s32.totalorder 1, %s9
    %p147 = scmp.lt.s32.totalorder %s9, 9
    %p148 = pnand %p146, %p147
    %p149 = pneg %p148
    // Predicated region
    $region9: #{dblock_more_dilate_forward.5} parent=5 // pred_check
      _
    $region10: #{dblock_more_dilate_forward.5} parent=5 // pred_check_branch
      %151 = sbr.rel (%p148) target = $region12
    $region11: #{dblock_more_dilate_forward.5} parent=5 // pred_region
      %s152 = ssub.s32 %s9, 1
      // Predicated region
      $region13: #{dblock_more_dilate_forward.5} parent=11 // pred_check
        %p153 = pneg %p84
      $region14: #{dblock_more_dilate_forward.5} parent=11 // pred_check_branch
        %155 = sbr.rel (%p153) target = $region16
      $region15: #{dblock_more_dilate_forward.5} parent=11 // pred_region
        %s156 = smul.u32 48, %s21
        %p157 = scmp.lt.s32.totalorder %s156, 47
        %s158 = scalar_select %p157, %s156, 47
        %p159 = scmp.lt.s32.totalorder %s20, 0
        %s160 = scalar_select %p159, %s20, 0
        %s161 = sadd.s32 %s160, %s158
        %s162 = smul.addr %s161, 4
        %s163 = scalar_lea.vmem %s1, %s162
        %s164 = smul.u32 48, %s21
      $region16: #{dblock_more_dilate_forward.5} parent=11 // pred_fallthru
        _
      // Predicated region
      $region17: #{dblock_more_dilate_forward.5} parent=11 // pred_check
        %p165 = pneg %p110
      $region18: #{dblock_more_dilate_forward.5} parent=11 // pred_check_branch
        %167 = sbr.rel (%p165) target = $region20
      $region19: #{dblock_more_dilate_forward.5} parent=11 // pred_region
        %p168 = scmp.lt.s32.totalorder %s20, 0
        %s169 = scalar_select %p168, %s20, 0
        %s170 = scalar_lea.vmem %s2, %s169
      $region20: #{dblock_more_dilate_forward.5} parent=11 // pred_fallthru
        _
    $region12: #{dblock_more_dilate_forward.5} parent=5 // pred_fallthru
      _
    %p171 = scmp.lt.s32.totalorder %s9, 8
    // Predicated region
    $region21: #{dblock_more_dilate_forward.5} parent=5 // pred_check
      %p172 = pneg %p171
    $region22: #{dblock_more_dilate_forward.5} parent=5 // pred_check_branch
      %174 = sbr.rel (%p172) target = $region24
    $region23: #{dblock_more_dilate_forward.5} parent=5 // pred_region
      // Predicated region
      $region25: #{dblock_more_dilate_forward.5} parent=23 // pred_check
        %p175 = pneg %p50
      $region26: #{dblock_more_dilate_forward.5} parent=23 // pred_check_branch
        %177 = sbr.rel (%p175) target = $region28
      $region27: #{dblock_more_dilate_forward.5} parent=23 // pred_region
        %s178 = smul.u32 32, %s16
        %s179 = smul.u32 3, %s18
        %p180 = scmp.lt.s32.totalorder %s178, 255
        %s181 = scalar_select %p180, %s178, 255
        %p182 = scmp.lt.s32.totalorder %s179, 2
        %s183 = scalar_select %p182, %s179, 2
        %s184 = smul.addr %s181, 3
        %s185 = sadd.s32 %s183, %s184
        %s186 = smul.addr %s185, 4
        %s187 = scalar_lea.vmem %s0, %s186
        %s188 = smul.u32 32, %s16
        %s189 = smul.u32 3, %s18
      $region28: #{dblock_more_dilate_forward.5} parent=23 // pred_fallthru
        _
    $region24: #{dblock_more_dilate_forward.5} parent=5 // pred_fallthru
      _
    %p190 = scmp.le.s32.totalorder 1, %s9
    %p191 = scmp.lt.s32.totalorder %s9, 9
    %p192 = pnand %p190, %p191
    %p193 = pneg %p192
    // Predicated region
    $region29: #{dblock_more_dilate_forward.5} parent=5 // pred_check
      _
    $region30: #{dblock_more_dilate_forward.5} parent=5 // pred_check_branch
      %195 = sbr.rel (%p192) target = $region32
    $region31: #{dblock_more_dilate_forward.5} parent=5 // pred_region
      %s196 = ssub.s32 %s9, 1
      %s197 = smul.u32 32, %s19
      %s198 = smul.u32 3, %s21
      %p199 = scmp.lt.s32.totalorder %s197, 255
      %s200 = scalar_select %p199, %s197, 255
      %p201 = scmp.lt.s32.totalorder %s198, 2
      %s202 = scalar_select %p201, %s198, 2
      %s203 = smul.addr %s200, 3
      %s204 = sadd.s32 %s202, %s203
      %s205 = smul.addr %s204, 4
      %s206 = scalar_lea.vmem %s0, %s205
      %p207 = pneg %p56
      %p208 = pneg %p53
      %s209 = smul.u32 48, %s21
      %p210 = scmp.lt.s32.totalorder %s209, 47
      %s211 = scalar_select %p210, %s209, 47
      %p212 = scmp.lt.s32.totalorder %s20, 0
      %s213 = scalar_select %p212, %s20, 0
      %s214 = sadd.s32 %s213, %s211
      %s215 = smul.addr %s214, 4
      %s216 = scalar_lea.vmem %s1, %s215
      %p217 = pneg %p84
      %p218 = pneg %p81
      %p219 = scmp.lt.s32.totalorder %s20, 0
      %s220 = scalar_select %p219, %s20, 0
      %s221 = scalar_lea.vmem %s2, %s220
      %p222 = pneg %p110
      %p223 = pneg %p107
      %p224 = pneg %p138
      %p225 = pneg %p135
      %s226 = smul.u32 32, %s19
      %p227 = scmp.lt.s32.totalorder %s226, 255
      %s228 = scalar_select %p227, %s226, 255
      %p229 = scmp.lt.s32.totalorder %s20, 0
      %s230 = scalar_select %p229, %s20, 0
      %s231 = sadd.s32 %s230, %s228
      %s232 = smul.addr %s231, 8
      %s233 = scalar_lea.vmem %s3, %s232
      %s234 = smul.u32 32, %s19
      %s235 = smul.u32 3, %s21
      %p236 = scmp.lt.s32.totalorder %s234, 255
      %s237 = scalar_select %p236, %s234, 255
      %p238 = scmp.lt.s32.totalorder %s235, 2
      %s239 = scalar_select %p238, %s235, 2
      %s240 = smul.addr %s237, 3
      %s241 = sadd.s32 %s239, %s240
      %s242 = smul.addr %s241, 4
      %s243 = scalar_lea.vmem %s0, %s242
      %s244 = smul.u32 32, %s19
      %s245 = smul.u32 3, %s21
      %s246 = smul.u32 48, %s21
      %p247 = scmp.lt.s32.totalorder %s246, 47
      %s248 = scalar_select %p247, %s246, 47
      %p249 = scmp.lt.s32.totalorder %s20, 0
      %s250 = scalar_select %p249, %s20, 0
      %s251 = sadd.s32 %s250, %s248
      %s252 = smul.addr %s251, 4
      %s253 = scalar_lea.vmem %s1, %s252
      %s254 = smul.u32 48, %s21
      %p255 = scmp.lt.s32.totalorder %s20, 0
      %s256 = scalar_select %p255, %s20, 0
      %s257 = scalar_lea.vmem %s2, %s256
      %s258 = smul.u32 32, %s19
      %p259 = scmp.lt.s32.totalorder %s258, 255
      %s260 = scalar_select %p259, %s258, 255
      %p261 = scmp.lt.s32.totalorder %s20, 0
      %s262 = scalar_select %p261, %s20, 0
      %s263 = sadd.s32 %s262, %s260
      %s264 = smul.addr %s263, 8
      %s265 = scalar_lea.vmem %s3, %s264
      %s266 = smul.u32 32, %s19
      %p268 = scmp.eq.s32.totalorder %s21, 0
      // Predicated region
      $region33: #{dblock_more_dilate_forward.5} parent=31 // pred_check
        %p269 = pneg %p268
      $region34: #{dblock_more_dilate_forward.5} parent=31 // pred_check_branch
        %271 = sbr.rel (%p269) target = $region36
      $region35: #{dblock_more_dilate_forward.5} parent=31 // pred_region
        %272 = vst [vmem:[#allocation2] sm:$0xff] 0.0
        %273 = vst [vmem:[#allocation2 + $0x8] sm:$0xff] 0.0
        %274 = vst [vmem:[#allocation2 + $0x10] sm:$0xff] 0.0
        %275 = vst [vmem:[#allocation2 + $0x18] sm:$0xff] 0.0
        %276 = vst [vmem:[#allocation2 + $0x20] sm:$0xff] 0.0
        %277 = vst [vmem:[#allocation2 + $0x28] sm:$0xff] 0.0
        %278 = vst [vmem:[#allocation2 + $0x30] sm:$0xff] 0.0
        %279 = vst [vmem:[#allocation2 + $0x38] sm:$0xff] 0.0
        %280 = vst [vmem:[#allocation2 + $0x40] sm:$0xff] 0.0
        %281 = vst [vmem:[#allocation2 + $0x48] sm:$0xff] 0.0
        %282 = vst [vmem:[#allocation2 + $0x50] sm:$0xff] 0.0
        %283 = vst [vmem:[#allocation2 + $0x58] sm:$0xff] 0.0
        %284 = vst [vmem:[#allocation2 + $0x60] sm:$0xff] 0.0
        %285 = vst [vmem:[#allocation2 + $0x68] sm:$0xff] 0.0
        %286 = vst [vmem:[#allocation2 + $0x70] sm:$0xff] 0.0
        %287 = vst [vmem:[#allocation2 + $0x78] sm:$0xff] 0.0
        %288 = vst [vmem:[#allocation2 + $0x80] sm:$0xff] 0.0
        %289 = vst [vmem:[#allocation2 + $0x88] sm:$0xff] 0.0
        %290 = vst [vmem:[#allocation2 + $0x90] sm:$0xff] 0.0
        %291 = vst [vmem:[#allocation2 + $0x98] sm:$0xff] 0.0
        %292 = vst [vmem:[#allocation2 + $0xa0] sm:$0xff] 0.0
        %293 = vst [vmem:[#allocation2 + $0xa8] sm:$0xff] 0.0
        %294 = vst [vmem:[#allocation2 + $0xb0] sm:$0xff] 0.0
        %295 = vst [vmem:[#allocation2 + $0xb8] sm:$0xff] 0.0
        %296 = vst [vmem:[#allocation2 + $0xc0] sm:$0xff] 0.0
        %297 = vst [vmem:[#allocation2 + $0xc8] sm:$0xff] 0.0
        %298 = vst [vmem:[#allocation2 + $0xd0] sm:$0xff] 0.0
        %299 = vst [vmem:[#allocation2 + $0xd8] sm:$0xff] 0.0
        %300 = vst [vmem:[#allocation2 + $0xe0] sm:$0xff] 0.0
        %301 = vst [vmem:[#allocation2 + $0xe8] sm:$0xff] 0.0
        %302 = vst [vmem:[#allocation2 + $0xf0] sm:$0xff] 0.0
        %303 = vst [vmem:[#allocation2 + $0xf8] sm:$0xff] 0.0
      $region36: #{dblock_more_dilate_forward.5} parent=31 // pred_fallthru
        _
      %v304 = vld [vmem:[#allocation2] sm:$0xff]
      %v305 = vld [vmem:[#allocation2 + $0x8] sm:$0xff]
      %v306 = vld [vmem:[#allocation2 + $0x10] sm:$0xff]
      %v307 = vld [vmem:[#allocation2 + $0x18] sm:$0xff]
      %v308 = vld [vmem:[#allocation2 + $0x20] sm:$0xff]
      %v309 = vld [vmem:[#allocation2 + $0x28] sm:$0xff]
      %v310 = vld [vmem:[#allocation2 + $0x30] sm:$0xff]
      %v311 = vld [vmem:[#allocation2 + $0x38] sm:$0xff]
      %v312 = vld [vmem:[#allocation2 + $0x40] sm:$0xff]
      %v313 = vld [vmem:[#allocation2 + $0x48] sm:$0xff]
      %v314 = vld [vmem:[#allocation2 + $0x50] sm:$0xff]
      %v315 = vld [vmem:[#allocation2 + $0x58] sm:$0xff]
      %v316 = vld [vmem:[#allocation2 + $0x60] sm:$0xff]
      %v317 = vld [vmem:[#allocation2 + $0x68] sm:$0xff]
      %v318 = vld [vmem:[#allocation2 + $0x70] sm:$0xff]
      %v319 = vld [vmem:[#allocation2 + $0x78] sm:$0xff]
      %v320 = vld [vmem:[#allocation2 + $0x80] sm:$0xff]
      %v321 = vld [vmem:[#allocation2 + $0x88] sm:$0xff]
      %v322 = vld [vmem:[#allocation2 + $0x90] sm:$0xff]
      %v323 = vld [vmem:[#allocation2 + $0x98] sm:$0xff]
      %v324 = vld [vmem:[#allocation2 + $0xa0] sm:$0xff]
      %v325 = vld [vmem:[#allocation2 + $0xa8] sm:$0xff]
      %v326 = vld [vmem:[#allocation2 + $0xb0] sm:$0xff]
      %v327 = vld [vmem:[#allocation2 + $0xb8] sm:$0xff]
      %v328 = vld [vmem:[#allocation2 + $0xc0] sm:$0xff]
      %v329 = vld [vmem:[#allocation2 + $0xc8] sm:$0xff]
      %v330 = vld [vmem:[#allocation2 + $0xd0] sm:$0xff]
      %v331 = vld [vmem:[#allocation2 + $0xd8] sm:$0xff]
      %v332 = vld [vmem:[#allocation2 + $0xe0] sm:$0xff]
      %v333 = vld [vmem:[#allocation2 + $0xe8] sm:$0xff]
      %v334 = vld [vmem:[#allocation2 + $0xf0] sm:$0xff]
      %v335 = vld [vmem:[#allocation2 + $0xf8] sm:$0xff]
      %v336 = vld [vmem:[%s243] sm:$0xff]
      %v337 = vld [vmem:[%s243 + $0x8] sm:$0xf]
      %v338 = vld [vmem:[%s243 + $0xc] sm:$0xff]
      %v339 = vld [vmem:[%s243 + $0x14] sm:$0xf]
      %v340 = vld [vmem:[%s243 + $0x18] sm:$0xff]
      %v341 = vld [vmem:[%s243 + $0x20] sm:$0xf]
      %v342 = vld [vmem:[%s243 + $0x24] sm:$0xff]
      %v343 = vld [vmem:[%s243 + $0x2c] sm:$0xf]
      %v344 = vld [vmem:[%s243 + $0x30] sm:$0xff]
      %v345 = vld [vmem:[%s243 + $0x38] sm:$0xf]
      %v346 = vld [vmem:[%s243 + $0x3c] sm:$0xff]
      %v347 = vld [vmem:[%s243 + $0x44] sm:$0xf]
      %v348 = vld [vmem:[%s243 + $0x48] sm:$0xff]
      %v349 = vld [vmem:[%s243 + $0x50] sm:$0xf]
      %v350 = vld [vmem:[%s243 + $0x54] sm:$0xff]
      %v351 = vld [vmem:[%s243 + $0x5c] sm:$0xf]
      %v352 = vld [vmem:[%s243 + $0x60] sm:$0xff]
      %v353 = vld [vmem:[%s243 + $0x68] sm:$0xf]
      %v354 = vld [vmem:[%s243 + $0x6c] sm:$0xff]
      %v355 = vld [vmem:[%s243 + $0x74] sm:$0xf]
      %v356 = vld [vmem:[%s243 + $0x78] sm:$0xff]
      %v357 = vld [vmem:[%s243 + $0x80] sm:$0xf]
      %v358 = vld [vmem:[%s243 + $0x84] sm:$0xff]
      %v359 = vld [vmem:[%s243 + $0x8c] sm:$0xf]
      %v360 = vld [vmem:[%s243 + $0x90] sm:$0xff]
      %v361 = vld [vmem:[%s243 + $0x98] sm:$0xf]
      %v362 = vld [vmem:[%s243 + $0x9c] sm:$0xff]
      %v363 = vld [vmem:[%s243 + $0xa4] sm:$0xf]
      %v364 = vld [vmem:[%s243 + $0xa8] sm:$0xff]
      %v365 = vld [vmem:[%s243 + $0xb0] sm:$0xf]
      %v366 = vld [vmem:[%s243 + $0xb4] sm:$0xff]
      %v367 = vld [vmem:[%s243 + $0xbc] sm:$0xf]
      %v368 = vld [vmem:[%s243 + $0xc0] sm:$0xff]
      %v369 = vld [vmem:[%s243 + $0xc8] sm:$0xf]
      %v370 = vld [vmem:[%s243 + $0xcc] sm:$0xff]
      %v371 = vld [vmem:[%s243 + $0xd4] sm:$0xf]
      %v372 = vld [vmem:[%s243 + $0xd8] sm:$0xff]
      %v373 = vld [vmem:[%s243 + $0xe0] sm:$0xf]
      %v374 = vld [vmem:[%s243 + $0xe4] sm:$0xff]
      %v375 = vld [vmem:[%s243 + $0xec] sm:$0xf]
      %v376 = vld [vmem:[%s243 + $0xf0] sm:$0xff]
      %v377 = vld [vmem:[%s243 + $0xf8] sm:$0xf]
      %v378 = vld [vmem:[%s243 + $0xfc] sm:$0xff]
      %v379 = vld [vmem:[%s243 + $0x104] sm:$0xf]
      %v380 = vld [vmem:[%s243 + $0x108] sm:$0xff]
      %v381 = vld [vmem:[%s243 + $0x110] sm:$0xf]
      %v382 = vld [vmem:[%s243 + $0x114] sm:$0xff]
      %v383 = vld [vmem:[%s243 + $0x11c] sm:$0xf]
      %v384 = vld [vmem:[%s243 + $0x120] sm:$0xff]
      %v385 = vld [vmem:[%s243 + $0x128] sm:$0xf]
      %v386 = vld [vmem:[%s243 + $0x12c] sm:$0xff]
      %v387 = vld [vmem:[%s243 + $0x134] sm:$0xf]
      %v388 = vld [vmem:[%s243 + $0x138] sm:$0xff]
      %v389 = vld [vmem:[%s243 + $0x140] sm:$0xf]
      %v390 = vld [vmem:[%s243 + $0x144] sm:$0xff]
      %v391 = vld [vmem:[%s243 + $0x14c] sm:$0xf]
      %v392 = vld [vmem:[%s243 + $0x150] sm:$0xff]
      %v393 = vld [vmem:[%s243 + $0x158] sm:$0xf]
      %v394 = vld [vmem:[%s243 + $0x15c] sm:$0xff]
      %v395 = vld [vmem:[%s243 + $0x164] sm:$0xf]
      %v396 = vld [vmem:[%s243 + $0x168] sm:$0xff]
      %v397 = vld [vmem:[%s243 + $0x170] sm:$0xf]
      %v398 = vld [vmem:[%s243 + $0x174] sm:$0xff]
      %v399 = vld [vmem:[%s243 + $0x17c] sm:$0xf]
      %v400 = vld [vmem:[%s253] sm:$0xf]
      %v401 = vld [vmem:[%s253 + $0x4] sm:$0xf]
      %v402 = vld [vmem:[%s253 + $0x8] sm:$0xf]
      %v403 = vld [vmem:[%s253 + $0xc] sm:$0xf]
      %v404 = vld [vmem:[%s253 + $0x10] sm:$0xf]
      %v405 = vld [vmem:[%s253 + $0x14] sm:$0xf]
      %v406 = vld [vmem:[%s253 + $0x18] sm:$0xf]
      %v407 = vld [vmem:[%s253 + $0x1c] sm:$0xf]
      %v408 = vld [vmem:[%s253 + $0x20] sm:$0xf]
      %v409 = vld [vmem:[%s253 + $0x24] sm:$0xf]
      %v410 = vld [vmem:[%s253 + $0x28] sm:$0xf]
      %v411 = vld [vmem:[%s253 + $0x2c] sm:$0xf]
      %v412 = vld [vmem:[%s253 + $0x30] sm:$0xf]
      %v413 = vld [vmem:[%s253 + $0x34] sm:$0xf]
      %v414 = vld [vmem:[%s253 + $0x38] sm:$0xf]
      %v415 = vld [vmem:[%s253 + $0x3c] sm:$0xf]
      %v416 = vld [vmem:[%s253 + $0x40] sm:$0xf]
      %v417 = vld [vmem:[%s253 + $0x44] sm:$0xf]
      %v418 = vld [vmem:[%s253 + $0x48] sm:$0xf]
      %v419 = vld [vmem:[%s253 + $0x4c] sm:$0xf]
      %v420 = vld [vmem:[%s253 + $0x50] sm:$0xf]
      %v421 = vld [vmem:[%s253 + $0x54] sm:$0xf]
      %v422 = vld [vmem:[%s253 + $0x58] sm:$0xf]
      %v423 = vld [vmem:[%s253 + $0x5c] sm:$0xf]
      %v424 = vld [vmem:[%s253 + $0x60] sm:$0xf]
      %v425 = vld [vmem:[%s253 + $0x64] sm:$0xf]
      %v426 = vld [vmem:[%s253 + $0x68] sm:$0xf]
      %v427 = vld [vmem:[%s253 + $0x6c] sm:$0xf]
      %v428 = vld [vmem:[%s253 + $0x70] sm:$0xf]
      %v429 = vld [vmem:[%s253 + $0x74] sm:$0xf]
      %v430 = vld [vmem:[%s253 + $0x78] sm:$0xf]
      %v431 = vld [vmem:[%s253 + $0x7c] sm:$0xf]
      %v432 = vld [vmem:[%s253 + $0x80] sm:$0xf]
      %v433 = vld [vmem:[%s253 + $0x84] sm:$0xf]
      %v434 = vld [vmem:[%s253 + $0x88] sm:$0xf]
      %v435 = vld [vmem:[%s253 + $0x8c] sm:$0xf]
      %v436 = vld [vmem:[%s253 + $0x90] sm:$0xf]
      %v437 = vld [vmem:[%s253 + $0x94] sm:$0xf]
      %v438 = vld [vmem:[%s253 + $0x98] sm:$0xf]
      %v439 = vld [vmem:[%s253 + $0x9c] sm:$0xf]
      %v440 = vld [vmem:[%s253 + $0xa0] sm:$0xf]
      %v441 = vld [vmem:[%s253 + $0xa4] sm:$0xf]
      %v442 = vld [vmem:[%s253 + $0xa8] sm:$0xf]
      %v443 = vld [vmem:[%s253 + $0xac] sm:$0xf]
      %v444 = vld [vmem:[%s253 + $0xb0] sm:$0xf]
      %v445 = vld [vmem:[%s253 + $0xb4] sm:$0xf]
      %v446 = vld [vmem:[%s253 + $0xb8] sm:$0xf]
      %v447 = vld [vmem:[%s253 + $0xbc] sm:$0xf]
      %v512 = vunpack.c.l.b16 %v336
      %v513 = vunpack.c.h.b16 %v336
      %v514 = vunpack.c.l.b16 %v337
      %v515 = vunpack.c.l.b16 %v338
      %v516 = vunpack.c.h.b16 %v338
      %v517 = vunpack.c.l.b16 %v339
      %v518 = vunpack.c.l.b16 %v340
      %v519 = vunpack.c.h.b16 %v340
      %v520 = vunpack.c.l.b16 %v341
      %v521 = vunpack.c.l.b16 %v342
      %v522 = vunpack.c.h.b16 %v342
      %v523 = vunpack.c.l.b16 %v343
      %v524 = vunpack.c.l.b16 %v344
      %v525 = vunpack.c.h.b16 %v344
      %v526 = vunpack.c.l.b16 %v345
      %v527 = vunpack.c.l.b16 %v346
      %v528 = vunpack.c.h.b16 %v346
      %v529 = vunpack.c.l.b16 %v347
      %v530 = vunpack.c.l.b16 %v348
      %v531 = vunpack.c.h.b16 %v348
      %v532 = vunpack.c.l.b16 %v349
      %v533 = vunpack.c.l.b16 %v350
      %v534 = vunpack.c.h.b16 %v350
      %v535 = vunpack.c.l.b16 %v351
      %v536 = vunpack.c.l.b16 %v352
      %v537 = vunpack.c.h.b16 %v352
      %v538 = vunpack.c.l.b16 %v353
      %v539 = vunpack.c.l.b16 %v354
      %v540 = vunpack.c.h.b16 %v354
      %v541 = vunpack.c.l.b16 %v355
      %v542 = vunpack.c.l.b16 %v356
      %v543 = vunpack.c.h.b16 %v356
      %v544 = vunpack.c.l.b16 %v357
      %v545 = vunpack.c.l.b16 %v358
      %v546 = vunpack.c.h.b16 %v358
      %v547 = vunpack.c.l.b16 %v359
      %v548 = vunpack.c.l.b16 %v360
      %v549 = vunpack.c.h.b16 %v360
      %v550 = vunpack.c.l.b16 %v361
      %v551 = vunpack.c.l.b16 %v362
      %v552 = vunpack.c.h.b16 %v362
      %v553 = vunpack.c.l.b16 %v363
      %v554 = vunpack.c.l.b16 %v364
      %v555 = vunpack.c.h.b16 %v364
      %v556 = vunpack.c.l.b16 %v365
      %v557 = vunpack.c.l.b16 %v366
      %v558 = vunpack.c.h.b16 %v366
      %v559 = vunpack.c.l.b16 %v367
      %v560 = vunpack.c.l.b16 %v368
      %v561 = vunpack.c.h.b16 %v368
      %v562 = vunpack.c.l.b16 %v369
      %v563 = vunpack.c.l.b16 %v370
      %v564 = vunpack.c.h.b16 %v370
      %v565 = vunpack.c.l.b16 %v371
      %v566 = vunpack.c.l.b16 %v372
      %v567 = vunpack.c.h.b16 %v372
      %v568 = vunpack.c.l.b16 %v373
      %v569 = vunpack.c.l.b16 %v374
      %v570 = vunpack.c.h.b16 %v374
      %v571 = vunpack.c.l.b16 %v375
      %v572 = vunpack.c.l.b16 %v376
      %v573 = vunpack.c.h.b16 %v376
      %v574 = vunpack.c.l.b16 %v377
      %v575 = vunpack.c.l.b16 %v378
      %v576 = vunpack.c.h.b16 %v378
      %v577 = vunpack.c.l.b16 %v379
      %v578 = vunpack.c.l.b16 %v380
      %v579 = vunpack.c.h.b16 %v380
      %v580 = vunpack.c.l.b16 %v381
      %v581 = vunpack.c.l.b16 %v382
      %v582 = vunpack.c.h.b16 %v382
      %v583 = vunpack.c.l.b16 %v383
      %v584 = vunpack.c.l.b16 %v384
      %v585 = vunpack.c.h.b16 %v384
      %v586 = vunpack.c.l.b16 %v385
      %v587 = vunpack.c.l.b16 %v386
      %v588 = vunpack.c.h.b16 %v386
      %v589 = vunpack.c.l.b16 %v387
      %v590 = vunpack.c.l.b16 %v388
      %v591 = vunpack.c.h.b16 %v388
      %v592 = vunpack.c.l.b16 %v389
      %v593 = vunpack.c.l.b16 %v390
      %v594 = vunpack.c.h.b16 %v390
      %v595 = vunpack.c.l.b16 %v391
      %v596 = vunpack.c.l.b16 %v392
      %v597 = vunpack.c.h.b16 %v392
      %v598 = vunpack.c.l.b16 %v393
      %v599 = vunpack.c.l.b16 %v394
      %v600 = vunpack.c.h.b16 %v394
      %v601 = vunpack.c.l.b16 %v395
      %v602 = vunpack.c.l.b16 %v396
      %v603 = vunpack.c.h.b16 %v396
      %v604 = vunpack.c.l.b16 %v397
      %v605 = vunpack.c.l.b16 %v398
      %v606 = vunpack.c.h.b16 %v398
      %v607 = vunpack.c.l.b16 %v399
      %v608 = vpack.c.b16 %v515, %v512
      %v609 = vpack.c.b16 %v516, %v513
      %v610 = vpack.c.b16 %v517, %v514
      %v611 = vpack.c.b16 %v521, %v518
      %v612 = vpack.c.b16 %v522, %v519
      %v613 = vpack.c.b16 %v523, %v520
      %v614 = vpack.c.b16 %v527, %v524
      %v615 = vpack.c.b16 %v528, %v525
      %v616 = vpack.c.b16 %v529, %v526
      %v617 = vpack.c.b16 %v533, %v530
      %v618 = vpack.c.b16 %v534, %v531
      %v619 = vpack.c.b16 %v535, %v532
      %v620 = vpack.c.b16 %v539, %v536
      %v621 = vpack.c.b16 %v540, %v537
      %v622 = vpack.c.b16 %v541, %v538
      %v623 = vpack.c.b16 %v545, %v542
      %v624 = vpack.c.b16 %v546, %v543
      %v625 = vpack.c.b16 %v547, %v544
      %v626 = vpack.c.b16 %v551, %v548
      %v627 = vpack.c.b16 %v552, %v549
      %v628 = vpack.c.b16 %v553, %v550
      %v629 = vpack.c.b16 %v557, %v554
      %v630 = vpack.c.b16 %v558, %v555
      %v631 = vpack.c.b16 %v559, %v556
      %v632 = vpack.c.b16 %v563, %v560
      %v633 = vpack.c.b16 %v564, %v561
      %v634 = vpack.c.b16 %v565, %v562
      %v635 = vpack.c.b16 %v569, %v566
      %v636 = vpack.c.b16 %v570, %v567
      %v637 = vpack.c.b16 %v571, %v568
      %v638 = vpack.c.b16 %v575, %v572
      %v639 = vpack.c.b16 %v576, %v573
      %v640 = vpack.c.b16 %v577, %v574
      %v641 = vpack.c.b16 %v581, %v578
      %v642 = vpack.c.b16 %v582, %v579
      %v643 = vpack.c.b16 %v583, %v580
      %v644 = vpack.c.b16 %v587, %v584
      %v645 = vpack.c.b16 %v588, %v585
      %v646 = vpack.c.b16 %v589, %v586
      %v647 = vpack.c.b16 %v593, %v590
      %v648 = vpack.c.b16 %v594, %v591
      %v649 = vpack.c.b16 %v595, %v592
      %v650 = vpack.c.b16 %v599, %v596
      %v651 = vpack.c.b16 %v600, %v597
      %v652 = vpack.c.b16 %v601, %v598
      %v653 = vpack.c.b16 %v605, %v602
      %v654 = vpack.c.b16 %v606, %v603
      %v655 = vpack.c.b16 %v607, %v604
      %v752 = vunpack.c.l.b16 %v400
      %v753 = vunpack.c.l.b16 %v401
      %v754 = vunpack.c.l.b16 %v402
      %v755 = vunpack.c.l.b16 %v403
      %v756 = vunpack.c.l.b16 %v404
      %v757 = vunpack.c.l.b16 %v405
      %v758 = vunpack.c.l.b16 %v406
      %v759 = vunpack.c.l.b16 %v407
      %v760 = vunpack.c.l.b16 %v408
      %v761 = vunpack.c.l.b16 %v409
      %v762 = vunpack.c.l.b16 %v410
      %v763 = vunpack.c.l.b16 %v411
      %v764 = vunpack.c.l.b16 %v412
      %v765 = vunpack.c.l.b16 %v413
      %v766 = vunpack.c.l.b16 %v414
      %v767 = vunpack.c.l.b16 %v415
      %v768 = vunpack.c.l.b16 %v416
      %v769 = vunpack.c.l.b16 %v417
      %v770 = vunpack.c.l.b16 %v418
      %v771 = vunpack.c.l.b16 %v419
      %v772 = vunpack.c.l.b16 %v420
      %v773 = vunpack.c.l.b16 %v421
      %v774 = vunpack.c.l.b16 %v422
      %v775 = vunpack.c.l.b16 %v423
      %v776 = vunpack.c.l.b16 %v424
      %v777 = vunpack.c.l.b16 %v425
      %v778 = vunpack.c.l.b16 %v426
      %v779 = vunpack.c.l.b16 %v427
      %v780 = vunpack.c.l.b16 %v428
      %v781 = vunpack.c.l.b16 %v429
      %v782 = vunpack.c.l.b16 %v430
      %v783 = vunpack.c.l.b16 %v431
      %v784 = vunpack.c.l.b16 %v432
      %v785 = vunpack.c.l.b16 %v433
      %v786 = vunpack.c.l.b16 %v434
      %v787 = vunpack.c.l.b16 %v435
      %v788 = vunpack.c.l.b16 %v436
      %v789 = vunpack.c.l.b16 %v437
      %v790 = vunpack.c.l.b16 %v438
      %v791 = vunpack.c.l.b16 %v439
      %v792 = vunpack.c.l.b16 %v440
      %v793 = vunpack.c.l.b16 %v441
      %v794 = vunpack.c.l.b16 %v442
      %v795 = vunpack.c.l.b16 %v443
      %v796 = vunpack.c.l.b16 %v444
      %v797 = vunpack.c.l.b16 %v445
      %v798 = vunpack.c.l.b16 %v446
      %v799 = vunpack.c.l.b16 %v447
      %v800 = vpack.c.b16 %v753, %v752
      %v801 = vpack.c.b16 %v755, %v754
      %v802 = vpack.c.b16 %v757, %v756
      %v803 = vpack.c.b16 %v759, %v758
      %v804 = vpack.c.b16 %v761, %v760
      %v805 = vpack.c.b16 %v763, %v762
      %v806 = vpack.c.b16 %v765, %v764
      %v807 = vpack.c.b16 %v767, %v766
      %v808 = vpack.c.b16 %v769, %v768
      %v809 = vpack.c.b16 %v771, %v770
      %v810 = vpack.c.b16 %v773, %v772
      %v811 = vpack.c.b16 %v775, %v774
      %v812 = vpack.c.b16 %v777, %v776
      %v813 = vpack.c.b16 %v779, %v778
      %v814 = vpack.c.b16 %v781, %v780
      %v815 = vpack.c.b16 %v783, %v782
      %v816 = vpack.c.b16 %v785, %v784
      %v817 = vpack.c.b16 %v787, %v786
      %v818 = vpack.c.b16 %v789, %v788
      %v819 = vpack.c.b16 %v791, %v790
      %v820 = vpack.c.b16 %v793, %v792
      %v821 = vpack.c.b16 %v795, %v794
      %v822 = vpack.c.b16 %v797, %v796
      %v823 = vpack.c.b16 %v799, %v798
      %848 = vmatprep.subr.bf16.mxu0 0
      %849 = vmatpush1.bf16.msra.mxu0 %v807
      %850 = vmatprep.subr.bf16.mxu0 0
      %851 = vmatpush1.bf16.msra.mxu0 %v806
      %852 = vmatprep.subr.bf16.mxu0 0
      %853 = vmatpush1.bf16.msra.mxu0 %v805
      %854 = vmatprep.subr.bf16.mxu0 0
      %855 = vmatpush1.bf16.msra.mxu0 %v804
      %856 = vmatprep.subr.bf16.mxu0 0
      %857 = vmatpush1.bf16.msra.mxu0 %v803
      %858 = vmatprep.subr.bf16.mxu0 0
      %859 = vmatpush1.bf16.msra.mxu0 %v802
      %860 = vmatprep.subr.bf16.mxu0 0
      %861 = vmatpush1.bf16.msra.mxu0 %v801
      %862 = vmatprep.subr.bf16.mxu0 0
      %863 = vmatpush1.bf16.msra.mxu0 %v800
      %864 = vmatprep.subr.bf16.mxu0 0
      %865 = vmatpush2.bf16.msra.mxu0 %v815
      %866 = vmatprep.subr.bf16.mxu0 0
      %867 = vmatpush2.bf16.msra.mxu0 %v814
      %868 = vmatprep.subr.bf16.mxu0 0
      %869 = vmatpush2.bf16.msra.mxu0 %v813
      %870 = vmatprep.subr.bf16.mxu0 0
      %871 = vmatpush2.bf16.msra.mxu0 %v812
      %872 = vmatprep.subr.bf16.mxu0 0
      %873 = vmatpush2.bf16.msra.mxu0 %v811
      %874 = vmatprep.subr.bf16.mxu0 0
      %875 = vmatpush2.bf16.msra.mxu0 %v810
      %876 = vmatprep.subr.bf16.mxu0 0
      %877 = vmatpush2.bf16.msra.mxu0 %v809
      %878 = vmatprep.subr.bf16.mxu0 0
      %879 = vmatpush2.bf16.msra.mxu0 %v808
      %880 = vmatprep.mubr.bf16.mxu0 %v609
      %881 = vmatmul.mubr.bf16.gmra.mxu0 %v608
      %v882 = vpop.f32.mrf.mxu0
      %v883 = vadd.f32 0.0, %v882
      %v884 = vpop.f32.mrf.mxu0
      %v885 = vpop.f32.mrf.mxu0
      %v886 = vadd.f32 0.0, %v885
      %v887 = vpop.f32.mrf.mxu0
      %888 = vmatprep.mubr.bf16.mxu0 %v612
      %889 = vmatmul.mubr.bf16.gmra.mxu0 %v611
      %v890 = vpop.f32.mrf.mxu0
      %v891 = vadd.f32 0.0, %v890
      %v892 = vpop.f32.mrf.mxu0
      %v893 = vpop.f32.mrf.mxu0
      %v894 = vadd.f32 0.0, %v893
      %v895 = vpop.f32.mrf.mxu0
      %896 = vmatprep.mubr.bf16.mxu0 %v615
      %897 = vmatmul.mubr.bf16.gmra.mxu0 %v614
      %v898 = vpop.f32.mrf.mxu0
      %v899 = vadd.f32 0.0, %v898
      %v900 = vpop.f32.mrf.mxu0
      %v901 = vpop.f32.mrf.mxu0
      %v902 = vadd.f32 0.0, %v901
      %v903 = vpop.f32.mrf.mxu0
      %904 = vmatprep.mubr.bf16.mxu0 %v618
      %905 = vmatmul.mubr.bf16.gmra.mxu0 %v617
      %v906 = vpop.f32.mrf.mxu0
      %v907 = vadd.f32 0.0, %v906
      %v908 = vpop.f32.mrf.mxu0
      %v909 = vpop.f32.mrf.mxu0
      %v910 = vadd.f32 0.0, %v909
      %v911 = vpop.f32.mrf.mxu0
      %912 = vmatprep.mubr.bf16.mxu0 %v621
      %913 = vmatmul.mubr.bf16.gmra.mxu0 %v620
      %v914 = vpop.f32.mrf.mxu0
      %v915 = vadd.f32 0.0, %v914
      %v916 = vpop.f32.mrf.mxu0
      %v917 = vpop.f32.mrf.mxu0
      %v918 = vadd.f32 0.0, %v917
      %v919 = vpop.f32.mrf.mxu0
      %920 = vmatprep.mubr.bf16.mxu0 %v624
      %921 = vmatmul.mubr.bf16.gmra.mxu0 %v623
      %v922 = vpop.f32.mrf.mxu0
      %v923 = vadd.f32 0.0, %v922
      %v924 = vpop.f32.mrf.mxu0
      %v925 = vpop.f32.mrf.mxu0
      %v926 = vadd.f32 0.0, %v925
      %v927 = vpop.f32.mrf.mxu0
      %928 = vmatprep.mubr.bf16.mxu0 %v627
      %929 = vmatmul.mubr.bf16.gmra.mxu0 %v626
      %v930 = vpop.f32.mrf.mxu0
      %v931 = vadd.f32 0.0, %v930
      %v932 = vpop.f32.mrf.mxu0
      %v933 = vpop.f32.mrf.mxu0
      %v934 = vadd.f32 0.0, %v933
      %v935 = vpop.f32.mrf.mxu0
      %936 = vmatprep.mubr.bf16.mxu0 %v630
      %937 = vmatmul.mubr.bf16.gmra.mxu0 %v629
      %v938 = vpop.f32.mrf.mxu0
      %v939 = vadd.f32 0.0, %v938
      %v940 = vpop.f32.mrf.mxu0
      %v941 = vpop.f32.mrf.mxu0
      %v942 = vadd.f32 0.0, %v941
      %v943 = vpop.f32.mrf.mxu0
      %944 = vmatprep.mubr.bf16.mxu0 %v633
      %945 = vmatmul.mubr.bf16.gmra.mxu0 %v632
      %v946 = vpop.f32.mrf.mxu0
      %v947 = vadd.f32 0.0, %v946
      %v948 = vpop.f32.mrf.mxu0
      %v949 = vpop.f32.mrf.mxu0
      %v950 = vadd.f32 0.0, %v949
      %v951 = vpop.f32.mrf.mxu0
      %952 = vmatprep.mubr.bf16.mxu0 %v636
      %953 = vmatmul.mubr.bf16.gmra.mxu0 %v635
      %v954 = vpop.f32.mrf.mxu0
      %v955 = vadd.f32 0.0, %v954
      %v956 = vpop.f32.mrf.mxu0
      %v957 = vpop.f32.mrf.mxu0
      %v958 = vadd.f32 0.0, %v957
      %v959 = vpop.f32.mrf.mxu0
      %960 = vmatprep.mubr.bf16.mxu0 %v639
      %961 = vmatmul.mubr.bf16.gmra.mxu0 %v638
      %v962 = vpop.f32.mrf.mxu0
      %v963 = vadd.f32 0.0, %v962
      %v964 = vpop.f32.mrf.mxu0
      %v965 = vpop.f32.mrf.mxu0
      %v966 = vadd.f32 0.0, %v965
      %v967 = vpop.f32.mrf.mxu0
      %968 = vmatprep.mubr.bf16.mxu0 %v642
      %969 = vmatmul.mubr.bf16.gmra.mxu0 %v641
      %v970 = vpop.f32.mrf.mxu0
      %v971 = vadd.f32 0.0, %v970
      %v972 = vpop.f32.mrf.mxu0
      %v973 = vpop.f32.mrf.mxu0
      %v974 = vadd.f32 0.0, %v973
      %v975 = vpop.f32.mrf.mxu0
      %976 = vmatprep.mubr.bf16.mxu0 %v645
      %977 = vmatmul.mubr.bf16.gmra.mxu0 %v644
      %v978 = vpop.f32.mrf.mxu0
      %v979 = vadd.f32 0.0, %v978
      %v980 = vpop.f32.mrf.mxu0
      %v981 = vpop.f32.mrf.mxu0
      %v982 = vadd.f32 0.0, %v981
      %v983 = vpop.f32.mrf.mxu0
      %984 = vmatprep.mubr.bf16.mxu0 %v648
      %985 = vmatmul.mubr.bf16.gmra.mxu0 %v647
      %v986 = vpop.f32.mrf.mxu0
      %v987 = vadd.f32 0.0, %v986
      %v988 = vpop.f32.mrf.mxu0
      %v989 = vpop.f32.mrf.mxu0
      %v990 = vadd.f32 0.0, %v989
      %v991 = vpop.f32.mrf.mxu0
      %992 = vmatprep.mubr.bf16.mxu0 %v651
      %993 = vmatmul.mubr.bf16.gmra.mxu0 %v650
      %v994 = vpop.f32.mrf.mxu0
      %v995 = vadd.f32 0.0, %v994
      %v996 = vpop.f32.mrf.mxu0
      %v997 = vpop.f32.mrf.mxu0
      %v998 = vadd.f32 0.0, %v997
      %v999 = vpop.f32.mrf.mxu0
      %1000 = vmatprep.mubr.bf16.mxu0 %v654
      %1001 = vmatmul.mubr.bf16.gmra.mxu0 %v653
      %v1002 = vpop.f32.mrf.mxu0
      %v1003 = vadd.f32 0.0, %v1002
      %v1004 = vpop.f32.mrf.mxu0
      %v1005 = vpop.f32.mrf.mxu0
      %v1006 = vadd.f32 0.0, %v1005
      %v1007 = vpop.f32.mrf.mxu0
      %1008 = vdwg.mxu0
      %1009 = vmatprep.subr.bf16.mxu0 0
      %1010 = vmatpush1.bf16.msra.mxu0 %v823
      %1011 = vmatprep.subr.bf16.mxu0 0
      %1012 = vmatpush1.bf16.msra.mxu0 %v822
      %1013 = vmatprep.subr.bf16.mxu0 0
      %1014 = vmatpush1.bf16.msra.mxu0 %v821
      %1015 = vmatprep.subr.bf16.mxu0 0
      %1016 = vmatpush1.bf16.msra.mxu0 %v820
      %1017 = vmatprep.subr.bf16.mxu0 0
      %1018 = vmatpush1.bf16.msra.mxu0 %v819
      %1019 = vmatprep.subr.bf16.mxu0 0
      %1020 = vmatpush1.bf16.msra.mxu0 %v818
      %1021 = vmatprep.subr.bf16.mxu0 0
      %1022 = vmatpush1.bf16.msra.mxu0 %v817
      %1023 = vmatprep.subr.bf16.mxu0 0
      %1024 = vmatpush1.bf16.msra.mxu0 %v816
      %1025 = vmatprep.subr.bf16.mxu0 0
      %1026 = vmatpush2.bf16.msra.mxu0 0
      %1027 = vmatprep.subr.bf16.mxu0 0
      %1028 = vmatpush2.bf16.msra.mxu0 0
      %1029 = vmatprep.subr.bf16.mxu0 0
      %1030 = vmatpush2.bf16.msra.mxu0 0
      %1031 = vmatprep.subr.bf16.mxu0 0
      %1032 = vmatpush2.bf16.msra.mxu0 0
      %1033 = vmatprep.subr.bf16.mxu0 0
      %1034 = vmatpush2.bf16.msra.mxu0 0
      %1035 = vmatprep.subr.bf16.mxu0 0
      %1036 = vmatpush2.bf16.msra.mxu0 0
      %1037 = vmatprep.subr.bf16.mxu0 0
      %1038 = vmatpush2.bf16.msra.mxu0 0
      %1039 = vmatprep.subr.bf16.mxu0 0
      %1040 = vmatpush2.bf16.msra.mxu0 0
      %1041 = vmatprep.mubr.bf16.mxu0 0
      %1042 = vmatmul.mubr.bf16.gmra.mxu0 %v610
      %v1043 = vpop.f32.mrf.mxu0
      %v1044 = vadd.f32 %v883, %v1043
      %v1045 = vpop.f32.mrf.mxu0
      %v1046 = vpop.f32.mrf.mxu0
      %v1047 = vadd.f32 %v886, %v1046
      %v1048 = vpop.f32.mrf.mxu0
      %1049 = vmatprep.mubr.bf16.mxu0 0
      %1050 = vmatmul.mubr.bf16.gmra.mxu0 %v613
      %v1051 = vpop.f32.mrf.mxu0
      %v1052 = vadd.f32 %v891, %v1051
      %v1053 = vpop.f32.mrf.mxu0
      %v1054 = vpop.f32.mrf.mxu0
      %v1055 = vadd.f32 %v894, %v1054
      %v1056 = vpop.f32.mrf.mxu0
      %1057 = vmatprep.mubr.bf16.mxu0 0
      %1058 = vmatmul.mubr.bf16.gmra.mxu0 %v616
      %v1059 = vpop.f32.mrf.mxu0
      %v1060 = vadd.f32 %v899, %v1059
      %v1061 = vpop.f32.mrf.mxu0
      %v1062 = vpop.f32.mrf.mxu0
      %v1063 = vadd.f32 %v902, %v1062
      %v1064 = vpop.f32.mrf.mxu0
      %1065 = vmatprep.mubr.bf16.mxu0 0
      %1066 = vmatmul.mubr.bf16.gmra.mxu0 %v619
      %v1067 = vpop.f32.mrf.mxu0
      %v1068 = vadd.f32 %v907, %v1067
      %v1069 = vpop.f32.mrf.mxu0
      %v1070 = vpop.f32.mrf.mxu0
      %v1071 = vadd.f32 %v910, %v1070
      %v1072 = vpop.f32.mrf.mxu0
      %1073 = vmatprep.mubr.bf16.mxu0 0
      %1074 = vmatmul.mubr.bf16.gmra.mxu0 %v622
      %v1075 = vpop.f32.mrf.mxu0
      %v1076 = vadd.f32 %v915, %v1075
      %v1077 = vpop.f32.mrf.mxu0
      %v1078 = vpop.f32.mrf.mxu0
      %v1079 = vadd.f32 %v918, %v1078
      %v1080 = vpop.f32.mrf.mxu0
      %1081 = vmatprep.mubr.bf16.mxu0 0
      %1082 = vmatmul.mubr.bf16.gmra.mxu0 %v625
      %v1083 = vpop.f32.mrf.mxu0
      %v1084 = vadd.f32 %v923, %v1083
      %v1085 = vpop.f32.mrf.mxu0
      %v1086 = vpop.f32.mrf.mxu0
      %v1087 = vadd.f32 %v926, %v1086
      %v1088 = vpop.f32.mrf.mxu0
      %1089 = vmatprep.mubr.bf16.mxu0 0
      %1090 = vmatmul.mubr.bf16.gmra.mxu0 %v628
      %v1091 = vpop.f32.mrf.mxu0
      %v1092 = vadd.f32 %v931, %v1091
      %v1093 = vpop.f32.mrf.mxu0
      %v1094 = vpop.f32.mrf.mxu0
      %v1095 = vadd.f32 %v934, %v1094
      %v1096 = vpop.f32.mrf.mxu0
      %1097 = vmatprep.mubr.bf16.mxu0 0
      %1098 = vmatmul.mubr.bf16.gmra.mxu0 %v631
      %v1099 = vpop.f32.mrf.mxu0
      %v1100 = vadd.f32 %v939, %v1099
      %v1101 = vpop.f32.mrf.mxu0
      %v1102 = vpop.f32.mrf.mxu0
      %v1103 = vadd.f32 %v942, %v1102
      %v1104 = vpop.f32.mrf.mxu0
      %1105 = vmatprep.mubr.bf16.mxu0 0
      %1106 = vmatmul.mubr.bf16.gmra.mxu0 %v634
      %v1107 = vpop.f32.mrf.mxu0
      %v1108 = vadd.f32 %v947, %v1107
      %v1109 = vpop.f32.mrf.mxu0
      %v1110 = vpop.f32.mrf.mxu0
      %v1111 = vadd.f32 %v950, %v1110
      %v1112 = vpop.f32.mrf.mxu0
      %1113 = vmatprep.mubr.bf16.mxu0 0
      %1114 = vmatmul.mubr.bf16.gmra.mxu0 %v637
      %v1115 = vpop.f32.mrf.mxu0
      %v1116 = vadd.f32 %v955, %v1115
      %v1117 = vpop.f32.mrf.mxu0
      %v1118 = vpop.f32.mrf.mxu0
      %v1119 = vadd.f32 %v958, %v1118
      %v1120 = vpop.f32.mrf.mxu0
      %1121 = vmatprep.mubr.bf16.mxu0 0
      %1122 = vmatmul.mubr.bf16.gmra.mxu0 %v640
      %v1123 = vpop.f32.mrf.mxu0
      %v1124 = vadd.f32 %v963, %v1123
      %v1125 = vpop.f32.mrf.mxu0
      %v1126 = vpop.f32.mrf.mxu0
      %v1127 = vadd.f32 %v966, %v1126
      %v1128 = vpop.f32.mrf.mxu0
      %1129 = vmatprep.mubr.bf16.mxu0 0
      %1130 = vmatmul.mubr.bf16.gmra.mxu0 %v643
      %v1131 = vpop.f32.mrf.mxu0
      %v1132 = vadd.f32 %v971, %v1131
      %v1133 = vpop.f32.mrf.mxu0
      %v1134 = vpop.f32.mrf.mxu0
      %v1135 = vadd.f32 %v974, %v1134
      %v1136 = vpop.f32.mrf.mxu0
      %1137 = vmatprep.mubr.bf16.mxu0 0
      %1138 = vmatmul.mubr.bf16.gmra.mxu0 %v646
      %v1139 = vpop.f32.mrf.mxu0
      %v1140 = vadd.f32 %v979, %v1139
      %v1141 = vpop.f32.mrf.mxu0
      %v1142 = vpop.f32.mrf.mxu0
      %v1143 = vadd.f32 %v982, %v1142
      %v1144 = vpop.f32.mrf.mxu0
      %1145 = vmatprep.mubr.bf16.mxu0 0
      %1146 = vmatmul.mubr.bf16.gmra.mxu0 %v649
      %v1147 = vpop.f32.mrf.mxu0
      %v1148 = vadd.f32 %v987, %v1147
      %v1149 = vpop.f32.mrf.mxu0
      %v1150 = vpop.f32.mrf.mxu0
      %v1151 = vadd.f32 %v990, %v1150
      %v1152 = vpop.f32.mrf.mxu0
      %1153 = vmatprep.mubr.bf16.mxu0 0
      %1154 = vmatmul.mubr.bf16.gmra.mxu0 %v652
      %v1155 = vpop.f32.mrf.mxu0
      %v1156 = vadd.f32 %v995, %v1155
      %v1157 = vpop.f32.mrf.mxu0
      %v1158 = vpop.f32.mrf.mxu0
      %v1159 = vadd.f32 %v998, %v1158
      %v1160 = vpop.f32.mrf.mxu0
      %1161 = vmatprep.mubr.bf16.mxu0 0
      %1162 = vmatmul.mubr.bf16.gmra.mxu0 %v655
      %v1163 = vpop.f32.mrf.mxu0
      %v1164 = vadd.f32 %v1003, %v1163
      %v1165 = vpop.f32.mrf.mxu0
      %v1166 = vpop.f32.mrf.mxu0
      %v1167 = vadd.f32 %v1006, %v1166
      %v1168 = vpop.f32.mrf.mxu0
      %1169 = vdwg.mxu0
      %v1170 = vadd.f32 %v304, %v1044
      %v1171 = vadd.f32 %v305, %v1047
      %v1172 = vadd.f32 %v306, %v1052
      %v1173 = vadd.f32 %v307, %v1055
      %v1174 = vadd.f32 %v308, %v1060
      %v1175 = vadd.f32 %v309, %v1063
      %v1176 = vadd.f32 %v310, %v1068
      %v1177 = vadd.f32 %v311, %v1071
      %v1178 = vadd.f32 %v312, %v1076
      %v1179 = vadd.f32 %v313, %v1079
      %v1180 = vadd.f32 %v314, %v1084
      %v1181 = vadd.f32 %v315, %v1087
      %v1182 = vadd.f32 %v316, %v1092
      %v1183 = vadd.f32 %v317, %v1095
      %v1184 = vadd.f32 %v318, %v1100
      %v1185 = vadd.f32 %v319, %v1103
      %v1186 = vadd.f32 %v320, %v1108
      %v1187 = vadd.f32 %v321, %v1111
      %v1188 = vadd.f32 %v322, %v1116
      %v1189 = vadd.f32 %v323, %v1119
      %v1190 = vadd.f32 %v324, %v1124
      %v1191 = vadd.f32 %v325, %v1127
      %v1192 = vadd.f32 %v326, %v1132
      %v1193 = vadd.f32 %v327, %v1135
      %v1194 = vadd.f32 %v328, %v1140
      %v1195 = vadd.f32 %v329, %v1143
      %v1196 = vadd.f32 %v330, %v1148
      %v1197 = vadd.f32 %v331, %v1151
      %v1198 = vadd.f32 %v332, %v1156
      %v1199 = vadd.f32 %v333, %v1159
      %v1200 = vadd.f32 %v334, %v1164
      %v1201 = vadd.f32 %v335, %v1167
      %1202 = vst [vmem:[#allocation2] sm:$0xff] %v1170
      %1203 = vst [vmem:[#allocation2 + $0x8] sm:$0xff] %v1171
      %1204 = vst [vmem:[#allocation2 + $0x10] sm:$0xff] %v1172
      %1205 = vst [vmem:[#allocation2 + $0x18] sm:$0xff] %v1173
      %1206 = vst [vmem:[#allocation2 + $0x20] sm:$0xff] %v1174
      %1207 = vst [vmem:[#allocation2 + $0x28] sm:$0xff] %v1175
      %1208 = vst [vmem:[#allocation2 + $0x30] sm:$0xff] %v1176
      %1209 = vst [vmem:[#allocation2 + $0x38] sm:$0xff] %v1177
      %1210 = vst [vmem:[#allocation2 + $0x40] sm:$0xff] %v1178
      %1211 = vst [vmem:[#allocation2 + $0x48] sm:$0xff] %v1179
      %1212 = vst [vmem:[#allocation2 + $0x50] sm:$0xff] %v1180
      %1213 = vst [vmem:[#allocation2 + $0x58] sm:$0xff] %v1181
      %1214 = vst [vmem:[#allocation2 + $0x60] sm:$0xff] %v1182
      %1215 = vst [vmem:[#allocation2 + $0x68] sm:$0xff] %v1183
      %1216 = vst [vmem:[#allocation2 + $0x70] sm:$0xff] %v1184
      %1217 = vst [vmem:[#allocation2 + $0x78] sm:$0xff] %v1185
      %1218 = vst [vmem:[#allocation2 + $0x80] sm:$0xff] %v1186
      %1219 = vst [vmem:[#allocation2 + $0x88] sm:$0xff] %v1187
      %1220 = vst [vmem:[#allocation2 + $0x90] sm:$0xff] %v1188
      %1221 = vst [vmem:[#allocation2 + $0x98] sm:$0xff] %v1189
      %1222 = vst [vmem:[#allocation2 + $0xa0] sm:$0xff] %v1190
      %1223 = vst [vmem:[#allocation2 + $0xa8] sm:$0xff] %v1191
      %1224 = vst [vmem:[#allocation2 + $0xb0] sm:$0xff] %v1192
      %1225 = vst [vmem:[#allocation2 + $0xb8] sm:$0xff] %v1193
      %1226 = vst [vmem:[#allocation2 + $0xc0] sm:$0xff] %v1194
      %1227 = vst [vmem:[#allocation2 + $0xc8] sm:$0xff] %v1195
      %1228 = vst [vmem:[#allocation2 + $0xd0] sm:$0xff] %v1196
      %1229 = vst [vmem:[#allocation2 + $0xd8] sm:$0xff] %v1197
      %1230 = vst [vmem:[#allocation2 + $0xe0] sm:$0xff] %v1198
      %1231 = vst [vmem:[#allocation2 + $0xe8] sm:$0xff] %v1199
      %1232 = vst [vmem:[#allocation2 + $0xf0] sm:$0xff] %v1200
      %1233 = vst [vmem:[#allocation2 + $0xf8] sm:$0xff] %v1201
      // Predicated region
      $region37: #{dblock_more_dilate_forward.5} parent=31 // pred_check
        %p1234 = pneg %p268
      $region38: #{dblock_more_dilate_forward.5} parent=31 // pred_check_branch
        %1236 = sbr.rel (%p1234) target = $region40
      $region39: #{dblock_more_dilate_forward.5} parent=31 // pred_region
        %v1237 = vld [vmem:[#allocation2] sm:$0xff]
        %v1238 = vld [vmem:[#allocation2 + $0x8] sm:$0xff]
        %v1239 = vld [vmem:[#allocation2 + $0x10] sm:$0xff]
        %v1240 = vld [vmem:[#allocation2 + $0x18] sm:$0xff]
        %v1241 = vld [vmem:[#allocation2 + $0x20] sm:$0xff]
        %v1242 = vld [vmem:[#allocation2 + $0x28] sm:$0xff]
        %v1243 = vld [vmem:[#allocation2 + $0x30] sm:$0xff]
        %v1244 = vld [vmem:[#allocation2 + $0x38] sm:$0xff]
        %v1245 = vld [vmem:[#allocation2 + $0x40] sm:$0xff]
        %v1246 = vld [vmem:[#allocation2 + $0x48] sm:$0xff]
        %v1247 = vld [vmem:[#allocation2 + $0x50] sm:$0xff]
        %v1248 = vld [vmem:[#allocation2 + $0x58] sm:$0xff]
        %v1249 = vld [vmem:[#allocation2 + $0x60] sm:$0xff]
        %v1250 = vld [vmem:[#allocation2 + $0x68] sm:$0xff]
        %v1251 = vld [vmem:[#allocation2 + $0x70] sm:$0xff]
        %v1252 = vld [vmem:[#allocation2 + $0x78] sm:$0xff]
        %v1253 = vld [vmem:[#allocation2 + $0x80] sm:$0xff]
        %v1254 = vld [vmem:[#allocation2 + $0x88] sm:$0xff]
        %v1255 = vld [vmem:[#allocation2 + $0x90] sm:$0xff]
        %v1256 = vld [vmem:[#allocation2 + $0x98] sm:$0xff]
        %v1257 = vld [vmem:[#allocation2 + $0xa0] sm:$0xff]
        %v1258 = vld [vmem:[#allocation2 + $0xa8] sm:$0xff]
        %v1259 = vld [vmem:[#allocation2 + $0xb0] sm:$0xff]
        %v1260 = vld [vmem:[#allocation2 + $0xb8] sm:$0xff]
        %v1261 = vld [vmem:[#allocation2 + $0xc0] sm:$0xff]
        %v1262 = vld [vmem:[#allocation2 + $0xc8] sm:$0xff]
        %v1263 = vld [vmem:[#allocation2 + $0xd0] sm:$0xff]
        %v1264 = vld [vmem:[#allocation2 + $0xd8] sm:$0xff]
        %v1265 = vld [vmem:[#allocation2 + $0xe0] sm:$0xff]
        %v1266 = vld [vmem:[#allocation2 + $0xe8] sm:$0xff]
        %v1267 = vld [vmem:[#allocation2 + $0xf0] sm:$0xff]
        %v1268 = vld [vmem:[#allocation2 + $0xf8] sm:$0xff]
        %v1269 = vld [vmem:[%s257] sm:$0x1]
        %v1271 = vlaneseq
        %v1272 = vshrl.u32 %v1271, 7
        %v1273 = vsub.s32 0, %v1272
        %v1274 = vrot.slane %v1269, %v1273
        %v1276 = vadd.f32 %v1237, %v1274
        %v1277 = vadd.f32 %v1238, %v1274
        %v1278 = vadd.f32 %v1239, %v1274
        %v1279 = vadd.f32 %v1240, %v1274
        %v1280 = vadd.f32 %v1241, %v1274
        %v1281 = vadd.f32 %v1242, %v1274
        %v1282 = vadd.f32 %v1243, %v1274
        %v1283 = vadd.f32 %v1244, %v1274
        %v1284 = vadd.f32 %v1245, %v1274
        %v1285 = vadd.f32 %v1246, %v1274
        %v1286 = vadd.f32 %v1247, %v1274
        %v1287 = vadd.f32 %v1248, %v1274
        %v1288 = vadd.f32 %v1249, %v1274
        %v1289 = vadd.f32 %v1250, %v1274
        %v1290 = vadd.f32 %v1251, %v1274
        %v1291 = vadd.f32 %v1252, %v1274
        %v1292 = vadd.f32 %v1253, %v1274
        %v1293 = vadd.f32 %v1254, %v1274
        %v1294 = vadd.f32 %v1255, %v1274
        %v1295 = vadd.f32 %v1256, %v1274
        %v1296 = vadd.f32 %v1257, %v1274
        %v1297 = vadd.f32 %v1258, %v1274
        %v1298 = vadd.f32 %v1259, %v1274
        %v1299 = vadd.f32 %v1260, %v1274
        %v1300 = vadd.f32 %v1261, %v1274
        %v1301 = vadd.f32 %v1262, %v1274
        %v1302 = vadd.f32 %v1263, %v1274
        %v1303 = vadd.f32 %v1264, %v1274
        %v1304 = vadd.f32 %v1265, %v1274
        %v1305 = vadd.f32 %v1266, %v1274
        %v1306 = vadd.f32 %v1267, %v1274
        %v1307 = vadd.f32 %v1268, %v1274
        %v1308 = vmax.f32 %v1276, 0.0
        %v1309 = vmax.f32 %v1277, 0.0
        %v1310 = vmax.f32 %v1278, 0.0
        %v1311 = vmax.f32 %v1279, 0.0
        %v1312 = vmax.f32 %v1280, 0.0
        %v1313 = vmax.f32 %v1281, 0.0
        %v1314 = vmax.f32 %v1282, 0.0
        %v1315 = vmax.f32 %v1283, 0.0
        %v1316 = vmax.f32 %v1284, 0.0
        %v1317 = vmax.f32 %v1285, 0.0
        %v1318 = vmax.f32 %v1286, 0.0
        %v1319 = vmax.f32 %v1287, 0.0
        %v1320 = vmax.f32 %v1288, 0.0
        %v1321 = vmax.f32 %v1289, 0.0
        %v1322 = vmax.f32 %v1290, 0.0
        %v1323 = vmax.f32 %v1291, 0.0
        %v1324 = vmax.f32 %v1292, 0.0
        %v1325 = vmax.f32 %v1293, 0.0
        %v1326 = vmax.f32 %v1294, 0.0
        %v1327 = vmax.f32 %v1295, 0.0
        %v1328 = vmax.f32 %v1296, 0.0
        %v1329 = vmax.f32 %v1297, 0.0
        %v1330 = vmax.f32 %v1298, 0.0
        %v1331 = vmax.f32 %v1299, 0.0
        %v1332 = vmax.f32 %v1300, 0.0
        %v1333 = vmax.f32 %v1301, 0.0
        %v1334 = vmax.f32 %v1302, 0.0
        %v1335 = vmax.f32 %v1303, 0.0
        %v1336 = vmax.f32 %v1304, 0.0
        %v1337 = vmax.f32 %v1305, 0.0
        %v1338 = vmax.f32 %v1306, 0.0
        %v1339 = vmax.f32 %v1307, 0.0
        %1340 = vst [vmem:[%s265] sm:$0xff] %v1308
        %1341 = vst [vmem:[%s265 + $0x8] sm:$0xff] %v1309
        %1342 = vst [vmem:[%s265 + $0x10] sm:$0xff] %v1310
        %1343 = vst [vmem:[%s265 + $0x18] sm:$0xff] %v1311
        %1344 = vst [vmem:[%s265 + $0x20] sm:$0xff] %v1312
        %1345 = vst [vmem:[%s265 + $0x28] sm:$0xff] %v1313
        %1346 = vst [vmem:[%s265 + $0x30] sm:$0xff] %v1314
        %1347 = vst [vmem:[%s265 + $0x38] sm:$0xff] %v1315
        %1348 = vst [vmem:[%s265 + $0x40] sm:$0xff] %v1316
        %1349 = vst [vmem:[%s265 + $0x48] sm:$0xff] %v1317
        %1350 = vst [vmem:[%s265 + $0x50] sm:$0xff] %v1318
        %1351 = vst [vmem:[%s265 + $0x58] sm:$0xff] %v1319
        %1352 = vst [vmem:[%s265 + $0x60] sm:$0xff] %v1320
        %1353 = vst [vmem:[%s265 + $0x68] sm:$0xff] %v1321
        %1354 = vst [vmem:[%s265 + $0x70] sm:$0xff] %v1322
        %1355 = vst [vmem:[%s265 + $0x78] sm:$0xff] %v1323
        %1356 = vst [vmem:[%s265 + $0x80] sm:$0xff] %v1324
        %1357 = vst [vmem:[%s265 + $0x88] sm:$0xff] %v1325
        %1358 = vst [vmem:[%s265 + $0x90] sm:$0xff] %v1326
        %1359 = vst [vmem:[%s265 + $0x98] sm:$0xff] %v1327
        %1360 = vst [vmem:[%s265 + $0xa0] sm:$0xff] %v1328
        %1361 = vst [vmem:[%s265 + $0xa8] sm:$0xff] %v1329
        %1362 = vst [vmem:[%s265 + $0xb0] sm:$0xff] %v1330
        %1363 = vst [vmem:[%s265 + $0xb8] sm:$0xff] %v1331
        %1364 = vst [vmem:[%s265 + $0xc0] sm:$0xff] %v1332
        %1365 = vst [vmem:[%s265 + $0xc8] sm:$0xff] %v1333
        %1366 = vst [vmem:[%s265 + $0xd0] sm:$0xff] %v1334
        %1367 = vst [vmem:[%s265 + $0xd8] sm:$0xff] %v1335
        %1368 = vst [vmem:[%s265 + $0xe0] sm:$0xff] %v1336
        %1369 = vst [vmem:[%s265 + $0xe8] sm:$0xff] %v1337
        %1370 = vst [vmem:[%s265 + $0xf0] sm:$0xff] %v1338
        %1371 = vst [vmem:[%s265 + $0xf8] sm:$0xff] %v1339
      $region40: #{dblock_more_dilate_forward.5} parent=31 // pred_fallthru
        _
      %s1372 = smul.u32 32, %s19
      %p1373 = scmp.lt.s32.totalorder %s1372, 255
      %s1374 = scalar_select %p1373, %s1372, 255
      %p1375 = scmp.lt.s32.totalorder %s20, 0
      %s1376 = scalar_select %p1375, %s20, 0
      %s1377 = sadd.s32 %s1376, %s1374
      %s1378 = smul.addr %s1377, 8
      %s1379 = scalar_lea.vmem %s3, %s1378
      // Predicated region
      $region41: #{dblock_more_dilate_forward.5} parent=31 // pred_check
        %p1380 = pneg %p135
      $region42: #{dblock_more_dilate_forward.5} parent=31 // pred_check_branch
        %1382 = sbr.rel (%p1380) target = $region44
      $region43: #{dblock_more_dilate_forward.5} parent=31 // pred_region
        %s1383 = smul.u32 32, %s19
      $region44: #{dblock_more_dilate_forward.5} parent=31 // pred_fallthru
        _
    $region32: #{dblock_more_dilate_forward.5} parent=5 // pred_fallthru
      _
    %p1384 = scmp.le.s32.totalorder 2, %s9
    // Predicated region
    $region45: #{dblock_more_dilate_forward.5} parent=5 // pred_check
      %p1385 = pneg %p1384
    $region46: #{dblock_more_dilate_forward.5} parent=5 // pred_check_branch
      %1387 = sbr.rel (%p1385) target = $region48
    $region47: #{dblock_more_dilate_forward.5} parent=5 // pred_region
      %s1388 = ssub.s32 %s9, 2
      // Predicated region
      $region49: #{dblock_more_dilate_forward.5} parent=47 // pred_check
        %p1389 = pneg %p141
      $region50: #{dblock_more_dilate_forward.5} parent=47 // pred_check_branch
        %1391 = sbr.rel (%p1389) target = $region52
      $region51: #{dblock_more_dilate_forward.5} parent=47 // pred_region
        %s1392 = smul.u32 32, %s22
        %p1393 = scmp.lt.s32.totalorder %s1392, 255
        %s1394 = scalar_select %p1393, %s1392, 255
        %p1395 = scmp.lt.s32.totalorder %s23, 0
        %s1396 = scalar_select %p1395, %s23, 0
        %s1397 = sadd.s32 %s1396, %s1394
        %s1398 = smul.addr %s1397, 8
        %s1399 = scalar_lea.vmem %s3, %s1398
      $region52: #{dblock_more_dilate_forward.5} parent=47 // pred_fallthru
        _
    $region48: #{dblock_more_dilate_forward.5} parent=5 // pred_fallthru
      _
  $region6: #{dblock_more_dilate_forward.5} parent=0 // loop_footer
    %s13 = sadd.s32 1, %s9
  $region7: #{dblock_more_dilate_forward.5} parent=0 // loop_footer_branch
    %8 = sbr.rel target = $region3
  $region8: #{dblock_more_dilate_forward.5} parent=0 // loop_exit
    _

// kernel: dblock_more_dilate_forward.9
$region0: #{dblock_more_dilate_forward.9}
  #allocation0 [shape = 'u32[]', space=smem, size = 0x4, offset = 0x4, fixed_abs, tag = 'smem constant byte address 0x4 - core index']
  #allocation1 [shape = 'u32[144,128]{1,0:T(1,128)}', space=vmem, size = 0x12000, scoped, tag = 'internal scratch']
  #allocation2 [shape = 'f32[256,128]{1,0:T(8,128)}', space=vmem, size = 0x20000, scoped, tag = 'scratch operand']
  %s0 = inlined_call_operand.vmem [shape: bf16[2048,384], index: 0, kind: input, shape index: {}]
  %s1 = inlined_call_operand.vmem [shape: bf16[384,128], index: 1, kind: input, shape index: {}]
  %s2 = inlined_call_operand.vmem [shape: f32[1,128], index: 2, kind: input, shape index: {}]
  %s3 = inlined_call_operand.vmem [shape: f32[2048,128], index: 3, kind: input, shape index: {}]
  %s4 = inlined_call_operand.vmem [shape: f32[2048,128], index: 4, kind: input, shape index: {}]
  %s5 = inlined_call_operand.vmem [shape: f32[2048,128], index: 5, kind: input, shape index: {}]
  %s6 = inlined_call_operand.vmem [shape: f32[2048,128], index: 6, kind: input, shape index: {}]
  %s7 = inlined_call_operand.vmem [shape: f32[2048,128], index: 7, kind: input, shape index: {}]
  %s8 = inlined_call_operand.vmem [shape: f32[2048,128], index: 8, kind: output, shape index: {}]
  %s9 = sld [smem:[#allocation0]]
  $region73: #{dblock_more_dilate_forward.9} parent=0
    _
  %s11 = ssub.s32 1, %s9
  %s12 = scalar_select 0, %s11, %s9
  loop: start=0, step=1, limit=10
  $region2: #{dblock_more_dilate_forward.9} parent=0 // loop_pre_header
    _
  $region3: #{dblock_more_dilate_forward.9} parent=0 // loop_header
    %s14 = sphi 0, %s18
    %p15 = scmp.ge.s32.totalorder %s14, 10
    %s21 = sphi 0, %s40
    %s22 = sphi 0, %s36
    %s23 = sphi 0, %s32
    %s24 = sphi 0, %s21
    %s25 = sphi 0, %s22
    %s26 = sphi 0, %s23
    %s27 = sphi 0, %s24
    %s28 = sphi 0, %s25
    %s29 = sphi 0, %s26
    %s45 = sphi 0, %s47
    %s48 = sphi 0, %s45
    %s49 = sphi 0, %s48
    %s65 = sphi 0, %s49
    %s73 = sphi 0, %s75
    %s76 = sphi 0, %s73
    %s77 = sphi 0, %s76
    %s93 = sphi 0, %s77
    %s99 = sphi 0, %s101
    %s102 = sphi 0, %s99
    %s103 = sphi 0, %s102
    %s119 = sphi 0, %s103
    %s127 = sphi 0, %s129
    %s130 = sphi 0, %s127
    %s131 = sphi 0, %s130
    %s147 = sphi 0, %s131
    %s155 = sphi 0, %s157
    %s158 = sphi 0, %s155
    %s159 = sphi 0, %s158
    %s175 = sphi 0, %s159
    %s183 = sphi 0, %s185
    %s186 = sphi 0, %s183
    %s187 = sphi 0, %s186
    %s203 = sphi 0, %s187
    %s211 = sphi 0, %s213
    %s214 = sphi 0, %s211
    %s215 = sphi 0, %s214
    %s231 = sphi 0, %s215
    %s239 = sphi 0, %s241
    %s242 = sphi 0, %s239
    %s243 = sphi 0, %s242
    %s259 = sphi 0, %s243
    %s267 = sphi 0, %s269
    %s270 = sphi 0, %s267
    %s271 = sphi 0, %s270
    %s287 = sphi 0, %s271
  $region4: #{dblock_more_dilate_forward.9} parent=0 // loop_header_branch
    %17 = sbr.rel (%p15) target = $region8
  $region5: #{dblock_more_dilate_forward.9} parent=0 // loop_body
    %s19 = ssub.s32 %s14, 1
    %s20 = ssub.s32 %s14, 2
    %s30 = sadd.s32 1, %s23
    %p31 = scmp.ge.s32.totalorder %s30, 1
    %s32 = scalar_select %p31, 0, %s30
    %s33 = sadd.s32 1, %s22
    %s34 = scalar_select %p31, %s33, %s22
    %p35 = scmp.ge.s32.totalorder %s34, 1
    %s36 = scalar_select %p35, 0, %s34
    %s37 = sadd.s32 1, %s21
    %s38 = scalar_select %p35, %s37, %s21
    %p39 = scmp.ge.s32.totalorder %s38, 8
    %s40 = scalar_select %p39, 0, %s38
    %s41 = ssub.s32 %s21, %s40
    %s42 = ssub.s32 %s23, %s32
    %s43 = sor.u32 %s41, %s42
    %p44 = scmp.eq.s32.totalorder %s43, 0
    %s46 = sadd.s32 %s45, 1
    %s47 = scalar_select %p44, %s45, %s46
    %p50 = pneg %p44
    %p51 = scmp.eq.s32.totalorder %s14, 7
    %p52 = por %p50, %p51
    %p53 = scmp.ne.s32.totalorder %s45, %s48
    %p54 = scmp.eq.s32.totalorder %s14, 0
    %p55 = por %p53, %p54
    %p56 = scmp.ne.s32.totalorder %s45, %s48
    %p57 = scmp.eq.s32.totalorder %s19, 7
    %p58 = por %p56, %p57
    %p59 = scmp.ne.s32.totalorder %s48, %s49
    %p60 = scmp.eq.s32.totalorder %s19, 0
    %p61 = por %p59, %p60
    %p62 = scmp.ne.s32.totalorder %s48, %s49
    %p63 = scmp.eq.s32.totalorder %s20, 7
    %p64 = por %p62, %p63
    %p66 = scmp.ne.s32.totalorder %s49, %s65
    %p67 = scmp.eq.s32.totalorder %s20, 0
    %p68 = por %p66, %p67
    %s69 = ssub.s32 %s23, %s32
    %s70 = ssub.s32 %s22, %s36
    %s71 = sor.u32 %s69, %s70
    %p72 = scmp.eq.s32.totalorder %s71, 0
    %s74 = sadd.s32 %s73, 1
    %s75 = scalar_select %p72, %s73, %s74
    %p78 = pneg %p72
    %p79 = scmp.eq.s32.totalorder %s14, 7
    %p80 = por %p78, %p79
    %p81 = scmp.ne.s32.totalorder %s73, %s76
    %p82 = scmp.eq.s32.totalorder %s14, 0
    %p83 = por %p81, %p82
    %p84 = scmp.ne.s32.totalorder %s73, %s76
    %p85 = scmp.eq.s32.totalorder %s19, 7
    %p86 = por %p84, %p85
    %p87 = scmp.ne.s32.totalorder %s76, %s77
    %p88 = scmp.eq.s32.totalorder %s19, 0
    %p89 = por %p87, %p88
    %p90 = scmp.ne.s32.totalorder %s76, %s77
    %p91 = scmp.eq.s32.totalorder %s20, 7
    %p92 = por %p90, %p91
    %p94 = scmp.ne.s32.totalorder %s77, %s93
    %p95 = scmp.eq.s32.totalorder %s20, 0
    %p96 = por %p94, %p95
    %s97 = ssub.s32 %s22, %s36
    %p98 = scmp.eq.s32.totalorder %s97, 0
    %s100 = sadd.s32 %s99, 1
    %s101 = scalar_select %p98, %s99, %s100
    %p104 = pneg %p98
    %p105 = scmp.eq.s32.totalorder %s14, 7
    %p106 = por %p104, %p105
    %p107 = scmp.ne.s32.totalorder %s99, %s102
    %p108 = scmp.eq.s32.totalorder %s14, 0
    %p109 = por %p107, %p108
    %p110 = scmp.ne.s32.totalorder %s99, %s102
    %p111 = scmp.eq.s32.totalorder %s19, 7
    %p112 = por %p110, %p111
    %p113 = scmp.ne.s32.totalorder %s102, %s103
    %p114 = scmp.eq.s32.totalorder %s19, 0
    %p115 = por %p113, %p114
    %p116 = scmp.ne.s32.totalorder %s102, %s103
    %p117 = scmp.eq.s32.totalorder %s20, 7
    %p118 = por %p116, %p117
    %p120 = scmp.ne.s32.totalorder %s103, %s119
    %p121 = scmp.eq.s32.totalorder %s20, 0
    %p122 = por %p120, %p121
    %s123 = ssub.s32 %s21, %s40
    %s124 = ssub.s32 %s22, %s36
    %s125 = sor.u32 %s123, %s124
    %p126 = scmp.eq.s32.totalorder %s125, 0
    %s128 = sadd.s32 %s127, 1
    %s129 = scalar_select %p126, %s127, %s128
    %p132 = pneg %p126
    %p133 = scmp.eq.s32.totalorder %s14, 7
    %p134 = por %p132, %p133
    %p135 = scmp.ne.s32.totalorder %s127, %s130
    %p136 = scmp.eq.s32.totalorder %s14, 0
    %p137 = por %p135, %p136
    %p138 = scmp.ne.s32.totalorder %s127, %s130
    %p139 = scmp.eq.s32.totalorder %s19, 7
    %p140 = por %p138, %p139
    %p141 = scmp.ne.s32.totalorder %s130, %s131
    %p142 = scmp.eq.s32.totalorder %s19, 0
    %p143 = por %p141, %p142
    %p144 = scmp.ne.s32.totalorder %s130, %s131
    %p145 = scmp.eq.s32.totalorder %s20, 7
    %p146 = por %p144, %p145
    %p148 = scmp.ne.s32.totalorder %s131, %s147
    %p149 = scmp.eq.s32.totalorder %s20, 0
    %p150 = por %p148, %p149
    %s151 = ssub.s32 %s21, %s40
    %s152 = ssub.s32 %s22, %s36
    %s153 = sor.u32 %s151, %s152
    %p154 = scmp.eq.s32.totalorder %s153, 0
    %s156 = sadd.s32 %s155, 1
    %s157 = scalar_select %p154, %s155, %s156
    %p160 = pneg %p154
    %p161 = scmp.eq.s32.totalorder %s14, 7
    %p162 = por %p160, %p161
    %p163 = scmp.ne.s32.totalorder %s155, %s158
    %p164 = scmp.eq.s32.totalorder %s14, 0
    %p165 = por %p163, %p164
    %p166 = scmp.ne.s32.totalorder %s155, %s158
    %p167 = scmp.eq.s32.totalorder %s19, 7
    %p168 = por %p166, %p167
    %p169 = scmp.ne.s32.totalorder %s158, %s159
    %p170 = scmp.eq.s32.totalorder %s19, 0
    %p171 = por %p169, %p170
    %p172 = scmp.ne.s32.totalorder %s158, %s159
    %p173 = scmp.eq.s32.totalorder %s20, 7
    %p174 = por %p172, %p173
    %p176 = scmp.ne.s32.totalorder %s159, %s175
    %p177 = scmp.eq.s32.totalorder %s20, 0
    %p178 = por %p176, %p177
    %s179 = ssub.s32 %s21, %s40
    %s180 = ssub.s32 %s22, %s36
    %s181 = sor.u32 %s179, %s180
    %p182 = scmp.eq.s32.totalorder %s181, 0
    %s184 = sadd.s32 %s183, 1
    %s185 = scalar_select %p182, %s183, %s184
    %p188 = pneg %p182
    %p189 = scmp.eq.s32.totalorder %s14, 7
    %p190 = por %p188, %p189
    %p191 = scmp.ne.s32.totalorder %s183, %s186
    %p192 = scmp.eq.s32.totalorder %s14, 0
    %p193 = por %p191, %p192
    %p194 = scmp.ne.s32.totalorder %s183, %s186
    %p195 = scmp.eq.s32.totalorder %s19, 7
    %p196 = por %p194, %p195
    %p197 = scmp.ne.s32.totalorder %s186, %s187
    %p198 = scmp.eq.s32.totalorder %s19, 0
    %p199 = por %p197, %p198
    %p200 = scmp.ne.s32.totalorder %s186, %s187
    %p201 = scmp.eq.s32.totalorder %s20, 7
    %p202 = por %p200, %p201
    %p204 = scmp.ne.s32.totalorder %s187, %s203
    %p205 = scmp.eq.s32.totalorder %s20, 0
    %p206 = por %p204, %p205
    %s207 = ssub.s32 %s21, %s40
    %s208 = ssub.s32 %s22, %s36
    %s209 = sor.u32 %s207, %s208
    %p210 = scmp.eq.s32.totalorder %s209, 0
    %s212 = sadd.s32 %s211, 1
    %s213 = scalar_select %p210, %s211, %s212
    %p216 = pneg %p210
    %p217 = scmp.eq.s32.totalorder %s14, 7
    %p218 = por %p216, %p217
    %p219 = scmp.ne.s32.totalorder %s211, %s214
    %p220 = scmp.eq.s32.totalorder %s14, 0
    %p221 = por %p219, %p220
    %p222 = scmp.ne.s32.totalorder %s211, %s214
    %p223 = scmp.eq.s32.totalorder %s19, 7
    %p224 = por %p222, %p223
    %p225 = scmp.ne.s32.totalorder %s214, %s215
    %p226 = scmp.eq.s32.totalorder %s19, 0
    %p227 = por %p225, %p226
    %p228 = scmp.ne.s32.totalorder %s214, %s215
    %p229 = scmp.eq.s32.totalorder %s20, 7
    %p230 = por %p228, %p229
    %p232 = scmp.ne.s32.totalorder %s215, %s231
    %p233 = scmp.eq.s32.totalorder %s20, 0
    %p234 = por %p232, %p233
    %s235 = ssub.s32 %s21, %s40
    %s236 = ssub.s32 %s22, %s36
    %s237 = sor.u32 %s235, %s236
    %p238 = scmp.eq.s32.totalorder %s237, 0
    %s240 = sadd.s32 %s239, 1
    %s241 = scalar_select %p238, %s239, %s240
    %p244 = pneg %p238
    %p245 = scmp.eq.s32.totalorder %s14, 7
    %p246 = por %p244, %p245
    %p247 = scmp.ne.s32.totalorder %s239, %s242
    %p248 = scmp.eq.s32.totalorder %s14, 0
    %p249 = por %p247, %p248
    %p250 = scmp.ne.s32.totalorder %s239, %s242
    %p251 = scmp.eq.s32.totalorder %s19, 7
    %p252 = por %p250, %p251
    %p253 = scmp.ne.s32.totalorder %s242, %s243
    %p254 = scmp.eq.s32.totalorder %s19, 0
    %p255 = por %p253, %p254
    %p256 = scmp.ne.s32.totalorder %s242, %s243
    %p257 = scmp.eq.s32.totalorder %s20, 7
    %p258 = por %p256, %p257
    %p260 = scmp.ne.s32.totalorder %s243, %s259
    %p261 = scmp.eq.s32.totalorder %s20, 0
    %p262 = por %p260, %p261
    %s263 = ssub.s32 %s21, %s40
    %s264 = ssub.s32 %s22, %s36
    %s265 = sor.u32 %s263, %s264
    %p266 = scmp.eq.s32.totalorder %s265, 0
    %s268 = sadd.s32 %s267, 1
    %s269 = scalar_select %p266, %s267, %s268
    %p272 = pneg %p266
    %p273 = scmp.eq.s32.totalorder %s14, 7
    %p274 = por %p272, %p273
    %p275 = scmp.ne.s32.totalorder %s267, %s270
    %p276 = scmp.eq.s32.totalorder %s14, 0
    %p277 = por %p275, %p276
    %p278 = scmp.ne.s32.totalorder %s267, %s270
    %p279 = scmp.eq.s32.totalorder %s19, 7
    %p280 = por %p278, %p279
    %p281 = scmp.ne.s32.totalorder %s270, %s271
    %p282 = scmp.eq.s32.totalorder %s19, 0
    %p283 = por %p281, %p282
    %p284 = scmp.ne.s32.totalorder %s270, %s271
    %p285 = scmp.eq.s32.totalorder %s20, 7
    %p286 = por %p284, %p285
    %p288 = scmp.ne.s32.totalorder %s271, %s287
    %p289 = scmp.eq.s32.totalorder %s20, 0
    %p290 = por %p288, %p289
    %p291 = scmp.le.s32.totalorder 1, %s14
    %p292 = scmp.lt.s32.totalorder %s14, 9
    %p293 = pnand %p291, %p292
    %p294 = pneg %p293
    // Predicated region
    $region9: #{dblock_more_dilate_forward.9} parent=5 // pred_check
      _
    $region10: #{dblock_more_dilate_forward.9} parent=5 // pred_check_branch
      %296 = sbr.rel (%p293) target = $region12
    $region11: #{dblock_more_dilate_forward.9} parent=5 // pred_region
      %s297 = ssub.s32 %s14, 1
      // Predicated region
      $region13: #{dblock_more_dilate_forward.9} parent=11 // pred_check
        %p298 = pneg %p89
      $region14: #{dblock_more_dilate_forward.9} parent=11 // pred_check_branch
        %300 = sbr.rel (%p298) target = $region16
      $region15: #{dblock_more_dilate_forward.9} parent=11 // pred_region
        %s301 = smul.u32 48, %s26
        %p302 = scmp.lt.s32.totalorder %s301, 47
        %s303 = scalar_select %p302, %s301, 47
        %p304 = scmp.lt.s32.totalorder %s25, 0
        %s305 = scalar_select %p304, %s25, 0
        %s306 = sadd.s32 %s305, %s303
        %s307 = smul.addr %s306, 4
        %s308 = scalar_lea.vmem %s1, %s307
        %s309 = smul.u32 48, %s26
      $region16: #{dblock_more_dilate_forward.9} parent=11 // pred_fallthru
        _
      // Predicated region
      $region17: #{dblock_more_dilate_forward.9} parent=11 // pred_check
        %p310 = pneg %p115
      $region18: #{dblock_more_dilate_forward.9} parent=11 // pred_check_branch
        %312 = sbr.rel (%p310) target = $region20
      $region19: #{dblock_more_dilate_forward.9} parent=11 // pred_region
        %p313 = scmp.lt.s32.totalorder %s25, 0
        %s314 = scalar_select %p313, %s25, 0
        %s315 = scalar_lea.vmem %s2, %s314
      $region20: #{dblock_more_dilate_forward.9} parent=11 // pred_fallthru
        _
    $region12: #{dblock_more_dilate_forward.9} parent=5 // pred_fallthru
      _
    %p316 = scmp.lt.s32.totalorder %s14, 8
    // Predicated region
    $region21: #{dblock_more_dilate_forward.9} parent=5 // pred_check
      %p317 = pneg %p316
    $region22: #{dblock_more_dilate_forward.9} parent=5 // pred_check_branch
      %319 = sbr.rel (%p317) target = $region24
    $region23: #{dblock_more_dilate_forward.9} parent=5 // pred_region
      // Predicated region
      $region25: #{dblock_more_dilate_forward.9} parent=23 // pred_check
        %p320 = pneg %p55
      $region26: #{dblock_more_dilate_forward.9} parent=23 // pred_check_branch
        %322 = sbr.rel (%p320) target = $region28
      $region27: #{dblock_more_dilate_forward.9} parent=23 // pred_region
        %s323 = smul.u32 32, %s21
        %s324 = smul.u32 3, %s23
        %p325 = scmp.lt.s32.totalorder %s323, 255
        %s326 = scalar_select %p325, %s323, 255
        %p327 = scmp.lt.s32.totalorder %s324, 2
        %s328 = scalar_select %p327, %s324, 2
        %s329 = smul.addr %s326, 3
        %s330 = sadd.s32 %s328, %s329
        %s331 = smul.addr %s330, 4
        %s332 = scalar_lea.vmem %s0, %s331
        %s333 = smul.u32 32, %s21
        %s334 = smul.u32 3, %s23
      $region28: #{dblock_more_dilate_forward.9} parent=23 // pred_fallthru
        _
      // Predicated region
      $region29: #{dblock_more_dilate_forward.9} parent=23 // pred_check
        %p335 = pneg %p137
      $region30: #{dblock_more_dilate_forward.9} parent=23 // pred_check_branch
        %337 = sbr.rel (%p335) target = $region32
      $region31: #{dblock_more_dilate_forward.9} parent=23 // pred_region
        %s338 = smul.u32 32, %s21
        %p339 = scmp.lt.s32.totalorder %s338, 255
        %s340 = scalar_select %p339, %s338, 255
        %p341 = scmp.lt.s32.totalorder %s22, 0
        %s342 = scalar_select %p341, %s22, 0
        %s343 = sadd.s32 %s342, %s340
        %s344 = smul.addr %s343, 8
        %s345 = scalar_lea.vmem %s3, %s344
        %s346 = smul.u32 32, %s21
      $region32: #{dblock_more_dilate_forward.9} parent=23 // pred_fallthru
        _
      // Predicated region
      $region33: #{dblock_more_dilate_forward.9} parent=23 // pred_check
        %p347 = pneg %p165
      $region34: #{dblock_more_dilate_forward.9} parent=23 // pred_check_branch
        %349 = sbr.rel (%p347) target = $region36
      $region35: #{dblock_more_dilate_forward.9} parent=23 // pred_region
        %s350 = smul.u32 32, %s21
        %p351 = scmp.lt.s32.totalorder %s350, 255
        %s352 = scalar_select %p351, %s350, 255
        %p353 = scmp.lt.s32.totalorder %s22, 0
        %s354 = scalar_select %p353, %s22, 0
        %s355 = sadd.s32 %s354, %s352
        %s356 = smul.addr %s355, 8
        %s357 = scalar_lea.vmem %s4, %s356
        %s358 = smul.u32 32, %s21
      $region36: #{dblock_more_dilate_forward.9} parent=23 // pred_fallthru
        _
      // Predicated region
      $region37: #{dblock_more_dilate_forward.9} parent=23 // pred_check
        %p359 = pneg %p193
      $region38: #{dblock_more_dilate_forward.9} parent=23 // pred_check_branch
        %361 = sbr.rel (%p359) target = $region40
      $region39: #{dblock_more_dilate_forward.9} parent=23 // pred_region
        %s362 = smul.u32 32, %s21
        %p363 = scmp.lt.s32.totalorder %s362, 255
        %s364 = scalar_select %p363, %s362, 255
        %p365 = scmp.lt.s32.totalorder %s22, 0
        %s366 = scalar_select %p365, %s22, 0
        %s367 = sadd.s32 %s366, %s364
        %s368 = smul.addr %s367, 8
        %s369 = scalar_lea.vmem %s5, %s368
        %s370 = smul.u32 32, %s21
      $region40: #{dblock_more_dilate_forward.9} parent=23 // pred_fallthru
        _
      // Predicated region
      $region41: #{dblock_more_dilate_forward.9} parent=23 // pred_check
        %p371 = pneg %p221
      $region42: #{dblock_more_dilate_forward.9} parent=23 // pred_check_branch
        %373 = sbr.rel (%p371) target = $region44
      $region43: #{dblock_more_dilate_forward.9} parent=23 // pred_region
        %s374 = smul.u32 32, %s21
        %p375 = scmp.lt.s32.totalorder %s374, 255
        %s376 = scalar_select %p375, %s374, 255
        %p377 = scmp.lt.s32.totalorder %s22, 0
        %s378 = scalar_select %p377, %s22, 0
        %s379 = sadd.s32 %s378, %s376
        %s380 = smul.addr %s379, 8
        %s381 = scalar_lea.vmem %s6, %s380
        %s382 = smul.u32 32, %s21
      $region44: #{dblock_more_dilate_forward.9} parent=23 // pred_fallthru
        _
      // Predicated region
      $region45: #{dblock_more_dilate_forward.9} parent=23 // pred_check
        %p383 = pneg %p249
      $region46: #{dblock_more_dilate_forward.9} parent=23 // pred_check_branch
        %385 = sbr.rel (%p383) target = $region48
      $region47: #{dblock_more_dilate_forward.9} parent=23 // pred_region
        %s386 = smul.u32 32, %s21
        %p387 = scmp.lt.s32.totalorder %s386, 255
        %s388 = scalar_select %p387, %s386, 255
        %p389 = scmp.lt.s32.totalorder %s22, 0
        %s390 = scalar_select %p389, %s22, 0
        %s391 = sadd.s32 %s390, %s388
        %s392 = smul.addr %s391, 8
        %s393 = scalar_lea.vmem %s7, %s392
        %s394 = smul.u32 32, %s21
      $region48: #{dblock_more_dilate_forward.9} parent=23 // pred_fallthru
        _
    $region24: #{dblock_more_dilate_forward.9} parent=5 // pred_fallthru
      _
    %p395 = scmp.le.s32.totalorder 1, %s14
    %p396 = scmp.lt.s32.totalorder %s14, 9
    %p397 = pnand %p395, %p396
    %p398 = pneg %p397
    // Predicated region
    $region49: #{dblock_more_dilate_forward.9} parent=5 // pred_check
      _
    $region50: #{dblock_more_dilate_forward.9} parent=5 // pred_check_branch
      %400 = sbr.rel (%p397) target = $region52
    $region51: #{dblock_more_dilate_forward.9} parent=5 // pred_region
      %s401 = ssub.s32 %s14, 1
      %s402 = smul.u32 32, %s24
      %s403 = smul.u32 3, %s26
      %p404 = scmp.lt.s32.totalorder %s402, 255
      %s405 = scalar_select %p404, %s402, 255
      %p406 = scmp.lt.s32.totalorder %s403, 2
      %s407 = scalar_select %p406, %s403, 2
      %s408 = smul.addr %s405, 3
      %s409 = sadd.s32 %s407, %s408
      %s410 = smul.addr %s409, 4
      %s411 = scalar_lea.vmem %s0, %s410
      %p412 = pneg %p61
      %p413 = pneg %p58
      %s414 = smul.u32 48, %s26
      %p415 = scmp.lt.s32.totalorder %s414, 47
      %s416 = scalar_select %p415, %s414, 47
      %p417 = scmp.lt.s32.totalorder %s25, 0
      %s418 = scalar_select %p417, %s25, 0
      %s419 = sadd.s32 %s418, %s416
      %s420 = smul.addr %s419, 4
      %s421 = scalar_lea.vmem %s1, %s420
      %p422 = pneg %p89
      %p423 = pneg %p86
      %p424 = scmp.lt.s32.totalorder %s25, 0
      %s425 = scalar_select %p424, %s25, 0
      %s426 = scalar_lea.vmem %s2, %s425
      %p427 = pneg %p115
      %p428 = pneg %p112
      %s429 = smul.u32 32, %s24
      %p430 = scmp.lt.s32.totalorder %s429, 255
      %s431 = scalar_select %p430, %s429, 255
      %p432 = scmp.lt.s32.totalorder %s25, 0
      %s433 = scalar_select %p432, %s25, 0
      %s434 = sadd.s32 %s433, %s431
      %s435 = smul.addr %s434, 8
      %s436 = scalar_lea.vmem %s3, %s435
      %p437 = pneg %p143
      %p438 = pneg %p140
      %s439 = smul.u32 32, %s24
      %p440 = scmp.lt.s32.totalorder %s439, 255
      %s441 = scalar_select %p440, %s439, 255
      %p442 = scmp.lt.s32.totalorder %s25, 0
      %s443 = scalar_select %p442, %s25, 0
      %s444 = sadd.s32 %s443, %s441
      %s445 = smul.addr %s444, 8
      %s446 = scalar_lea.vmem %s4, %s445
      %p447 = pneg %p171
      %p448 = pneg %p168
      %s449 = smul.u32 32, %s24
      %p450 = scmp.lt.s32.totalorder %s449, 255
      %s451 = scalar_select %p450, %s449, 255
      %p452 = scmp.lt.s32.totalorder %s25, 0
      %s453 = scalar_select %p452, %s25, 0
      %s454 = sadd.s32 %s453, %s451
      %s455 = smul.addr %s454, 8
      %s456 = scalar_lea.vmem %s5, %s455
      %p457 = pneg %p199
      %p458 = pneg %p196
      %s459 = smul.u32 32, %s24
      %p460 = scmp.lt.s32.totalorder %s459, 255
      %s461 = scalar_select %p460, %s459, 255
      %p462 = scmp.lt.s32.totalorder %s25, 0
      %s463 = scalar_select %p462, %s25, 0
      %s464 = sadd.s32 %s463, %s461
      %s465 = smul.addr %s464, 8
      %s466 = scalar_lea.vmem %s6, %s465
      %p467 = pneg %p227
      %p468 = pneg %p224
      %s469 = smul.u32 32, %s24
      %p470 = scmp.lt.s32.totalorder %s469, 255
      %s471 = scalar_select %p470, %s469, 255
      %p472 = scmp.lt.s32.totalorder %s25, 0
      %s473 = scalar_select %p472, %s25, 0
      %s474 = sadd.s32 %s473, %s471
      %s475 = smul.addr %s474, 8
      %s476 = scalar_lea.vmem %s7, %s475
      %p477 = pneg %p255
      %p478 = pneg %p252
      %p479 = pneg %p283
      %p480 = pneg %p280
      %s481 = smul.u32 32, %s24
      %p482 = scmp.lt.s32.totalorder %s481, 255
      %s483 = scalar_select %p482, %s481, 255
      %p484 = scmp.lt.s32.totalorder %s25, 0
      %s485 = scalar_select %p484, %s25, 0
      %s486 = sadd.s32 %s485, %s483
      %s487 = smul.addr %s486, 8
      %s488 = scalar_lea.vmem %s8, %s487
      %s489 = smul.u32 32, %s24
      %s490 = smul.u32 3, %s26
      %p491 = scmp.lt.s32.totalorder %s489, 255
      %s492 = scalar_select %p491, %s489, 255
      %p493 = scmp.lt.s32.totalorder %s490, 2
      %s494 = scalar_select %p493, %s490, 2
      %s495 = smul.addr %s492, 3
      %s496 = sadd.s32 %s494, %s495
      %s497 = smul.addr %s496, 4
      %s498 = scalar_lea.vmem %s0, %s497
      %s499 = smul.u32 32, %s24
      %s500 = smul.u32 3, %s26
      %s501 = smul.u32 48, %s26
      %p502 = scmp.lt.s32.totalorder %s501, 47
      %s503 = scalar_select %p502, %s501, 47
      %p504 = scmp.lt.s32.totalorder %s25, 0
      %s505 = scalar_select %p504, %s25, 0
      %s506 = sadd.s32 %s505, %s503
      %s507 = smul.addr %s506, 4
      %s508 = scalar_lea.vmem %s1, %s507
      %s509 = smul.u32 48, %s26
      %p510 = scmp.lt.s32.totalorder %s25, 0
      %s511 = scalar_select %p510, %s25, 0
      %s512 = scalar_lea.vmem %s2, %s511
      %s513 = smul.u32 32, %s24
      %p514 = scmp.lt.s32.totalorder %s513, 255
      %s515 = scalar_select %p514, %s513, 255
      %p516 = scmp.lt.s32.totalorder %s25, 0
      %s517 = scalar_select %p516, %s25, 0
      %s518 = sadd.s32 %s517, %s515
      %s519 = smul.addr %s518, 8
      %s520 = scalar_lea.vmem %s3, %s519
      %s521 = smul.u32 32, %s24
      %s522 = smul.u32 32, %s24
      %p523 = scmp.lt.s32.totalorder %s522, 255
      %s524 = scalar_select %p523, %s522, 255
      %p525 = scmp.lt.s32.totalorder %s25, 0
      %s526 = scalar_select %p525, %s25, 0
      %s527 = sadd.s32 %s526, %s524
      %s528 = smul.addr %s527, 8
      %s529 = scalar_lea.vmem %s4, %s528
      %s530 = smul.u32 32, %s24
      %s531 = smul.u32 32, %s24
      %p532 = scmp.lt.s32.totalorder %s531, 255
      %s533 = scalar_select %p532, %s531, 255
      %p534 = scmp.lt.s32.totalorder %s25, 0
      %s535 = scalar_select %p534, %s25, 0
      %s536 = sadd.s32 %s535, %s533
      %s537 = smul.addr %s536, 8
      %s538 = scalar_lea.vmem %s5, %s537
      %s539 = smul.u32 32, %s24
      %s540 = smul.u32 32, %s24
      %p541 = scmp.lt.s32.totalorder %s540, 255
      %s542 = scalar_select %p541, %s540, 255
      %p543 = scmp.lt.s32.totalorder %s25, 0
      %s544 = scalar_select %p543, %s25, 0
      %s545 = sadd.s32 %s544, %s542
      %s546 = smul.addr %s545, 8
      %s547 = scalar_lea.vmem %s6, %s546
      %s548 = smul.u32 32, %s24
      %s549 = smul.u32 32, %s24
      %p550 = scmp.lt.s32.totalorder %s549, 255
      %s551 = scalar_select %p550, %s549, 255
      %p552 = scmp.lt.s32.totalorder %s25, 0
      %s553 = scalar_select %p552, %s25, 0
      %s554 = sadd.s32 %s553, %s551
      %s555 = smul.addr %s554, 8
      %s556 = scalar_lea.vmem %s7, %s555
      %s557 = smul.u32 32, %s24
      %s558 = smul.u32 32, %s24
      %p559 = scmp.lt.s32.totalorder %s558, 255
      %s560 = scalar_select %p559, %s558, 255
      %p561 = scmp.lt.s32.totalorder %s25, 0
      %s562 = scalar_select %p561, %s25, 0
      %s563 = sadd.s32 %s562, %s560
      %s564 = smul.addr %s563, 8
      %s565 = scalar_lea.vmem %s8, %s564
      %s566 = smul.u32 32, %s24
      %p568 = scmp.eq.s32.totalorder %s26, 0
      // Predicated region
      $region53: #{dblock_more_dilate_forward.9} parent=51 // pred_check
        %p569 = pneg %p568
      $region54: #{dblock_more_dilate_forward.9} parent=51 // pred_check_branch
        %571 = sbr.rel (%p569) target = $region56
      $region55: #{dblock_more_dilate_forward.9} parent=51 // pred_region
        %572 = vst [vmem:[#allocation2] sm:$0xff] 0.0
        %573 = vst [vmem:[#allocation2 + $0x8] sm:$0xff] 0.0
        %574 = vst [vmem:[#allocation2 + $0x10] sm:$0xff] 0.0
        %575 = vst [vmem:[#allocation2 + $0x18] sm:$0xff] 0.0
        %576 = vst [vmem:[#allocation2 + $0x20] sm:$0xff] 0.0
        %577 = vst [vmem:[#allocation2 + $0x28] sm:$0xff] 0.0
        %578 = vst [vmem:[#allocation2 + $0x30] sm:$0xff] 0.0
        %579 = vst [vmem:[#allocation2 + $0x38] sm:$0xff] 0.0
        %580 = vst [vmem:[#allocation2 + $0x40] sm:$0xff] 0.0
        %581 = vst [vmem:[#allocation2 + $0x48] sm:$0xff] 0.0
        %582 = vst [vmem:[#allocation2 + $0x50] sm:$0xff] 0.0
        %583 = vst [vmem:[#allocation2 + $0x58] sm:$0xff] 0.0
        %584 = vst [vmem:[#allocation2 + $0x60] sm:$0xff] 0.0
        %585 = vst [vmem:[#allocation2 + $0x68] sm:$0xff] 0.0
        %586 = vst [vmem:[#allocation2 + $0x70] sm:$0xff] 0.0
        %587 = vst [vmem:[#allocation2 + $0x78] sm:$0xff] 0.0
        %588 = vst [vmem:[#allocation2 + $0x80] sm:$0xff] 0.0
        %589 = vst [vmem:[#allocation2 + $0x88] sm:$0xff] 0.0
        %590 = vst [vmem:[#allocation2 + $0x90] sm:$0xff] 0.0
        %591 = vst [vmem:[#allocation2 + $0x98] sm:$0xff] 0.0
        %592 = vst [vmem:[#allocation2 + $0xa0] sm:$0xff] 0.0
        %593 = vst [vmem:[#allocation2 + $0xa8] sm:$0xff] 0.0
        %594 = vst [vmem:[#allocation2 + $0xb0] sm:$0xff] 0.0
        %595 = vst [vmem:[#allocation2 + $0xb8] sm:$0xff] 0.0
        %596 = vst [vmem:[#allocation2 + $0xc0] sm:$0xff] 0.0
        %597 = vst [vmem:[#allocation2 + $0xc8] sm:$0xff] 0.0
        %598 = vst [vmem:[#allocation2 + $0xd0] sm:$0xff] 0.0
        %599 = vst [vmem:[#allocation2 + $0xd8] sm:$0xff] 0.0
        %600 = vst [vmem:[#allocation2 + $0xe0] sm:$0xff] 0.0
        %601 = vst [vmem:[#allocation2 + $0xe8] sm:$0xff] 0.0
        %602 = vst [vmem:[#allocation2 + $0xf0] sm:$0xff] 0.0
        %603 = vst [vmem:[#allocation2 + $0xf8] sm:$0xff] 0.0
      $region56: #{dblock_more_dilate_forward.9} parent=51 // pred_fallthru
        _
      %v604 = vld [vmem:[#allocation2] sm:$0xff]
      %v605 = vld [vmem:[#allocation2 + $0x8] sm:$0xff]
      %v606 = vld [vmem:[#allocation2 + $0x10] sm:$0xff]
      %v607 = vld [vmem:[#allocation2 + $0x18] sm:$0xff]
      %v608 = vld [vmem:[#allocation2 + $0x20] sm:$0xff]
      %v609 = vld [vmem:[#allocation2 + $0x28] sm:$0xff]
      %v610 = vld [vmem:[#allocation2 + $0x30] sm:$0xff]
      %v611 = vld [vmem:[#allocation2 + $0x38] sm:$0xff]
      %v612 = vld [vmem:[#allocation2 + $0x40] sm:$0xff]
      %v613 = vld [vmem:[#allocation2 + $0x48] sm:$0xff]
      %v614 = vld [vmem:[#allocation2 + $0x50] sm:$0xff]
      %v615 = vld [vmem:[#allocation2 + $0x58] sm:$0xff]
      %v616 = vld [vmem:[#allocation2 + $0x60] sm:$0xff]
      %v617 = vld [vmem:[#allocation2 + $0x68] sm:$0xff]
      %v618 = vld [vmem:[#allocation2 + $0x70] sm:$0xff]
      %v619 = vld [vmem:[#allocation2 + $0x78] sm:$0xff]
      %v620 = vld [vmem:[#allocation2 + $0x80] sm:$0xff]
      %v621 = vld [vmem:[#allocation2 + $0x88] sm:$0xff]
      %v622 = vld [vmem:[#allocation2 + $0x90] sm:$0xff]
      %v623 = vld [vmem:[#allocation2 + $0x98] sm:$0xff]
      %v624 = vld [vmem:[#allocation2 + $0xa0] sm:$0xff]
      %v625 = vld [vmem:[#allocation2 + $0xa8] sm:$0xff]
      %v626 = vld [vmem:[#allocation2 + $0xb0] sm:$0xff]
      %v627 = vld [vmem:[#allocation2 + $0xb8] sm:$0xff]
      %v628 = vld [vmem:[#allocation2 + $0xc0] sm:$0xff]
      %v629 = vld [vmem:[#allocation2 + $0xc8] sm:$0xff]
      %v630 = vld [vmem:[#allocation2 + $0xd0] sm:$0xff]
      %v631 = vld [vmem:[#allocation2 + $0xd8] sm:$0xff]
      %v632 = vld [vmem:[#allocation2 + $0xe0] sm:$0xff]
      %v633 = vld [vmem:[#allocation2 + $0xe8] sm:$0xff]
      %v634 = vld [vmem:[#allocation2 + $0xf0] sm:$0xff]
      %v635 = vld [vmem:[#allocation2 + $0xf8] sm:$0xff]
      %v636 = vld [vmem:[%s498] sm:$0xff]
      %v637 = vld [vmem:[%s498 + $0x8] sm:$0xf]
      %v638 = vld [vmem:[%s498 + $0xc] sm:$0xff]
      %v639 = vld [vmem:[%s498 + $0x14] sm:$0xf]
      %v640 = vld [vmem:[%s498 + $0x18] sm:$0xff]
      %v641 = vld [vmem:[%s498 + $0x20] sm:$0xf]
      %v642 = vld [vmem:[%s498 + $0x24] sm:$0xff]
      %v643 = vld [vmem:[%s498 + $0x2c] sm:$0xf]
      %v644 = vld [vmem:[%s498 + $0x30] sm:$0xff]
      %v645 = vld [vmem:[%s498 + $0x38] sm:$0xf]
      %v646 = vld [vmem:[%s498 + $0x3c] sm:$0xff]
      %v647 = vld [vmem:[%s498 + $0x44] sm:$0xf]
      %v648 = vld [vmem:[%s498 + $0x48] sm:$0xff]
      %v649 = vld [vmem:[%s498 + $0x50] sm:$0xf]
      %v650 = vld [vmem:[%s498 + $0x54] sm:$0xff]
      %v651 = vld [vmem:[%s498 + $0x5c] sm:$0xf]
      %v652 = vld [vmem:[%s498 + $0x60] sm:$0xff]
      %v653 = vld [vmem:[%s498 + $0x68] sm:$0xf]
      %v654 = vld [vmem:[%s498 + $0x6c] sm:$0xff]
      %v655 = vld [vmem:[%s498 + $0x74] sm:$0xf]
      %v656 = vld [vmem:[%s498 + $0x78] sm:$0xff]
      %v657 = vld [vmem:[%s498 + $0x80] sm:$0xf]
      %v658 = vld [vmem:[%s498 + $0x84] sm:$0xff]
      %v659 = vld [vmem:[%s498 + $0x8c] sm:$0xf]
      %v660 = vld [vmem:[%s498 + $0x90] sm:$0xff]
      %v661 = vld [vmem:[%s498 + $0x98] sm:$0xf]
      %v662 = vld [vmem:[%s498 + $0x9c] sm:$0xff]
      %v663 = vld [vmem:[%s498 + $0xa4] sm:$0xf]
      %v664 = vld [vmem:[%s498 + $0xa8] sm:$0xff]
      %v665 = vld [vmem:[%s498 + $0xb0] sm:$0xf]
      %v666 = vld [vmem:[%s498 + $0xb4] sm:$0xff]
      %v667 = vld [vmem:[%s498 + $0xbc] sm:$0xf]
      %v668 = vld [vmem:[%s498 + $0xc0] sm:$0xff]
      %v669 = vld [vmem:[%s498 + $0xc8] sm:$0xf]
      %v670 = vld [vmem:[%s498 + $0xcc] sm:$0xff]
      %v671 = vld [vmem:[%s498 + $0xd4] sm:$0xf]
      %v672 = vld [vmem:[%s498 + $0xd8] sm:$0xff]
      %v673 = vld [vmem:[%s498 + $0xe0] sm:$0xf]
      %v674 = vld [vmem:[%s498 + $0xe4] sm:$0xff]
      %v675 = vld [vmem:[%s498 + $0xec] sm:$0xf]
      %v676 = vld [vmem:[%s498 + $0xf0] sm:$0xff]
      %v677 = vld [vmem:[%s498 + $0xf8] sm:$0xf]
      %v678 = vld [vmem:[%s498 + $0xfc] sm:$0xff]
      %v679 = vld [vmem:[%s498 + $0x104] sm:$0xf]
      %v680 = vld [vmem:[%s498 + $0x108] sm:$0xff]
      %v681 = vld [vmem:[%s498 + $0x110] sm:$0xf]
      %v682 = vld [vmem:[%s498 + $0x114] sm:$0xff]
      %v683 = vld [vmem:[%s498 + $0x11c] sm:$0xf]
      %v684 = vld [vmem:[%s498 + $0x120] sm:$0xff]
      %v685 = vld [vmem:[%s498 + $0x128] sm:$0xf]
      %v686 = vld [vmem:[%s498 + $0x12c] sm:$0xff]
      %v687 = vld [vmem:[%s498 + $0x134] sm:$0xf]
      %v688 = vld [vmem:[%s498 + $0x138] sm:$0xff]
      %v689 = vld [vmem:[%s498 + $0x140] sm:$0xf]
      %v690 = vld [vmem:[%s498 + $0x144] sm:$0xff]
      %v691 = vld [vmem:[%s498 + $0x14c] sm:$0xf]
      %v692 = vld [vmem:[%s498 + $0x150] sm:$0xff]
      %v693 = vld [vmem:[%s498 + $0x158] sm:$0xf]
      %v694 = vld [vmem:[%s498 + $0x15c] sm:$0xff]
      %v695 = vld [vmem:[%s498 + $0x164] sm:$0xf]
      %v696 = vld [vmem:[%s498 + $0x168] sm:$0xff]
      %v697 = vld [vmem:[%s498 + $0x170] sm:$0xf]
      %v698 = vld [vmem:[%s498 + $0x174] sm:$0xff]
      %v699 = vld [vmem:[%s498 + $0x17c] sm:$0xf]
      %v700 = vld [vmem:[%s508] sm:$0xf]
      %v701 = vld [vmem:[%s508 + $0x4] sm:$0xf]
      %v702 = vld [vmem:[%s508 + $0x8] sm:$0xf]
      %v703 = vld [vmem:[%s508 + $0xc] sm:$0xf]
      %v704 = vld [vmem:[%s508 + $0x10] sm:$0xf]
      %v705 = vld [vmem:[%s508 + $0x14] sm:$0xf]
      %v706 = vld [vmem:[%s508 + $0x18] sm:$0xf]
      %v707 = vld [vmem:[%s508 + $0x1c] sm:$0xf]
      %v708 = vld [vmem:[%s508 + $0x20] sm:$0xf]
      %v709 = vld [vmem:[%s508 + $0x24] sm:$0xf]
      %v710 = vld [vmem:[%s508 + $0x28] sm:$0xf]
      %v711 = vld [vmem:[%s508 + $0x2c] sm:$0xf]
      %v712 = vld [vmem:[%s508 + $0x30] sm:$0xf]
      %v713 = vld [vmem:[%s508 + $0x34] sm:$0xf]
      %v714 = vld [vmem:[%s508 + $0x38] sm:$0xf]
      %v715 = vld [vmem:[%s508 + $0x3c] sm:$0xf]
      %v716 = vld [vmem:[%s508 + $0x40] sm:$0xf]
      %v717 = vld [vmem:[%s508 + $0x44] sm:$0xf]
      %v718 = vld [vmem:[%s508 + $0x48] sm:$0xf]
      %v719 = vld [vmem:[%s508 + $0x4c] sm:$0xf]
      %v720 = vld [vmem:[%s508 + $0x50] sm:$0xf]
      %v721 = vld [vmem:[%s508 + $0x54] sm:$0xf]
      %v722 = vld [vmem:[%s508 + $0x58] sm:$0xf]
      %v723 = vld [vmem:[%s508 + $0x5c] sm:$0xf]
      %v724 = vld [vmem:[%s508 + $0x60] sm:$0xf]
      %v725 = vld [vmem:[%s508 + $0x64] sm:$0xf]
      %v726 = vld [vmem:[%s508 + $0x68] sm:$0xf]
      %v727 = vld [vmem:[%s508 + $0x6c] sm:$0xf]
      %v728 = vld [vmem:[%s508 + $0x70] sm:$0xf]
      %v729 = vld [vmem:[%s508 + $0x74] sm:$0xf]
      %v730 = vld [vmem:[%s508 + $0x78] sm:$0xf]
      %v731 = vld [vmem:[%s508 + $0x7c] sm:$0xf]
      %v732 = vld [vmem:[%s508 + $0x80] sm:$0xf]
      %v733 = vld [vmem:[%s508 + $0x84] sm:$0xf]
      %v734 = vld [vmem:[%s508 + $0x88] sm:$0xf]
      %v735 = vld [vmem:[%s508 + $0x8c] sm:$0xf]
      %v736 = vld [vmem:[%s508 + $0x90] sm:$0xf]
      %v737 = vld [vmem:[%s508 + $0x94] sm:$0xf]
      %v738 = vld [vmem:[%s508 + $0x98] sm:$0xf]
      %v739 = vld [vmem:[%s508 + $0x9c] sm:$0xf]
      %v740 = vld [vmem:[%s508 + $0xa0] sm:$0xf]
      %v741 = vld [vmem:[%s508 + $0xa4] sm:$0xf]
      %v742 = vld [vmem:[%s508 + $0xa8] sm:$0xf]
      %v743 = vld [vmem:[%s508 + $0xac] sm:$0xf]
      %v744 = vld [vmem:[%s508 + $0xb0] sm:$0xf]
      %v745 = vld [vmem:[%s508 + $0xb4] sm:$0xf]
      %v746 = vld [vmem:[%s508 + $0xb8] sm:$0xf]
      %v747 = vld [vmem:[%s508 + $0xbc] sm:$0xf]
      %v812 = vunpack.c.l.b16 %v636
      %v813 = vunpack.c.h.b16 %v636
      %v814 = vunpack.c.l.b16 %v637
      %v815 = vunpack.c.l.b16 %v638
      %v816 = vunpack.c.h.b16 %v638
      %v817 = vunpack.c.l.b16 %v639
      %v818 = vunpack.c.l.b16 %v640
      %v819 = vunpack.c.h.b16 %v640
      %v820 = vunpack.c.l.b16 %v641
      %v821 = vunpack.c.l.b16 %v642
      %v822 = vunpack.c.h.b16 %v642
      %v823 = vunpack.c.l.b16 %v643
      %v824 = vunpack.c.l.b16 %v644
      %v825 = vunpack.c.h.b16 %v644
      %v826 = vunpack.c.l.b16 %v645
      %v827 = vunpack.c.l.b16 %v646
      %v828 = vunpack.c.h.b16 %v646
      %v829 = vunpack.c.l.b16 %v647
      %v830 = vunpack.c.l.b16 %v648
      %v831 = vunpack.c.h.b16 %v648
      %v832 = vunpack.c.l.b16 %v649
      %v833 = vunpack.c.l.b16 %v650
      %v834 = vunpack.c.h.b16 %v650
      %v835 = vunpack.c.l.b16 %v651
      %v836 = vunpack.c.l.b16 %v652
      %v837 = vunpack.c.h.b16 %v652
      %v838 = vunpack.c.l.b16 %v653
      %v839 = vunpack.c.l.b16 %v654
      %v840 = vunpack.c.h.b16 %v654
      %v841 = vunpack.c.l.b16 %v655
      %v842 = vunpack.c.l.b16 %v656
      %v843 = vunpack.c.h.b16 %v656
      %v844 = vunpack.c.l.b16 %v657
      %v845 = vunpack.c.l.b16 %v658
      %v846 = vunpack.c.h.b16 %v658
      %v847 = vunpack.c.l.b16 %v659
      %v848 = vunpack.c.l.b16 %v660
      %v849 = vunpack.c.h.b16 %v660
      %v850 = vunpack.c.l.b16 %v661
      %v851 = vunpack.c.l.b16 %v662
      %v852 = vunpack.c.h.b16 %v662
      %v853 = vunpack.c.l.b16 %v663
      %v854 = vunpack.c.l.b16 %v664
      %v855 = vunpack.c.h.b16 %v664
      %v856 = vunpack.c.l.b16 %v665
      %v857 = vunpack.c.l.b16 %v666
      %v858 = vunpack.c.h.b16 %v666
      %v859 = vunpack.c.l.b16 %v667
      %v860 = vunpack.c.l.b16 %v668
      %v861 = vunpack.c.h.b16 %v668
      %v862 = vunpack.c.l.b16 %v669
      %v863 = vunpack.c.l.b16 %v670
      %v864 = vunpack.c.h.b16 %v670
      %v865 = vunpack.c.l.b16 %v671
      %v866 = vunpack.c.l.b16 %v672
      %v867 = vunpack.c.h.b16 %v672
      %v868 = vunpack.c.l.b16 %v673
      %v869 = vunpack.c.l.b16 %v674
      %v870 = vunpack.c.h.b16 %v674
      %v871 = vunpack.c.l.b16 %v675
      %v872 = vunpack.c.l.b16 %v676
      %v873 = vunpack.c.h.b16 %v676
      %v874 = vunpack.c.l.b16 %v677
      %v875 = vunpack.c.l.b16 %v678
      %v876 = vunpack.c.h.b16 %v678
      %v877 = vunpack.c.l.b16 %v679
      %v878 = vunpack.c.l.b16 %v680
      %v879 = vunpack.c.h.b16 %v680
      %v880 = vunpack.c.l.b16 %v681
      %v881 = vunpack.c.l.b16 %v682
      %v882 = vunpack.c.h.b16 %v682
      %v883 = vunpack.c.l.b16 %v683
      %v884 = vunpack.c.l.b16 %v684
      %v885 = vunpack.c.h.b16 %v684
      %v886 = vunpack.c.l.b16 %v685
      %v887 = vunpack.c.l.b16 %v686
      %v888 = vunpack.c.h.b16 %v686
      %v889 = vunpack.c.l.b16 %v687
      %v890 = vunpack.c.l.b16 %v688
      %v891 = vunpack.c.h.b16 %v688
      %v892 = vunpack.c.l.b16 %v689
      %v893 = vunpack.c.l.b16 %v690
      %v894 = vunpack.c.h.b16 %v690
      %v895 = vunpack.c.l.b16 %v691
      %v896 = vunpack.c.l.b16 %v692
      %v897 = vunpack.c.h.b16 %v692
      %v898 = vunpack.c.l.b16 %v693
      %v899 = vunpack.c.l.b16 %v694
      %v900 = vunpack.c.h.b16 %v694
      %v901 = vunpack.c.l.b16 %v695
      %v902 = vunpack.c.l.b16 %v696
      %v903 = vunpack.c.h.b16 %v696
      %v904 = vunpack.c.l.b16 %v697
      %v905 = vunpack.c.l.b16 %v698
      %v906 = vunpack.c.h.b16 %v698
      %v907 = vunpack.c.l.b16 %v699
      %v908 = vpack.c.b16 %v815, %v812
      %v909 = vpack.c.b16 %v816, %v813
      %v910 = vpack.c.b16 %v817, %v814
      %v911 = vpack.c.b16 %v821, %v818
      %v912 = vpack.c.b16 %v822, %v819
      %v913 = vpack.c.b16 %v823, %v820
      %v914 = vpack.c.b16 %v827, %v824
      %v915 = vpack.c.b16 %v828, %v825
      %v916 = vpack.c.b16 %v829, %v826
      %v917 = vpack.c.b16 %v833, %v830
      %v918 = vpack.c.b16 %v834, %v831
      %v919 = vpack.c.b16 %v835, %v832
      %v920 = vpack.c.b16 %v839, %v836
      %v921 = vpack.c.b16 %v840, %v837
      %v922 = vpack.c.b16 %v841, %v838
      %v923 = vpack.c.b16 %v845, %v842
      %v924 = vpack.c.b16 %v846, %v843
      %v925 = vpack.c.b16 %v847, %v844
      %v926 = vpack.c.b16 %v851, %v848
      %v927 = vpack.c.b16 %v852, %v849
      %v928 = vpack.c.b16 %v853, %v850
      %v929 = vpack.c.b16 %v857, %v854
      %v930 = vpack.c.b16 %v858, %v855
      %v931 = vpack.c.b16 %v859, %v856
      %v932 = vpack.c.b16 %v863, %v860
      %v933 = vpack.c.b16 %v864, %v861
      %v934 = vpack.c.b16 %v865, %v862
      %v935 = vpack.c.b16 %v869, %v866
      %v936 = vpack.c.b16 %v870, %v867
      %v937 = vpack.c.b16 %v871, %v868
      %v938 = vpack.c.b16 %v875, %v872
      %v939 = vpack.c.b16 %v876, %v873
      %v940 = vpack.c.b16 %v877, %v874
      %v941 = vpack.c.b16 %v881, %v878
      %v942 = vpack.c.b16 %v882, %v879
      %v943 = vpack.c.b16 %v883, %v880
      %v944 = vpack.c.b16 %v887, %v884
      %v945 = vpack.c.b16 %v888, %v885
      %v946 = vpack.c.b16 %v889, %v886
      %v947 = vpack.c.b16 %v893, %v890
      %v948 = vpack.c.b16 %v894, %v891
      %v949 = vpack.c.b16 %v895, %v892
      %v950 = vpack.c.b16 %v899, %v896
      %v951 = vpack.c.b16 %v900, %v897
      %v952 = vpack.c.b16 %v901, %v898
      %v953 = vpack.c.b16 %v905, %v902
      %v954 = vpack.c.b16 %v906, %v903
      %v955 = vpack.c.b16 %v907, %v904
      %v1052 = vunpack.c.l.b16 %v700
      %v1053 = vunpack.c.l.b16 %v701
      %v1054 = vunpack.c.l.b16 %v702
      %v1055 = vunpack.c.l.b16 %v703
      %v1056 = vunpack.c.l.b16 %v704
      %v1057 = vunpack.c.l.b16 %v705
      %v1058 = vunpack.c.l.b16 %v706
      %v1059 = vunpack.c.l.b16 %v707
      %v1060 = vunpack.c.l.b16 %v708
      %v1061 = vunpack.c.l.b16 %v709
      %v1062 = vunpack.c.l.b16 %v710
      %v1063 = vunpack.c.l.b16 %v711
      %v1064 = vunpack.c.l.b16 %v712
      %v1065 = vunpack.c.l.b16 %v713
      %v1066 = vunpack.c.l.b16 %v714
      %v1067 = vunpack.c.l.b16 %v715
      %v1068 = vunpack.c.l.b16 %v716
      %v1069 = vunpack.c.l.b16 %v717
      %v1070 = vunpack.c.l.b16 %v718
      %v1071 = vunpack.c.l.b16 %v719
      %v1072 = vunpack.c.l.b16 %v720
      %v1073 = vunpack.c.l.b16 %v721
      %v1074 = vunpack.c.l.b16 %v722
      %v1075 = vunpack.c.l.b16 %v723
      %v1076 = vunpack.c.l.b16 %v724
      %v1077 = vunpack.c.l.b16 %v725
      %v1078 = vunpack.c.l.b16 %v726
      %v1079 = vunpack.c.l.b16 %v727
      %v1080 = vunpack.c.l.b16 %v728
      %v1081 = vunpack.c.l.b16 %v729
      %v1082 = vunpack.c.l.b16 %v730
      %v1083 = vunpack.c.l.b16 %v731
      %v1084 = vunpack.c.l.b16 %v732
      %v1085 = vunpack.c.l.b16 %v733
      %v1086 = vunpack.c.l.b16 %v734
      %v1087 = vunpack.c.l.b16 %v735
      %v1088 = vunpack.c.l.b16 %v736
      %v1089 = vunpack.c.l.b16 %v737
      %v1090 = vunpack.c.l.b16 %v738
      %v1091 = vunpack.c.l.b16 %v739
      %v1092 = vunpack.c.l.b16 %v740
      %v1093 = vunpack.c.l.b16 %v741
      %v1094 = vunpack.c.l.b16 %v742
      %v1095 = vunpack.c.l.b16 %v743
      %v1096 = vunpack.c.l.b16 %v744
      %v1097 = vunpack.c.l.b16 %v745
      %v1098 = vunpack.c.l.b16 %v746
      %v1099 = vunpack.c.l.b16 %v747
      %v1100 = vpack.c.b16 %v1053, %v1052
      %v1101 = vpack.c.b16 %v1055, %v1054
      %v1102 = vpack.c.b16 %v1057, %v1056
      %v1103 = vpack.c.b16 %v1059, %v1058
      %v1104 = vpack.c.b16 %v1061, %v1060
      %v1105 = vpack.c.b16 %v1063, %v1062
      %v1106 = vpack.c.b16 %v1065, %v1064
      %v1107 = vpack.c.b16 %v1067, %v1066
      %v1108 = vpack.c.b16 %v1069, %v1068
      %v1109 = vpack.c.b16 %v1071, %v1070
      %v1110 = vpack.c.b16 %v1073, %v1072
      %v1111 = vpack.c.b16 %v1075, %v1074
      %v1112 = vpack.c.b16 %v1077, %v1076
      %v1113 = vpack.c.b16 %v1079, %v1078
      %v1114 = vpack.c.b16 %v1081, %v1080
      %v1115 = vpack.c.b16 %v1083, %v1082
      %v1116 = vpack.c.b16 %v1085, %v1084
      %v1117 = vpack.c.b16 %v1087, %v1086
      %v1118 = vpack.c.b16 %v1089, %v1088
      %v1119 = vpack.c.b16 %v1091, %v1090
      %v1120 = vpack.c.b16 %v1093, %v1092
      %v1121 = vpack.c.b16 %v1095, %v1094
      %v1122 = vpack.c.b16 %v1097, %v1096
      %v1123 = vpack.c.b16 %v1099, %v1098
      %1148 = vmatprep.subr.bf16.mxu0 0
      %1149 = vmatpush1.bf16.msra.mxu0 %v1107
      %1150 = vmatprep.subr.bf16.mxu0 0
      %1151 = vmatpush1.bf16.msra.mxu0 %v1106
      %1152 = vmatprep.subr.bf16.mxu0 0
      %1153 = vmatpush1.bf16.msra.mxu0 %v1105
      %1154 = vmatprep.subr.bf16.mxu0 0
      %1155 = vmatpush1.bf16.msra.mxu0 %v1104
      %1156 = vmatprep.subr.bf16.mxu0 0
      %1157 = vmatpush1.bf16.msra.mxu0 %v1103
      %1158 = vmatprep.subr.bf16.mxu0 0
      %1159 = vmatpush1.bf16.msra.mxu0 %v1102
      %1160 = vmatprep.subr.bf16.mxu0 0
      %1161 = vmatpush1.bf16.msra.mxu0 %v1101
      %1162 = vmatprep.subr.bf16.mxu0 0
      %1163 = vmatpush1.bf16.msra.mxu0 %v1100
      %1164 = vmatprep.subr.bf16.mxu0 0
      %1165 = vmatpush2.bf16.msra.mxu0 %v1115
      %1166 = vmatprep.subr.bf16.mxu0 0
      %1167 = vmatpush2.bf16.msra.mxu0 %v1114
      %1168 = vmatprep.subr.bf16.mxu0 0
      %1169 = vmatpush2.bf16.msra.mxu0 %v1113
      %1170 = vmatprep.subr.bf16.mxu0 0
      %1171 = vmatpush2.bf16.msra.mxu0 %v1112
      %1172 = vmatprep.subr.bf16.mxu0 0
      %1173 = vmatpush2.bf16.msra.mxu0 %v1111
      %1174 = vmatprep.subr.bf16.mxu0 0
      %1175 = vmatpush2.bf16.msra.mxu0 %v1110
      %1176 = vmatprep.subr.bf16.mxu0 0
      %1177 = vmatpush2.bf16.msra.mxu0 %v1109
      %1178 = vmatprep.subr.bf16.mxu0 0
      %1179 = vmatpush2.bf16.msra.mxu0 %v1108
      %1180 = vmatprep.mubr.bf16.mxu0 %v909
      %1181 = vmatmul.mubr.bf16.gmra.mxu0 %v908
      %v1182 = vpop.f32.mrf.mxu0
      %v1183 = vadd.f32 0.0, %v1182
      %v1184 = vpop.f32.mrf.mxu0
      %v1185 = vpop.f32.mrf.mxu0
      %v1186 = vadd.f32 0.0, %v1185
      %v1187 = vpop.f32.mrf.mxu0
      %1188 = vmatprep.mubr.bf16.mxu0 %v912
      %1189 = vmatmul.mubr.bf16.gmra.mxu0 %v911
      %v1190 = vpop.f32.mrf.mxu0
      %v1191 = vadd.f32 0.0, %v1190
      %v1192 = vpop.f32.mrf.mxu0
      %v1193 = vpop.f32.mrf.mxu0
      %v1194 = vadd.f32 0.0, %v1193
      %v1195 = vpop.f32.mrf.mxu0
      %1196 = vmatprep.mubr.bf16.mxu0 %v915
      %1197 = vmatmul.mubr.bf16.gmra.mxu0 %v914
      %v1198 = vpop.f32.mrf.mxu0
      %v1199 = vadd.f32 0.0, %v1198
      %v1200 = vpop.f32.mrf.mxu0
      %v1201 = vpop.f32.mrf.mxu0
      %v1202 = vadd.f32 0.0, %v1201
      %v1203 = vpop.f32.mrf.mxu0
      %1204 = vmatprep.mubr.bf16.mxu0 %v918
      %1205 = vmatmul.mubr.bf16.gmra.mxu0 %v917
      %v1206 = vpop.f32.mrf.mxu0
      %v1207 = vadd.f32 0.0, %v1206
      %v1208 = vpop.f32.mrf.mxu0
      %v1209 = vpop.f32.mrf.mxu0
      %v1210 = vadd.f32 0.0, %v1209
      %v1211 = vpop.f32.mrf.mxu0
      %1212 = vmatprep.mubr.bf16.mxu0 %v921
      %1213 = vmatmul.mubr.bf16.gmra.mxu0 %v920
      %v1214 = vpop.f32.mrf.mxu0
      %v1215 = vadd.f32 0.0, %v1214
      %v1216 = vpop.f32.mrf.mxu0
      %v1217 = vpop.f32.mrf.mxu0
      %v1218 = vadd.f32 0.0, %v1217
      %v1219 = vpop.f32.mrf.mxu0
      %1220 = vmatprep.mubr.bf16.mxu0 %v924
      %1221 = vmatmul.mubr.bf16.gmra.mxu0 %v923
      %v1222 = vpop.f32.mrf.mxu0
      %v1223 = vadd.f32 0.0, %v1222
      %v1224 = vpop.f32.mrf.mxu0
      %v1225 = vpop.f32.mrf.mxu0
      %v1226 = vadd.f32 0.0, %v1225
      %v1227 = vpop.f32.mrf.mxu0
      %1228 = vmatprep.mubr.bf16.mxu0 %v927
      %1229 = vmatmul.mubr.bf16.gmra.mxu0 %v926
      %v1230 = vpop.f32.mrf.mxu0
      %v1231 = vadd.f32 0.0, %v1230
      %v1232 = vpop.f32.mrf.mxu0
      %v1233 = vpop.f32.mrf.mxu0
      %v1234 = vadd.f32 0.0, %v1233
      %v1235 = vpop.f32.mrf.mxu0
      %1236 = vmatprep.mubr.bf16.mxu0 %v930
      %1237 = vmatmul.mubr.bf16.gmra.mxu0 %v929
      %v1238 = vpop.f32.mrf.mxu0
      %v1239 = vadd.f32 0.0, %v1238
      %v1240 = vpop.f32.mrf.mxu0
      %v1241 = vpop.f32.mrf.mxu0
      %v1242 = vadd.f32 0.0, %v1241
      %v1243 = vpop.f32.mrf.mxu0
      %1244 = vmatprep.mubr.bf16.mxu0 %v933
      %1245 = vmatmul.mubr.bf16.gmra.mxu0 %v932
      %v1246 = vpop.f32.mrf.mxu0
      %v1247 = vadd.f32 0.0, %v1246
      %v1248 = vpop.f32.mrf.mxu0
      %v1249 = vpop.f32.mrf.mxu0
      %v1250 = vadd.f32 0.0, %v1249
      %v1251 = vpop.f32.mrf.mxu0
      %1252 = vmatprep.mubr.bf16.mxu0 %v936
      %1253 = vmatmul.mubr.bf16.gmra.mxu0 %v935
      %v1254 = vpop.f32.mrf.mxu0
      %v1255 = vadd.f32 0.0, %v1254
      %v1256 = vpop.f32.mrf.mxu0
      %v1257 = vpop.f32.mrf.mxu0
      %v1258 = vadd.f32 0.0, %v1257
      %v1259 = vpop.f32.mrf.mxu0
      %1260 = vmatprep.mubr.bf16.mxu0 %v939
      %1261 = vmatmul.mubr.bf16.gmra.mxu0 %v938
      %v1262 = vpop.f32.mrf.mxu0
      %v1263 = vadd.f32 0.0, %v1262
      %v1264 = vpop.f32.mrf.mxu0
      %v1265 = vpop.f32.mrf.mxu0
      %v1266 = vadd.f32 0.0, %v1265
      %v1267 = vpop.f32.mrf.mxu0
      %1268 = vmatprep.mubr.bf16.mxu0 %v942
      %1269 = vmatmul.mubr.bf16.gmra.mxu0 %v941
      %v1270 = vpop.f32.mrf.mxu0
      %v1271 = vadd.f32 0.0, %v1270
      %v1272 = vpop.f32.mrf.mxu0
      %v1273 = vpop.f32.mrf.mxu0
      %v1274 = vadd.f32 0.0, %v1273
      %v1275 = vpop.f32.mrf.mxu0
      %1276 = vmatprep.mubr.bf16.mxu0 %v945
      %1277 = vmatmul.mubr.bf16.gmra.mxu0 %v944
      %v1278 = vpop.f32.mrf.mxu0
      %v1279 = vadd.f32 0.0, %v1278
      %v1280 = vpop.f32.mrf.mxu0
      %v1281 = vpop.f32.mrf.mxu0
      %v1282 = vadd.f32 0.0, %v1281
      %v1283 = vpop.f32.mrf.mxu0
      %1284 = vmatprep.mubr.bf16.mxu0 %v948
      %1285 = vmatmul.mubr.bf16.gmra.mxu0 %v947
      %v1286 = vpop.f32.mrf.mxu0
      %v1287 = vadd.f32 0.0, %v1286
      %v1288 = vpop.f32.mrf.mxu0
      %v1289 = vpop.f32.mrf.mxu0
      %v1290 = vadd.f32 0.0, %v1289
      %v1291 = vpop.f32.mrf.mxu0
      %1292 = vmatprep.mubr.bf16.mxu0 %v951
      %1293 = vmatmul.mubr.bf16.gmra.mxu0 %v950
      %v1294 = vpop.f32.mrf.mxu0
      %v1295 = vadd.f32 0.0, %v1294
      %v1296 = vpop.f32.mrf.mxu0
      %v1297 = vpop.f32.mrf.mxu0
      %v1298 = vadd.f32 0.0, %v1297
      %v1299 = vpop.f32.mrf.mxu0
      %1300 = vmatprep.mubr.bf16.mxu0 %v954
      %1301 = vmatmul.mubr.bf16.gmra.mxu0 %v953
      %v1302 = vpop.f32.mrf.mxu0
      %v1303 = vadd.f32 0.0, %v1302
      %v1304 = vpop.f32.mrf.mxu0
      %v1305 = vpop.f32.mrf.mxu0
      %v1306 = vadd.f32 0.0, %v1305
      %v1307 = vpop.f32.mrf.mxu0
      %1308 = vdwg.mxu0
      %1309 = vmatprep.subr.bf16.mxu0 0
      %1310 = vmatpush1.bf16.msra.mxu0 %v1123
      %1311 = vmatprep.subr.bf16.mxu0 0
      %1312 = vmatpush1.bf16.msra.mxu0 %v1122
      %1313 = vmatprep.subr.bf16.mxu0 0
      %1314 = vmatpush1.bf16.msra.mxu0 %v1121
      %1315 = vmatprep.subr.bf16.mxu0 0
      %1316 = vmatpush1.bf16.msra.mxu0 %v1120
      %1317 = vmatprep.subr.bf16.mxu0 0
      %1318 = vmatpush1.bf16.msra.mxu0 %v1119
      %1319 = vmatprep.subr.bf16.mxu0 0
      %1320 = vmatpush1.bf16.msra.mxu0 %v1118
      %1321 = vmatprep.subr.bf16.mxu0 0
      %1322 = vmatpush1.bf16.msra.mxu0 %v1117
      %1323 = vmatprep.subr.bf16.mxu0 0
      %1324 = vmatpush1.bf16.msra.mxu0 %v1116
      %1325 = vmatprep.subr.bf16.mxu0 0
      %1326 = vmatpush2.bf16.msra.mxu0 0
      %1327 = vmatprep.subr.bf16.mxu0 0
      %1328 = vmatpush2.bf16.msra.mxu0 0
      %1329 = vmatprep.subr.bf16.mxu0 0
      %1330 = vmatpush2.bf16.msra.mxu0 0
      %1331 = vmatprep.subr.bf16.mxu0 0
      %1332 = vmatpush2.bf16.msra.mxu0 0
      %1333 = vmatprep.subr.bf16.mxu0 0
      %1334 = vmatpush2.bf16.msra.mxu0 0
      %1335 = vmatprep.subr.bf16.mxu0 0
      %1336 = vmatpush2.bf16.msra.mxu0 0
      %1337 = vmatprep.subr.bf16.mxu0 0
      %1338 = vmatpush2.bf16.msra.mxu0 0
      %1339 = vmatprep.subr.bf16.mxu0 0
      %1340 = vmatpush2.bf16.msra.mxu0 0
      %1341 = vmatprep.mubr.bf16.mxu0 0
      %1342 = vmatmul.mubr.bf16.gmra.mxu0 %v910
      %v1343 = vpop.f32.mrf.mxu0
      %v1344 = vadd.f32 %v1183, %v1343
      %v1345 = vpop.f32.mrf.mxu0
      %v1346 = vpop.f32.mrf.mxu0
      %v1347 = vadd.f32 %v1186, %v1346
      %v1348 = vpop.f32.mrf.mxu0
      %1349 = vmatprep.mubr.bf16.mxu0 0
      %1350 = vmatmul.mubr.bf16.gmra.mxu0 %v913
      %v1351 = vpop.f32.mrf.mxu0
      %v1352 = vadd.f32 %v1191, %v1351
      %v1353 = vpop.f32.mrf.mxu0
      %v1354 = vpop.f32.mrf.mxu0
      %v1355 = vadd.f32 %v1194, %v1354
      %v1356 = vpop.f32.mrf.mxu0
      %1357 = vmatprep.mubr.bf16.mxu0 0
      %1358 = vmatmul.mubr.bf16.gmra.mxu0 %v916
      %v1359 = vpop.f32.mrf.mxu0
      %v1360 = vadd.f32 %v1199, %v1359
      %v1361 = vpop.f32.mrf.mxu0
      %v1362 = vpop.f32.mrf.mxu0
      %v1363 = vadd.f32 %v1202, %v1362
      %v1364 = vpop.f32.mrf.mxu0
      %1365 = vmatprep.mubr.bf16.mxu0 0
      %1366 = vmatmul.mubr.bf16.gmra.mxu0 %v919
      %v1367 = vpop.f32.mrf.mxu0
      %v1368 = vadd.f32 %v1207, %v1367
      %v1369 = vpop.f32.mrf.mxu0
      %v1370 = vpop.f32.mrf.mxu0
      %v1371 = vadd.f32 %v1210, %v1370
      %v1372 = vpop.f32.mrf.mxu0
      %1373 = vmatprep.mubr.bf16.mxu0 0
      %1374 = vmatmul.mubr.bf16.gmra.mxu0 %v922
      %v1375 = vpop.f32.mrf.mxu0
      %v1376 = vadd.f32 %v1215, %v1375
      %v1377 = vpop.f32.mrf.mxu0
      %v1378 = vpop.f32.mrf.mxu0
      %v1379 = vadd.f32 %v1218, %v1378
      %v1380 = vpop.f32.mrf.mxu0
      %1381 = vmatprep.mubr.bf16.mxu0 0
      %1382 = vmatmul.mubr.bf16.gmra.mxu0 %v925
      %v1383 = vpop.f32.mrf.mxu0
      %v1384 = vadd.f32 %v1223, %v1383
      %v1385 = vpop.f32.mrf.mxu0
      %v1386 = vpop.f32.mrf.mxu0
      %v1387 = vadd.f32 %v1226, %v1386
      %v1388 = vpop.f32.mrf.mxu0
      %1389 = vmatprep.mubr.bf16.mxu0 0
      %1390 = vmatmul.mubr.bf16.gmra.mxu0 %v928
      %v1391 = vpop.f32.mrf.mxu0
      %v1392 = vadd.f32 %v1231, %v1391
      %v1393 = vpop.f32.mrf.mxu0
      %v1394 = vpop.f32.mrf.mxu0
      %v1395 = vadd.f32 %v1234, %v1394
      %v1396 = vpop.f32.mrf.mxu0
      %1397 = vmatprep.mubr.bf16.mxu0 0
      %1398 = vmatmul.mubr.bf16.gmra.mxu0 %v931
      %v1399 = vpop.f32.mrf.mxu0
      %v1400 = vadd.f32 %v1239, %v1399
      %v1401 = vpop.f32.mrf.mxu0
      %v1402 = vpop.f32.mrf.mxu0
      %v1403 = vadd.f32 %v1242, %v1402
      %v1404 = vpop.f32.mrf.mxu0
      %1405 = vmatprep.mubr.bf16.mxu0 0
      %1406 = vmatmul.mubr.bf16.gmra.mxu0 %v934
      %v1407 = vpop.f32.mrf.mxu0
      %v1408 = vadd.f32 %v1247, %v1407
      %v1409 = vpop.f32.mrf.mxu0
      %v1410 = vpop.f32.mrf.mxu0
      %v1411 = vadd.f32 %v1250, %v1410
      %v1412 = vpop.f32.mrf.mxu0
      %1413 = vmatprep.mubr.bf16.mxu0 0
      %1414 = vmatmul.mubr.bf16.gmra.mxu0 %v937
      %v1415 = vpop.f32.mrf.mxu0
      %v1416 = vadd.f32 %v1255, %v1415
      %v1417 = vpop.f32.mrf.mxu0
      %v1418 = vpop.f32.mrf.mxu0
      %v1419 = vadd.f32 %v1258, %v1418
      %v1420 = vpop.f32.mrf.mxu0
      %1421 = vmatprep.mubr.bf16.mxu0 0
      %1422 = vmatmul.mubr.bf16.gmra.mxu0 %v940
      %v1423 = vpop.f32.mrf.mxu0
      %v1424 = vadd.f32 %v1263, %v1423
      %v1425 = vpop.f32.mrf.mxu0
      %v1426 = vpop.f32.mrf.mxu0
      %v1427 = vadd.f32 %v1266, %v1426
      %v1428 = vpop.f32.mrf.mxu0
      %1429 = vmatprep.mubr.bf16.mxu0 0
      %1430 = vmatmul.mubr.bf16.gmra.mxu0 %v943
      %v1431 = vpop.f32.mrf.mxu0
      %v1432 = vadd.f32 %v1271, %v1431
      %v1433 = vpop.f32.mrf.mxu0
      %v1434 = vpop.f32.mrf.mxu0
      %v1435 = vadd.f32 %v1274, %v1434
      %v1436 = vpop.f32.mrf.mxu0
      %1437 = vmatprep.mubr.bf16.mxu0 0
      %1438 = vmatmul.mubr.bf16.gmra.mxu0 %v946
      %v1439 = vpop.f32.mrf.mxu0
      %v1440 = vadd.f32 %v1279, %v1439
      %v1441 = vpop.f32.mrf.mxu0
      %v1442 = vpop.f32.mrf.mxu0
      %v1443 = vadd.f32 %v1282, %v1442
      %v1444 = vpop.f32.mrf.mxu0
      %1445 = vmatprep.mubr.bf16.mxu0 0
      %1446 = vmatmul.mubr.bf16.gmra.mxu0 %v949
      %v1447 = vpop.f32.mrf.mxu0
      %v1448 = vadd.f32 %v1287, %v1447
      %v1449 = vpop.f32.mrf.mxu0
      %v1450 = vpop.f32.mrf.mxu0
      %v1451 = vadd.f32 %v1290, %v1450
      %v1452 = vpop.f32.mrf.mxu0
      %1453 = vmatprep.mubr.bf16.mxu0 0
      %1454 = vmatmul.mubr.bf16.gmra.mxu0 %v952
      %v1455 = vpop.f32.mrf.mxu0
      %v1456 = vadd.f32 %v1295, %v1455
      %v1457 = vpop.f32.mrf.mxu0
      %v1458 = vpop.f32.mrf.mxu0
      %v1459 = vadd.f32 %v1298, %v1458
      %v1460 = vpop.f32.mrf.mxu0
      %1461 = vmatprep.mubr.bf16.mxu0 0
      %1462 = vmatmul.mubr.bf16.gmra.mxu0 %v955
      %v1463 = vpop.f32.mrf.mxu0
      %v1464 = vadd.f32 %v1303, %v1463
      %v1465 = vpop.f32.mrf.mxu0
      %v1466 = vpop.f32.mrf.mxu0
      %v1467 = vadd.f32 %v1306, %v1466
      %v1468 = vpop.f32.mrf.mxu0
      %1469 = vdwg.mxu0
      %v1470 = vadd.f32 %v604, %v1344
      %v1471 = vadd.f32 %v605, %v1347
      %v1472 = vadd.f32 %v606, %v1352
      %v1473 = vadd.f32 %v607, %v1355
      %v1474 = vadd.f32 %v608, %v1360
      %v1475 = vadd.f32 %v609, %v1363
      %v1476 = vadd.f32 %v610, %v1368
      %v1477 = vadd.f32 %v611, %v1371
      %v1478 = vadd.f32 %v612, %v1376
      %v1479 = vadd.f32 %v613, %v1379
      %v1480 = vadd.f32 %v614, %v1384
      %v1481 = vadd.f32 %v615, %v1387
      %v1482 = vadd.f32 %v616, %v1392
      %v1483 = vadd.f32 %v617, %v1395
      %v1484 = vadd.f32 %v618, %v1400
      %v1485 = vadd.f32 %v619, %v1403
      %v1486 = vadd.f32 %v620, %v1408
      %v1487 = vadd.f32 %v621, %v1411
      %v1488 = vadd.f32 %v622, %v1416
      %v1489 = vadd.f32 %v623, %v1419
      %v1490 = vadd.f32 %v624, %v1424
      %v1491 = vadd.f32 %v625, %v1427
      %v1492 = vadd.f32 %v626, %v1432
      %v1493 = vadd.f32 %v627, %v1435
      %v1494 = vadd.f32 %v628, %v1440
      %v1495 = vadd.f32 %v629, %v1443
      %v1496 = vadd.f32 %v630, %v1448
      %v1497 = vadd.f32 %v631, %v1451
      %v1498 = vadd.f32 %v632, %v1456
      %v1499 = vadd.f32 %v633, %v1459
      %v1500 = vadd.f32 %v634, %v1464
      %v1501 = vadd.f32 %v635, %v1467
      %1502 = vst [vmem:[#allocation2] sm:$0xff] %v1470
      %1503 = vst [vmem:[#allocation2 + $0x8] sm:$0xff] %v1471
      %1504 = vst [vmem:[#allocation2 + $0x10] sm:$0xff] %v1472
      %1505 = vst [vmem:[#allocation2 + $0x18] sm:$0xff] %v1473
      %1506 = vst [vmem:[#allocation2 + $0x20] sm:$0xff] %v1474
      %1507 = vst [vmem:[#allocation2 + $0x28] sm:$0xff] %v1475
      %1508 = vst [vmem:[#allocation2 + $0x30] sm:$0xff] %v1476
      %1509 = vst [vmem:[#allocation2 + $0x38] sm:$0xff] %v1477
      %1510 = vst [vmem:[#allocation2 + $0x40] sm:$0xff] %v1478
      %1511 = vst [vmem:[#allocation2 + $0x48] sm:$0xff] %v1479
      %1512 = vst [vmem:[#allocation2 + $0x50] sm:$0xff] %v1480
      %1513 = vst [vmem:[#allocation2 + $0x58] sm:$0xff] %v1481
      %1514 = vst [vmem:[#allocation2 + $0x60] sm:$0xff] %v1482
      %1515 = vst [vmem:[#allocation2 + $0x68] sm:$0xff] %v1483
      %1516 = vst [vmem:[#allocation2 + $0x70] sm:$0xff] %v1484
      %1517 = vst [vmem:[#allocation2 + $0x78] sm:$0xff] %v1485
      %1518 = vst [vmem:[#allocation2 + $0x80] sm:$0xff] %v1486
      %1519 = vst [vmem:[#allocation2 + $0x88] sm:$0xff] %v1487
      %1520 = vst [vmem:[#allocation2 + $0x90] sm:$0xff] %v1488
      %1521 = vst [vmem:[#allocation2 + $0x98] sm:$0xff] %v1489
      %1522 = vst [vmem:[#allocation2 + $0xa0] sm:$0xff] %v1490
      %1523 = vst [vmem:[#allocation2 + $0xa8] sm:$0xff] %v1491
      %1524 = vst [vmem:[#allocation2 + $0xb0] sm:$0xff] %v1492
      %1525 = vst [vmem:[#allocation2 + $0xb8] sm:$0xff] %v1493
      %1526 = vst [vmem:[#allocation2 + $0xc0] sm:$0xff] %v1494
      %1527 = vst [vmem:[#allocation2 + $0xc8] sm:$0xff] %v1495
      %1528 = vst [vmem:[#allocation2 + $0xd0] sm:$0xff] %v1496
      %1529 = vst [vmem:[#allocation2 + $0xd8] sm:$0xff] %v1497
      %1530 = vst [vmem:[#allocation2 + $0xe0] sm:$0xff] %v1498
      %1531 = vst [vmem:[#allocation2 + $0xe8] sm:$0xff] %v1499
      %1532 = vst [vmem:[#allocation2 + $0xf0] sm:$0xff] %v1500
      %1533 = vst [vmem:[#allocation2 + $0xf8] sm:$0xff] %v1501
      // Predicated region
      $region57: #{dblock_more_dilate_forward.9} parent=51 // pred_check
        %p1534 = pneg %p568
      $region58: #{dblock_more_dilate_forward.9} parent=51 // pred_check_branch
        %1536 = sbr.rel (%p1534) target = $region60
      $region59: #{dblock_more_dilate_forward.9} parent=51 // pred_region
        %v1537 = vld [vmem:[#allocation2] sm:$0xff]
        %v1538 = vld [vmem:[#allocation2 + $0x8] sm:$0xff]
        %v1539 = vld [vmem:[#allocation2 + $0x10] sm:$0xff]
        %v1540 = vld [vmem:[#allocation2 + $0x18] sm:$0xff]
        %v1541 = vld [vmem:[#allocation2 + $0x20] sm:$0xff]
        %v1542 = vld [vmem:[#allocation2 + $0x28] sm:$0xff]
        %v1543 = vld [vmem:[#allocation2 + $0x30] sm:$0xff]
        %v1544 = vld [vmem:[#allocation2 + $0x38] sm:$0xff]
        %v1545 = vld [vmem:[#allocation2 + $0x40] sm:$0xff]
        %v1546 = vld [vmem:[#allocation2 + $0x48] sm:$0xff]
        %v1547 = vld [vmem:[#allocation2 + $0x50] sm:$0xff]
        %v1548 = vld [vmem:[#allocation2 + $0x58] sm:$0xff]
        %v1549 = vld [vmem:[#allocation2 + $0x60] sm:$0xff]
        %v1550 = vld [vmem:[#allocation2 + $0x68] sm:$0xff]
        %v1551 = vld [vmem:[#allocation2 + $0x70] sm:$0xff]
        %v1552 = vld [vmem:[#allocation2 + $0x78] sm:$0xff]
        %v1553 = vld [vmem:[#allocation2 + $0x80] sm:$0xff]
        %v1554 = vld [vmem:[#allocation2 + $0x88] sm:$0xff]
        %v1555 = vld [vmem:[#allocation2 + $0x90] sm:$0xff]
        %v1556 = vld [vmem:[#allocation2 + $0x98] sm:$0xff]
        %v1557 = vld [vmem:[#allocation2 + $0xa0] sm:$0xff]
        %v1558 = vld [vmem:[#allocation2 + $0xa8] sm:$0xff]
        %v1559 = vld [vmem:[#allocation2 + $0xb0] sm:$0xff]
        %v1560 = vld [vmem:[#allocation2 + $0xb8] sm:$0xff]
        %v1561 = vld [vmem:[#allocation2 + $0xc0] sm:$0xff]
        %v1562 = vld [vmem:[#allocation2 + $0xc8] sm:$0xff]
        %v1563 = vld [vmem:[#allocation2 + $0xd0] sm:$0xff]
        %v1564 = vld [vmem:[#allocation2 + $0xd8] sm:$0xff]
        %v1565 = vld [vmem:[#allocation2 + $0xe0] sm:$0xff]
        %v1566 = vld [vmem:[#allocation2 + $0xe8] sm:$0xff]
        %v1567 = vld [vmem:[#allocation2 + $0xf0] sm:$0xff]
        %v1568 = vld [vmem:[#allocation2 + $0xf8] sm:$0xff]
        %v1569 = vld [vmem:[%s512] sm:$0x1]
        %v1571 = vlaneseq
        %v1572 = vshrl.u32 %v1571, 7
        %v1573 = vsub.s32 0, %v1572
        %v1574 = vrot.slane %v1569, %v1573
        %v1576 = vadd.f32 %v1537, %v1574
        %v1577 = vadd.f32 %v1538, %v1574
        %v1578 = vadd.f32 %v1539, %v1574
        %v1579 = vadd.f32 %v1540, %v1574
        %v1580 = vadd.f32 %v1541, %v1574
        %v1581 = vadd.f32 %v1542, %v1574
        %v1582 = vadd.f32 %v1543, %v1574
        %v1583 = vadd.f32 %v1544, %v1574
        %v1584 = vadd.f32 %v1545, %v1574
        %v1585 = vadd.f32 %v1546, %v1574
        %v1586 = vadd.f32 %v1547, %v1574
        %v1587 = vadd.f32 %v1548, %v1574
        %v1588 = vadd.f32 %v1549, %v1574
        %v1589 = vadd.f32 %v1550, %v1574
        %v1590 = vadd.f32 %v1551, %v1574
        %v1591 = vadd.f32 %v1552, %v1574
        %v1592 = vadd.f32 %v1553, %v1574
        %v1593 = vadd.f32 %v1554, %v1574
        %v1594 = vadd.f32 %v1555, %v1574
        %v1595 = vadd.f32 %v1556, %v1574
        %v1596 = vadd.f32 %v1557, %v1574
        %v1597 = vadd.f32 %v1558, %v1574
        %v1598 = vadd.f32 %v1559, %v1574
        %v1599 = vadd.f32 %v1560, %v1574
        %v1600 = vadd.f32 %v1561, %v1574
        %v1601 = vadd.f32 %v1562, %v1574
        %v1602 = vadd.f32 %v1563, %v1574
        %v1603 = vadd.f32 %v1564, %v1574
        %v1604 = vadd.f32 %v1565, %v1574
        %v1605 = vadd.f32 %v1566, %v1574
        %v1606 = vadd.f32 %v1567, %v1574
        %v1607 = vadd.f32 %v1568, %v1574
        %v1608 = vmax.f32 %v1576, 0.0
        %v1609 = vmax.f32 %v1577, 0.0
        %v1610 = vmax.f32 %v1578, 0.0
        %v1611 = vmax.f32 %v1579, 0.0
        %v1612 = vmax.f32 %v1580, 0.0
        %v1613 = vmax.f32 %v1581, 0.0
        %v1614 = vmax.f32 %v1582, 0.0
        %v1615 = vmax.f32 %v1583, 0.0
        %v1616 = vmax.f32 %v1584, 0.0
        %v1617 = vmax.f32 %v1585, 0.0
        %v1618 = vmax.f32 %v1586, 0.0
        %v1619 = vmax.f32 %v1587, 0.0
        %v1620 = vmax.f32 %v1588, 0.0
        %v1621 = vmax.f32 %v1589, 0.0
        %v1622 = vmax.f32 %v1590, 0.0
        %v1623 = vmax.f32 %v1591, 0.0
        %v1624 = vmax.f32 %v1592, 0.0
        %v1625 = vmax.f32 %v1593, 0.0
        %v1626 = vmax.f32 %v1594, 0.0
        %v1627 = vmax.f32 %v1595, 0.0
        %v1628 = vmax.f32 %v1596, 0.0
        %v1629 = vmax.f32 %v1597, 0.0
        %v1630 = vmax.f32 %v1598, 0.0
        %v1631 = vmax.f32 %v1599, 0.0
        %v1632 = vmax.f32 %v1600, 0.0
        %v1633 = vmax.f32 %v1601, 0.0
        %v1634 = vmax.f32 %v1602, 0.0
        %v1635 = vmax.f32 %v1603, 0.0
        %v1636 = vmax.f32 %v1604, 0.0
        %v1637 = vmax.f32 %v1605, 0.0
        %v1638 = vmax.f32 %v1606, 0.0
        %v1639 = vmax.f32 %v1607, 0.0
        %v1640 = vld [vmem:[%s520] sm:$0xff]
        %v1641 = vld [vmem:[%s520 + $0x8] sm:$0xff]
        %v1642 = vld [vmem:[%s520 + $0x10] sm:$0xff]
        %v1643 = vld [vmem:[%s520 + $0x18] sm:$0xff]
        %v1644 = vld [vmem:[%s520 + $0x20] sm:$0xff]
        %v1645 = vld [vmem:[%s520 + $0x28] sm:$0xff]
        %v1646 = vld [vmem:[%s520 + $0x30] sm:$0xff]
        %v1647 = vld [vmem:[%s520 + $0x38] sm:$0xff]
        %v1648 = vld [vmem:[%s520 + $0x40] sm:$0xff]
        %v1649 = vld [vmem:[%s520 + $0x48] sm:$0xff]
        %v1650 = vld [vmem:[%s520 + $0x50] sm:$0xff]
        %v1651 = vld [vmem:[%s520 + $0x58] sm:$0xff]
        %v1652 = vld [vmem:[%s520 + $0x60] sm:$0xff]
        %v1653 = vld [vmem:[%s520 + $0x68] sm:$0xff]
        %v1654 = vld [vmem:[%s520 + $0x70] sm:$0xff]
        %v1655 = vld [vmem:[%s520 + $0x78] sm:$0xff]
        %v1656 = vld [vmem:[%s520 + $0x80] sm:$0xff]
        %v1657 = vld [vmem:[%s520 + $0x88] sm:$0xff]
        %v1658 = vld [vmem:[%s520 + $0x90] sm:$0xff]
        %v1659 = vld [vmem:[%s520 + $0x98] sm:$0xff]
        %v1660 = vld [vmem:[%s520 + $0xa0] sm:$0xff]
        %v1661 = vld [vmem:[%s520 + $0xa8] sm:$0xff]
        %v1662 = vld [vmem:[%s520 + $0xb0] sm:$0xff]
        %v1663 = vld [vmem:[%s520 + $0xb8] sm:$0xff]
        %v1664 = vld [vmem:[%s520 + $0xc0] sm:$0xff]
        %v1665 = vld [vmem:[%s520 + $0xc8] sm:$0xff]
        %v1666 = vld [vmem:[%s520 + $0xd0] sm:$0xff]
        %v1667 = vld [vmem:[%s520 + $0xd8] sm:$0xff]
        %v1668 = vld [vmem:[%s520 + $0xe0] sm:$0xff]
        %v1669 = vld [vmem:[%s520 + $0xe8] sm:$0xff]
        %v1670 = vld [vmem:[%s520 + $0xf0] sm:$0xff]
        %v1671 = vld [vmem:[%s520 + $0xf8] sm:$0xff]
        %v1672 = vadd.f32 %v1608, %v1640
        %v1673 = vadd.f32 %v1609, %v1641
        %v1674 = vadd.f32 %v1610, %v1642
        %v1675 = vadd.f32 %v1611, %v1643
        %v1676 = vadd.f32 %v1612, %v1644
        %v1677 = vadd.f32 %v1613, %v1645
        %v1678 = vadd.f32 %v1614, %v1646
        %v1679 = vadd.f32 %v1615, %v1647
        %v1680 = vadd.f32 %v1616, %v1648
        %v1681 = vadd.f32 %v1617, %v1649
        %v1682 = vadd.f32 %v1618, %v1650
        %v1683 = vadd.f32 %v1619, %v1651
        %v1684 = vadd.f32 %v1620, %v1652
        %v1685 = vadd.f32 %v1621, %v1653
        %v1686 = vadd.f32 %v1622, %v1654
        %v1687 = vadd.f32 %v1623, %v1655
        %v1688 = vadd.f32 %v1624, %v1656
        %v1689 = vadd.f32 %v1625, %v1657
        %v1690 = vadd.f32 %v1626, %v1658
        %v1691 = vadd.f32 %v1627, %v1659
        %v1692 = vadd.f32 %v1628, %v1660
        %v1693 = vadd.f32 %v1629, %v1661
        %v1694 = vadd.f32 %v1630, %v1662
        %v1695 = vadd.f32 %v1631, %v1663
        %v1696 = vadd.f32 %v1632, %v1664
        %v1697 = vadd.f32 %v1633, %v1665
        %v1698 = vadd.f32 %v1634, %v1666
        %v1699 = vadd.f32 %v1635, %v1667
        %v1700 = vadd.f32 %v1636, %v1668
        %v1701 = vadd.f32 %v1637, %v1669
        %v1702 = vadd.f32 %v1638, %v1670
        %v1703 = vadd.f32 %v1639, %v1671
        %v1704 = vld [vmem:[%s529] sm:$0xff]
        %v1705 = vld [vmem:[%s529 + $0x8] sm:$0xff]
        %v1706 = vld [vmem:[%s529 + $0x10] sm:$0xff]
        %v1707 = vld [vmem:[%s529 + $0x18] sm:$0xff]
        %v1708 = vld [vmem:[%s529 + $0x20] sm:$0xff]
        %v1709 = vld [vmem:[%s529 + $0x28] sm:$0xff]
        %v1710 = vld [vmem:[%s529 + $0x30] sm:$0xff]
        %v1711 = vld [vmem:[%s529 + $0x38] sm:$0xff]
        %v1712 = vld [vmem:[%s529 + $0x40] sm:$0xff]
        %v1713 = vld [vmem:[%s529 + $0x48] sm:$0xff]
        %v1714 = vld [vmem:[%s529 + $0x50] sm:$0xff]
        %v1715 = vld [vmem:[%s529 + $0x58] sm:$0xff]
        %v1716 = vld [vmem:[%s529 + $0x60] sm:$0xff]
        %v1717 = vld [vmem:[%s529 + $0x68] sm:$0xff]
        %v1718 = vld [vmem:[%s529 + $0x70] sm:$0xff]
        %v1719 = vld [vmem:[%s529 + $0x78] sm:$0xff]
        %v1720 = vld [vmem:[%s529 + $0x80] sm:$0xff]
        %v1721 = vld [vmem:[%s529 + $0x88] sm:$0xff]
        %v1722 = vld [vmem:[%s529 + $0x90] sm:$0xff]
        %v1723 = vld [vmem:[%s529 + $0x98] sm:$0xff]
        %v1724 = vld [vmem:[%s529 + $0xa0] sm:$0xff]
        %v1725 = vld [vmem:[%s529 + $0xa8] sm:$0xff]
        %v1726 = vld [vmem:[%s529 + $0xb0] sm:$0xff]
        %v1727 = vld [vmem:[%s529 + $0xb8] sm:$0xff]
        %v1728 = vld [vmem:[%s529 + $0xc0] sm:$0xff]
        %v1729 = vld [vmem:[%s529 + $0xc8] sm:$0xff]
        %v1730 = vld [vmem:[%s529 + $0xd0] sm:$0xff]
        %v1731 = vld [vmem:[%s529 + $0xd8] sm:$0xff]
        %v1732 = vld [vmem:[%s529 + $0xe0] sm:$0xff]
        %v1733 = vld [vmem:[%s529 + $0xe8] sm:$0xff]
        %v1734 = vld [vmem:[%s529 + $0xf0] sm:$0xff]
        %v1735 = vld [vmem:[%s529 + $0xf8] sm:$0xff]
        %v1736 = vadd.f32 %v1672, %v1704
        %v1737 = vadd.f32 %v1673, %v1705
        %v1738 = vadd.f32 %v1674, %v1706
        %v1739 = vadd.f32 %v1675, %v1707
        %v1740 = vadd.f32 %v1676, %v1708
        %v1741 = vadd.f32 %v1677, %v1709
        %v1742 = vadd.f32 %v1678, %v1710
        %v1743 = vadd.f32 %v1679, %v1711
        %v1744 = vadd.f32 %v1680, %v1712
        %v1745 = vadd.f32 %v1681, %v1713
        %v1746 = vadd.f32 %v1682, %v1714
        %v1747 = vadd.f32 %v1683, %v1715
        %v1748 = vadd.f32 %v1684, %v1716
        %v1749 = vadd.f32 %v1685, %v1717
        %v1750 = vadd.f32 %v1686, %v1718
        %v1751 = vadd.f32 %v1687, %v1719
        %v1752 = vadd.f32 %v1688, %v1720
        %v1753 = vadd.f32 %v1689, %v1721
        %v1754 = vadd.f32 %v1690, %v1722
        %v1755 = vadd.f32 %v1691, %v1723
        %v1756 = vadd.f32 %v1692, %v1724
        %v1757 = vadd.f32 %v1693, %v1725
        %v1758 = vadd.f32 %v1694, %v1726
        %v1759 = vadd.f32 %v1695, %v1727
        %v1760 = vadd.f32 %v1696, %v1728
        %v1761 = vadd.f32 %v1697, %v1729
        %v1762 = vadd.f32 %v1698, %v1730
        %v1763 = vadd.f32 %v1699, %v1731
        %v1764 = vadd.f32 %v1700, %v1732
        %v1765 = vadd.f32 %v1701, %v1733
        %v1766 = vadd.f32 %v1702, %v1734
        %v1767 = vadd.f32 %v1703, %v1735
        %v1768 = vld [vmem:[%s538] sm:$0xff]
        %v1769 = vld [vmem:[%s538 + $0x8] sm:$0xff]
        %v1770 = vld [vmem:[%s538 + $0x10] sm:$0xff]
        %v1771 = vld [vmem:[%s538 + $0x18] sm:$0xff]
        %v1772 = vld [vmem:[%s538 + $0x20] sm:$0xff]
        %v1773 = vld [vmem:[%s538 + $0x28] sm:$0xff]
        %v1774 = vld [vmem:[%s538 + $0x30] sm:$0xff]
        %v1775 = vld [vmem:[%s538 + $0x38] sm:$0xff]
        %v1776 = vld [vmem:[%s538 + $0x40] sm:$0xff]
        %v1777 = vld [vmem:[%s538 + $0x48] sm:$0xff]
        %v1778 = vld [vmem:[%s538 + $0x50] sm:$0xff]
        %v1779 = vld [vmem:[%s538 + $0x58] sm:$0xff]
        %v1780 = vld [vmem:[%s538 + $0x60] sm:$0xff]
        %v1781 = vld [vmem:[%s538 + $0x68] sm:$0xff]
        %v1782 = vld [vmem:[%s538 + $0x70] sm:$0xff]
        %v1783 = vld [vmem:[%s538 + $0x78] sm:$0xff]
        %v1784 = vld [vmem:[%s538 + $0x80] sm:$0xff]
        %v1785 = vld [vmem:[%s538 + $0x88] sm:$0xff]
        %v1786 = vld [vmem:[%s538 + $0x90] sm:$0xff]
        %v1787 = vld [vmem:[%s538 + $0x98] sm:$0xff]
        %v1788 = vld [vmem:[%s538 + $0xa0] sm:$0xff]
        %v1789 = vld [vmem:[%s538 + $0xa8] sm:$0xff]
        %v1790 = vld [vmem:[%s538 + $0xb0] sm:$0xff]
        %v1791 = vld [vmem:[%s538 + $0xb8] sm:$0xff]
        %v1792 = vld [vmem:[%s538 + $0xc0] sm:$0xff]
        %v1793 = vld [vmem:[%s538 + $0xc8] sm:$0xff]
        %v1794 = vld [vmem:[%s538 + $0xd0] sm:$0xff]
        %v1795 = vld [vmem:[%s538 + $0xd8] sm:$0xff]
        %v1796 = vld [vmem:[%s538 + $0xe0] sm:$0xff]
        %v1797 = vld [vmem:[%s538 + $0xe8] sm:$0xff]
        %v1798 = vld [vmem:[%s538 + $0xf0] sm:$0xff]
        %v1799 = vld [vmem:[%s538 + $0xf8] sm:$0xff]
        %v1800 = vadd.f32 %v1736, %v1768
        %v1801 = vadd.f32 %v1737, %v1769
        %v1802 = vadd.f32 %v1738, %v1770
        %v1803 = vadd.f32 %v1739, %v1771
        %v1804 = vadd.f32 %v1740, %v1772
        %v1805 = vadd.f32 %v1741, %v1773
        %v1806 = vadd.f32 %v1742, %v1774
        %v1807 = vadd.f32 %v1743, %v1775
        %v1808 = vadd.f32 %v1744, %v1776
        %v1809 = vadd.f32 %v1745, %v1777
        %v1810 = vadd.f32 %v1746, %v1778
        %v1811 = vadd.f32 %v1747, %v1779
        %v1812 = vadd.f32 %v1748, %v1780
        %v1813 = vadd.f32 %v1749, %v1781
        %v1814 = vadd.f32 %v1750, %v1782
        %v1815 = vadd.f32 %v1751, %v1783
        %v1816 = vadd.f32 %v1752, %v1784
        %v1817 = vadd.f32 %v1753, %v1785
        %v1818 = vadd.f32 %v1754, %v1786
        %v1819 = vadd.f32 %v1755, %v1787
        %v1820 = vadd.f32 %v1756, %v1788
        %v1821 = vadd.f32 %v1757, %v1789
        %v1822 = vadd.f32 %v1758, %v1790
        %v1823 = vadd.f32 %v1759, %v1791
        %v1824 = vadd.f32 %v1760, %v1792
        %v1825 = vadd.f32 %v1761, %v1793
        %v1826 = vadd.f32 %v1762, %v1794
        %v1827 = vadd.f32 %v1763, %v1795
        %v1828 = vadd.f32 %v1764, %v1796
        %v1829 = vadd.f32 %v1765, %v1797
        %v1830 = vadd.f32 %v1766, %v1798
        %v1831 = vadd.f32 %v1767, %v1799
        %v1832 = vld [vmem:[%s547] sm:$0xff]
        %v1833 = vld [vmem:[%s547 + $0x8] sm:$0xff]
        %v1834 = vld [vmem:[%s547 + $0x10] sm:$0xff]
        %v1835 = vld [vmem:[%s547 + $0x18] sm:$0xff]
        %v1836 = vld [vmem:[%s547 + $0x20] sm:$0xff]
        %v1837 = vld [vmem:[%s547 + $0x28] sm:$0xff]
        %v1838 = vld [vmem:[%s547 + $0x30] sm:$0xff]
        %v1839 = vld [vmem:[%s547 + $0x38] sm:$0xff]
        %v1840 = vld [vmem:[%s547 + $0x40] sm:$0xff]
        %v1841 = vld [vmem:[%s547 + $0x48] sm:$0xff]
        %v1842 = vld [vmem:[%s547 + $0x50] sm:$0xff]
        %v1843 = vld [vmem:[%s547 + $0x58] sm:$0xff]
        %v1844 = vld [vmem:[%s547 + $0x60] sm:$0xff]
        %v1845 = vld [vmem:[%s547 + $0x68] sm:$0xff]
        %v1846 = vld [vmem:[%s547 + $0x70] sm:$0xff]
        %v1847 = vld [vmem:[%s547 + $0x78] sm:$0xff]
        %v1848 = vld [vmem:[%s547 + $0x80] sm:$0xff]
        %v1849 = vld [vmem:[%s547 + $0x88] sm:$0xff]
        %v1850 = vld [vmem:[%s547 + $0x90] sm:$0xff]
        %v1851 = vld [vmem:[%s547 + $0x98] sm:$0xff]
        %v1852 = vld [vmem:[%s547 + $0xa0] sm:$0xff]
        %v1853 = vld [vmem:[%s547 + $0xa8] sm:$0xff]
        %v1854 = vld [vmem:[%s547 + $0xb0] sm:$0xff]
        %v1855 = vld [vmem:[%s547 + $0xb8] sm:$0xff]
        %v1856 = vld [vmem:[%s547 + $0xc0] sm:$0xff]
        %v1857 = vld [vmem:[%s547 + $0xc8] sm:$0xff]
        %v1858 = vld [vmem:[%s547 + $0xd0] sm:$0xff]
        %v1859 = vld [vmem:[%s547 + $0xd8] sm:$0xff]
        %v1860 = vld [vmem:[%s547 + $0xe0] sm:$0xff]
        %v1861 = vld [vmem:[%s547 + $0xe8] sm:$0xff]
        %v1862 = vld [vmem:[%s547 + $0xf0] sm:$0xff]
        %v1863 = vld [vmem:[%s547 + $0xf8] sm:$0xff]
        %v1864 = vadd.f32 %v1800, %v1832
        %v1865 = vadd.f32 %v1801, %v1833
        %v1866 = vadd.f32 %v1802, %v1834
        %v1867 = vadd.f32 %v1803, %v1835
        %v1868 = vadd.f32 %v1804, %v1836
        %v1869 = vadd.f32 %v1805, %v1837
        %v1870 = vadd.f32 %v1806, %v1838
        %v1871 = vadd.f32 %v1807, %v1839
        %v1872 = vadd.f32 %v1808, %v1840
        %v1873 = vadd.f32 %v1809, %v1841
        %v1874 = vadd.f32 %v1810, %v1842
        %v1875 = vadd.f32 %v1811, %v1843
        %v1876 = vadd.f32 %v1812, %v1844
        %v1877 = vadd.f32 %v1813, %v1845
        %v1878 = vadd.f32 %v1814, %v1846
        %v1879 = vadd.f32 %v1815, %v1847
        %v1880 = vadd.f32 %v1816, %v1848
        %v1881 = vadd.f32 %v1817, %v1849
        %v1882 = vadd.f32 %v1818, %v1850
        %v1883 = vadd.f32 %v1819, %v1851
        %v1884 = vadd.f32 %v1820, %v1852
        %v1885 = vadd.f32 %v1821, %v1853
        %v1886 = vadd.f32 %v1822, %v1854
        %v1887 = vadd.f32 %v1823, %v1855
        %v1888 = vadd.f32 %v1824, %v1856
        %v1889 = vadd.f32 %v1825, %v1857
        %v1890 = vadd.f32 %v1826, %v1858
        %v1891 = vadd.f32 %v1827, %v1859
        %v1892 = vadd.f32 %v1828, %v1860
        %v1893 = vadd.f32 %v1829, %v1861
        %v1894 = vadd.f32 %v1830, %v1862
        %v1895 = vadd.f32 %v1831, %v1863
        %v1896 = vld [vmem:[%s556] sm:$0xff]
        %v1897 = vld [vmem:[%s556 + $0x8] sm:$0xff]
        %v1898 = vld [vmem:[%s556 + $0x10] sm:$0xff]
        %v1899 = vld [vmem:[%s556 + $0x18] sm:$0xff]
        %v1900 = vld [vmem:[%s556 + $0x20] sm:$0xff]
        %v1901 = vld [vmem:[%s556 + $0x28] sm:$0xff]
        %v1902 = vld [vmem:[%s556 + $0x30] sm:$0xff]
        %v1903 = vld [vmem:[%s556 + $0x38] sm:$0xff]
        %v1904 = vld [vmem:[%s556 + $0x40] sm:$0xff]
        %v1905 = vld [vmem:[%s556 + $0x48] sm:$0xff]
        %v1906 = vld [vmem:[%s556 + $0x50] sm:$0xff]
        %v1907 = vld [vmem:[%s556 + $0x58] sm:$0xff]
        %v1908 = vld [vmem:[%s556 + $0x60] sm:$0xff]
        %v1909 = vld [vmem:[%s556 + $0x68] sm:$0xff]
        %v1910 = vld [vmem:[%s556 + $0x70] sm:$0xff]
        %v1911 = vld [vmem:[%s556 + $0x78] sm:$0xff]
        %v1912 = vld [vmem:[%s556 + $0x80] sm:$0xff]
        %v1913 = vld [vmem:[%s556 + $0x88] sm:$0xff]
        %v1914 = vld [vmem:[%s556 + $0x90] sm:$0xff]
        %v1915 = vld [vmem:[%s556 + $0x98] sm:$0xff]
        %v1916 = vld [vmem:[%s556 + $0xa0] sm:$0xff]
        %v1917 = vld [vmem:[%s556 + $0xa8] sm:$0xff]
        %v1918 = vld [vmem:[%s556 + $0xb0] sm:$0xff]
        %v1919 = vld [vmem:[%s556 + $0xb8] sm:$0xff]
        %v1920 = vld [vmem:[%s556 + $0xc0] sm:$0xff]
        %v1921 = vld [vmem:[%s556 + $0xc8] sm:$0xff]
        %v1922 = vld [vmem:[%s556 + $0xd0] sm:$0xff]
        %v1923 = vld [vmem:[%s556 + $0xd8] sm:$0xff]
        %v1924 = vld [vmem:[%s556 + $0xe0] sm:$0xff]
        %v1925 = vld [vmem:[%s556 + $0xe8] sm:$0xff]
        %v1926 = vld [vmem:[%s556 + $0xf0] sm:$0xff]
        %v1927 = vld [vmem:[%s556 + $0xf8] sm:$0xff]
        %v1928 = vadd.f32 %v1864, %v1896
        %v1929 = vadd.f32 %v1865, %v1897
        %v1930 = vadd.f32 %v1866, %v1898
        %v1931 = vadd.f32 %v1867, %v1899
        %v1932 = vadd.f32 %v1868, %v1900
        %v1933 = vadd.f32 %v1869, %v1901
        %v1934 = vadd.f32 %v1870, %v1902
        %v1935 = vadd.f32 %v1871, %v1903
        %v1936 = vadd.f32 %v1872, %v1904
        %v1937 = vadd.f32 %v1873, %v1905
        %v1938 = vadd.f32 %v1874, %v1906
        %v1939 = vadd.f32 %v1875, %v1907
        %v1940 = vadd.f32 %v1876, %v1908
        %v1941 = vadd.f32 %v1877, %v1909
        %v1942 = vadd.f32 %v1878, %v1910
        %v1943 = vadd.f32 %v1879, %v1911
        %v1944 = vadd.f32 %v1880, %v1912
        %v1945 = vadd.f32 %v1881, %v1913
        %v1946 = vadd.f32 %v1882, %v1914
        %v1947 = vadd.f32 %v1883, %v1915
        %v1948 = vadd.f32 %v1884, %v1916
        %v1949 = vadd.f32 %v1885, %v1917
        %v1950 = vadd.f32 %v1886, %v1918
        %v1951 = vadd.f32 %v1887, %v1919
        %v1952 = vadd.f32 %v1888, %v1920
        %v1953 = vadd.f32 %v1889, %v1921
        %v1954 = vadd.f32 %v1890, %v1922
        %v1955 = vadd.f32 %v1891, %v1923
        %v1956 = vadd.f32 %v1892, %v1924
        %v1957 = vadd.f32 %v1893, %v1925
        %v1958 = vadd.f32 %v1894, %v1926
        %v1959 = vadd.f32 %v1895, %v1927
        %1960 = vst [vmem:[%s565] sm:$0xff] %v1928
        %1961 = vst [vmem:[%s565 + $0x8] sm:$0xff] %v1929
        %1962 = vst [vmem:[%s565 + $0x10] sm:$0xff] %v1930
        %1963 = vst [vmem:[%s565 + $0x18] sm:$0xff] %v1931
        %1964 = vst [vmem:[%s565 + $0x20] sm:$0xff] %v1932
        %1965 = vst [vmem:[%s565 + $0x28] sm:$0xff] %v1933
        %1966 = vst [vmem:[%s565 + $0x30] sm:$0xff] %v1934
        %1967 = vst [vmem:[%s565 + $0x38] sm:$0xff] %v1935
        %1968 = vst [vmem:[%s565 + $0x40] sm:$0xff] %v1936
        %1969 = vst [vmem:[%s565 + $0x48] sm:$0xff] %v1937
        %1970 = vst [vmem:[%s565 + $0x50] sm:$0xff] %v1938
        %1971 = vst [vmem:[%s565 + $0x58] sm:$0xff] %v1939
        %1972 = vst [vmem:[%s565 + $0x60] sm:$0xff] %v1940
        %1973 = vst [vmem:[%s565 + $0x68] sm:$0xff] %v1941
        %1974 = vst [vmem:[%s565 + $0x70] sm:$0xff] %v1942
        %1975 = vst [vmem:[%s565 + $0x78] sm:$0xff] %v1943
        %1976 = vst [vmem:[%s565 + $0x80] sm:$0xff] %v1944
        %1977 = vst [vmem:[%s565 + $0x88] sm:$0xff] %v1945
        %1978 = vst [vmem:[%s565 + $0x90] sm:$0xff] %v1946
        %1979 = vst [vmem:[%s565 + $0x98] sm:$0xff] %v1947
        %1980 = vst [vmem:[%s565 + $0xa0] sm:$0xff] %v1948
        %1981 = vst [vmem:[%s565 + $0xa8] sm:$0xff] %v1949
        %1982 = vst [vmem:[%s565 + $0xb0] sm:$0xff] %v1950
        %1983 = vst [vmem:[%s565 + $0xb8] sm:$0xff] %v1951
        %1984 = vst [vmem:[%s565 + $0xc0] sm:$0xff] %v1952
        %1985 = vst [vmem:[%s565 + $0xc8] sm:$0xff] %v1953
        %1986 = vst [vmem:[%s565 + $0xd0] sm:$0xff] %v1954
        %1987 = vst [vmem:[%s565 + $0xd8] sm:$0xff] %v1955
        %1988 = vst [vmem:[%s565 + $0xe0] sm:$0xff] %v1956
        %1989 = vst [vmem:[%s565 + $0xe8] sm:$0xff] %v1957
        %1990 = vst [vmem:[%s565 + $0xf0] sm:$0xff] %v1958
        %1991 = vst [vmem:[%s565 + $0xf8] sm:$0xff] %v1959
      $region60: #{dblock_more_dilate_forward.9} parent=51 // pred_fallthru
        _
      %s1992 = smul.u32 32, %s24
      %p1993 = scmp.lt.s32.totalorder %s1992, 255
      %s1994 = scalar_select %p1993, %s1992, 255
      %p1995 = scmp.lt.s32.totalorder %s25, 0
      %s1996 = scalar_select %p1995, %s25, 0
      %s1997 = sadd.s32 %s1996, %s1994
      %s1998 = smul.addr %s1997, 8
      %s1999 = scalar_lea.vmem %s8, %s1998
      // Predicated region
      $region61: #{dblock_more_dilate_forward.9} parent=51 // pred_check
        %p2000 = pneg %p280
      $region62: #{dblock_more_dilate_forward.9} parent=51 // pred_check_branch
        %2002 = sbr.rel (%p2000) target = $region64
      $region63: #{dblock_more_dilate_forward.9} parent=51 // pred_region
        %s2003 = smul.u32 32, %s24
      $region64: #{dblock_more_dilate_forward.9} parent=51 // pred_fallthru
        _
    $region52: #{dblock_more_dilate_forward.9} parent=5 // pred_fallthru
      _
    %p2004 = scmp.le.s32.totalorder 2, %s14
    // Predicated region
    $region65: #{dblock_more_dilate_forward.9} parent=5 // pred_check
      %p2005 = pneg %p2004
    $region66: #{dblock_more_dilate_forward.9} parent=5 // pred_check_branch
      %2007 = sbr.rel (%p2005) target = $region68
    $region67: #{dblock_more_dilate_forward.9} parent=5 // pred_region
      %s2008 = ssub.s32 %s14, 2
      // Predicated region
      $region69: #{dblock_more_dilate_forward.9} parent=67 // pred_check
        %p2009 = pneg %p286
      $region70: #{dblock_more_dilate_forward.9} parent=67 // pred_check_branch
        %2011 = sbr.rel (%p2009) target = $region72
      $region71: #{dblock_more_dilate_forward.9} parent=67 // pred_region
        %s2012 = smul.u32 32, %s27
        %p2013 = scmp.lt.s32.totalorder %s2012, 255
        %s2014 = scalar_select %p2013, %s2012, 255
        %p2015 = scmp.lt.s32.totalorder %s28, 0
        %s2016 = scalar_select %p2015, %s28, 0
        %s2017 = sadd.s32 %s2016, %s2014
        %s2018 = smul.addr %s2017, 8
        %s2019 = scalar_lea.vmem %s8, %s2018
      $region72: #{dblock_more_dilate_forward.9} parent=67 // pred_fallthru
        _
    $region68: #{dblock_more_dilate_forward.9} parent=5 // pred_fallthru
      _
  $region6: #{dblock_more_dilate_forward.9} parent=0 // loop_footer
    %s18 = sadd.s32 1, %s14
  $region7: #{dblock_more_dilate_forward.9} parent=0 // loop_footer_branch
    %13 = sbr.rel target = $region3
  $region8: #{dblock_more_dilate_forward.9} parent=0 // loop_exit
    _

</llo_original>
